<compile_context>
chip_gen: v5e
topology: v5e:2x2
jax: 0.10.0
libtpu: 0.0.40
codegen_flags: <defaults>
</compile_context>

<pallas_src>
import functools

import jax
import jax.numpy as jnp
from jax.experimental import pallas as pl
from jax.experimental.pallas import tpu as pltpu


# ----------------------------- Pallas kernel --------------------------------
def gru_decoder_kernel(
    z_ref,                       # [B, L]     latent codes
    l2h_w_ref, l2h_b_ref,        # [L, Hp], [1, Hp]     latent2hidden (padded)
    w_f_ref,                     # [Hp, 6Hp]  fused [wih1 | whh0], per-gate padded
    whh1_ref,                    # [Hp, 3Hp]  GRU layer 1 hidden weights (padded)
    b0_ru_ref,                   # [B, 2Hp]   (bih0 + bhh0) for r/u gates, layer 0
    b0n_i_ref, b0n_h_ref,        # [B, Hp]    n-gate biases, layer 0 (ih / hh)
    b1_ru_ref,                   # [B, 2Hp]   (bih1 + bhh1) for r/u gates, layer 1
    b1n_i_ref, b1n_h_ref,        # [B, Hp]    n-gate biases, layer 1 (ih / hh)
    h2o_w_ref, h2o_b_ref,        # [Hp, D], [1, D]      hidden2output (padded)
    out_ref,                     # [B, D]
    *, seq_len,
):
    Hp = l2h_w_ref.shape[1]

    # latent2hidden: h_state = z @ W.T + b   (weights passed pre-transposed)
    z = z_ref[...]
    h_state = (
        jnp.dot(z, l2h_w_ref[...], preferred_element_type=jnp.float32)
        + l2h_b_ref[...]
    )
    # h_0 = stack([h_state, h_state]) -> both GRU layers start from h_state.
    h0 = h_state
    h1 = h_state

    w_f = w_f_ref[...]
    whh1 = whh1_ref[...]
    b0_ru = b0_ru_ref[...]
    b0n_i = b0n_i_ref[...]
    b0n_h = b0n_h_ref[...]
    b1_ru = b1_ru_ref[...]
    b1n_i = b1n_i_ref[...]
    b1n_h = b1n_h_ref[...]

    # Prime gh0 for t = 0 (the second half of the fused weight is whh0).
    gh0_lin = jnp.dot(h0, w_f[:, 3 * Hp:], preferred_element_type=jnp.float32)

    # Static (unrolled) time loop. PyTorch gate order along 3Hp: [reset|update|new].
    for _ in range(seq_len):
        # ---- layer 0: input is all-zero, so gi0 == bih0 (folded into biases) ----
        a0 = jax.nn.sigmoid(gh0_lin[:, : 2 * Hp] + b0_ru)
        r0 = a0[:, :Hp]
        u0 = a0[:, Hp:]
        n0 = jnp.tanh(b0n_i + r0 * (gh0_lin[:, 2 * Hp:] + b0n_h))
        h0 = n0 + u0 * (h0 - n0)                 # == (1-u)*n + u*h_prev

        # ---- fused matmul: gi1(t) and gh0(t+1) both consume h0(t) ----
        fused = jnp.dot(h0, w_f, preferred_element_type=jnp.float32)   # [B, 6Hp]
        gi1 = fused[:, : 3 * Hp]
        gh0_lin = fused[:, 3 * Hp:]              # used by layer 0 at step t+1

        # ---- layer 1 ----
        gh1_lin = jnp.dot(h1, whh1, preferred_element_type=jnp.float32)
        a1 = jax.nn.sigmoid(gi1[:, : 2 * Hp] + gh1_lin[:, : 2 * Hp] + b1_ru)
        r1 = a1[:, :Hp]
        u1 = a1[:, Hp:]
        n1 = jnp.tanh(gi1[:, 2 * Hp:] + b1n_i + r1 * (gh1_lin[:, 2 * Hp:] + b1n_h))
        h1 = n1 + u1 * (h1 - n1)

    # hidden2output on the last top-layer hidden state.
    out_ref[...] = (
        jnp.dot(h1, h2o_w_ref[...], preferred_element_type=jnp.float32)
        + h2o_b_ref[...]
    )


# --------------------- host-side weight padding / fusion ---------------------
def _prepare_kernel_args(z, params, hidden_dim, hp):
    """Pad hidden dim to `hp` lanes per gate, fuse [wih1|whh0], fold biases."""
    H, Hp = hidden_dim, hp
    B = z.shape[0]

    def pad_gate_cols(w):      # [in, 3H] -> [in, 3Hp], per-gate zero pad
        return jnp.concatenate(
            [jnp.pad(w[:, g * H:(g + 1) * H], ((0, 0), (0, Hp - H)))
             for g in range(3)], axis=1)

    def pad_rows(w):           # [H, n] -> [Hp, n]
        return jnp.pad(w, ((0, Hp - H), (0, 0)))

    def gate_bias(b, gates):   # [1, 3H] -> [1, len(gates)*Hp]
        return jnp.concatenate(
            [jnp.pad(b[:, g * H:(g + 1) * H], ((0, 0), (0, Hp - H)))
             for g in gates], axis=1)

    def bcast(b):              # [1, n] -> [B, n]  (materialized once, host-side)
        return jnp.broadcast_to(b, (B, b.shape[1]))

    l2h_w = jnp.pad(params["l2h_w_t"], ((0, 0), (0, Hp - H)))        # [L, Hp]
    l2h_b = jnp.pad(params["l2h_b"], ((0, 0), (0, Hp - H)))          # [1, Hp]

    whh0 = pad_rows(pad_gate_cols(params["whh0_t"]))                 # [Hp, 3Hp]
    wih1 = pad_rows(pad_gate_cols(params["wih1_t"]))                 # [Hp, 3Hp]
    whh1 = pad_rows(pad_gate_cols(params["whh1_t"]))                 # [Hp, 3Hp]
    w_f = jnp.concatenate([wih1, whh0], axis=1)                      # [Hp, 6Hp]

    # Zero decoder input -> gi0 == bih0; wih0 is dead and dropped entirely.
    b0 = params["bih0"] + params["bhh0"]
    b1 = params["bih1"] + params["bhh1"]
    b0_ru = bcast(gate_bias(b0, [0, 1]))                             # [B, 2Hp]
    b0n_i = bcast(gate_bias(params["bih0"], [2]))                    # [B, Hp]
    b0n_h = bcast(gate_bias(params["bhh0"], [2]))                    # [B, Hp]
    b1_ru = bcast(gate_bias(b1, [0, 1]))                             # [B, 2Hp]
    b1n_i = bcast(gate_bias(params["bih1"], [2]))                    # [B, Hp]
    b1n_h = bcast(gate_bias(params["bhh1"], [2]))                    # [B, Hp]

    h2o_w = pad_rows(params["h2o_w_t"])                              # [Hp, D]
    h2o_b = params["h2o_b"]                                          # [1, D]

    return (z, l2h_w, l2h_b, w_f, whh1,
            b0_ru, b0n_i, b0n_h, b1_ru, b1n_i, b1n_h,
            h2o_w, h2o_b)


# ------------------------------ wrapper --------------------------------------
def recurrent_gru_decoder(z, params, *, seq_len, hidden_dim):
    B = z.shape[0]
    D = params["h2o_w_t"].shape[1]
    Hp = ((hidden_dim + 127) // 128) * 128       # lane-align each gate block

    args = _prepare_kernel_args(z, params, hidden_dim, Hp)
    vmem = pl.BlockSpec(memory_space=pltpu.MemorySpace.VMEM)

    return pl.pallas_call(
        functools.partial(gru_decoder_kernel, seq_len=seq_len),
        out_shape=jax.ShapeDtypeStruct((B, D), jnp.float32),
        in_specs=[vmem] * len(args),
        out_specs=vmem,
    )(*args)


# ------------------------- deterministic param init --------------------------
def init_params(key, latent_dim, hidden_dim, data_dim):
    H, L, D = hidden_dim, latent_dim, data_dim
    ks = jax.random.split(key, 12)
    kg = 1.0 / jnp.sqrt(H)              # PyTorch GRU default bound
    xav_l2h = jnp.sqrt(6.0 / (L + H))   # xavier_uniform
    xav_h2o = jnp.sqrt(6.0 / (H + D))

    def u(k, shape, bound):
        return jax.random.uniform(k, shape, jnp.float32, -bound, bound)

    p = {
        # latent2hidden: weight [H, L] (xavier), bias [H]
        "l2h_w_t": u(ks[0], (H, L), xav_l2h).T,                    # -> [L, H]
        "l2h_b":   u(ks[1], (1, H), 1.0 / jnp.sqrt(L)),
        # GRU layer 0: w_ih [3H, 1] (dead: input is zero), w_hh [3H, H], biases [3H]
        "wih0_t":  u(ks[2], (3 * H, 1), kg).T,                     # -> [1, 3H]
        "whh0_t":  u(ks[3], (3 * H, H), kg).T,                     # -> [H, 3H]
        "bih0":    u(ks[4], (1, 3 * H), kg),
        "bhh0":    u(ks[5], (1, 3 * H), kg),
        # GRU layer 1: w_ih [3H, H], w_hh [3H, H], biases [3H]
        "wih1_t":  u(ks[6], (3 * H, H), kg).T,                     # -> [H, 3H]
        "whh1_t":  u(ks[7], (3 * H, H), kg).T,                     # -> [H, 3H]
        "bih1":    u(ks[8], (1, 3 * H), kg),
        "bhh1":    u(ks[9], (1, 3 * H), kg),
        # hidden2output: weight [D, H] (xavier), bias [D]
        "h2o_w_t": u(ks[10], (D, H), xav_h2o).T,                   # -> [H, D]
        "h2o_b":   u(ks[11], (1, D), 1.0 / jnp.sqrt(H)),
    }
    return p


# --------------------------- pure-JAX reference -------------------------------
def reference(x_seq, z, p):
    """Faithful PyTorch-GRU simulation (includes the x * wih0 term)."""
    H = p["l2h_w_t"].shape[1]
    S = x_seq.shape[1]
    h_state = z @ p["l2h_w_t"] + p["l2h_b"]
    h0 = h_state
    h1 = h_state

    def cell(gi, gh, h_prev):
        r = jax.nn.sigmoid(gi[:, :H] + gh[:, :H])
        u = jax.nn.sigmoid(gi[:, H:2 * H] + gh[:, H:2 * H])
        n = jnp.tanh(gi[:, 2 * H:] + r * gh[:, 2 * H:])
        return (1.0 - u) * n + u * h_prev

    for t in range(S):
        x_t = x_seq[:, t:t + 1]
        gi0 = x_t * p["wih0_t"] + p["bih0"]
        gh0 = h0 @ p["whh0_t"] + p["bhh0"]
        h0 = cell(gi0, gh0, h0)
        gi1 = h0 @ p["wih1_t"] + p["bih1"]
        gh1 = h1 @ p["whh1_t"] + p["bhh1"]
        h1 = cell(gi1, gh1, h1)
    return h1 @ p["h2o_w_t"] + p["h2o_b"]


# --------------------------------- main ---------------------------------------
if __name__ == "__main__":
    B, latent_dim, hidden_dim, data_dim, seq_len = 4, 8, 32, 16, 8  # depth = 2

    key = jax.random.PRNGKey(0)
    kz, kp = jax.random.split(key)
    z = jax.random.normal(kz, (B, latent_dim), dtype=jnp.float32)
    params = init_params(kp, latent_dim, hidden_dim, data_dim)

    out = recurrent_gru_decoder(z, params, seq_len=seq_len, hidden_dim=hidden_dim)
    out = jax.block_until_ready(out)

    # decoder_inputs: zeros [seq, batch, 1] in PyTorch -> [batch, seq] here;
    # the reference keeps the (dead) x * wih0 term to validate the zero-input
    # elimination used inside the kernel.
    x_seq = jnp.zeros((B, seq_len), dtype=jnp.float32)
    ref = reference(x_seq, z, params)

    assert out.shape == (B, data_dim)
    assert jnp.allclose(out, ref, atol=1e-4, rtol=1e-4), "kernel mismatch vs reference"

    print("KERNEL_OK")
</pallas_src>

<mosaic_0001>
module attributes {stable_mosaic.version = 11 : i64} {
  func.func @gru_decoder_kernel(%arg0: memref<4x8xf32, #tpu.memory_space<vmem>>, %arg1: memref<8x128xf32, #tpu.memory_space<vmem>>, %arg2: memref<1x128xf32, #tpu.memory_space<vmem>>, %arg3: memref<128x768xf32, #tpu.memory_space<vmem>>, %arg4: memref<128x384xf32, #tpu.memory_space<vmem>>, %arg5: memref<4x256xf32, #tpu.memory_space<vmem>>, %arg6: memref<4x128xf32, #tpu.memory_space<vmem>>, %arg7: memref<4x128xf32, #tpu.memory_space<vmem>>, %arg8: memref<4x256xf32, #tpu.memory_space<vmem>>, %arg9: memref<4x128xf32, #tpu.memory_space<vmem>>, %arg10: memref<4x128xf32, #tpu.memory_space<vmem>>, %arg11: memref<128x16xf32, #tpu.memory_space<vmem>>, %arg12: memref<1x16xf32, #tpu.memory_space<vmem>>, %arg13: memref<4x16xf32, #tpu.memory_space<vmem>>) attributes {dimension_semantics = [], scalar_prefetch = 0 : i64, scratch_operands = 0 : i64, tpu.core_type = #tpu.core_type<tc>} {
    %c0 = arith.constant 0 : index
    %c0_0 = arith.constant 0 : index
    %0 = vector.load %arg0[%c0, %c0_0] : memref<4x8xf32, #tpu.memory_space<vmem>>, vector<4x8xf32>
    %c0_1 = arith.constant 0 : index
    %c0_2 = arith.constant 0 : index
    %1 = vector.load %arg1[%c0_1, %c0_2] : memref<8x128xf32, #tpu.memory_space<vmem>>, vector<8x128xf32>
    %cst = arith.constant dense<0.000000e+00> : vector<4x128xf32>
    %2 = tpu.matmul %0, %1, %cst {dimension_numbers = #tpu.dot_dimension_numbers<[1], [0], [0], [1], [0, 0, 1, 1], [], []>} : vector<4x8xf32>, vector<8x128xf32>, vector<4x128xf32> -> vector<4x128xf32>
    %c0_3 = arith.constant 0 : index
    %c0_4 = arith.constant 0 : index
    %3 = vector.load %arg2[%c0_3, %c0_4] : memref<1x128xf32, #tpu.memory_space<vmem>>, vector<1x128xf32>
    %4 = vector.broadcast %3 : vector<1x128xf32> to vector<4x128xf32>
    %5 = arith.addf %2, %4 : vector<4x128xf32>
    %c0_5 = arith.constant 0 : index
    %c0_6 = arith.constant 0 : index
    %6 = vector.load %arg3[%c0_5, %c0_6] : memref<128x768xf32, #tpu.memory_space<vmem>>, vector<128x768xf32>
    %c0_7 = arith.constant 0 : index
    %c0_8 = arith.constant 0 : index
    %7 = vector.load %arg4[%c0_7, %c0_8] : memref<128x384xf32, #tpu.memory_space<vmem>>, vector<128x384xf32>
    %c0_9 = arith.constant 0 : index
    %c0_10 = arith.constant 0 : index
    %8 = vector.load %arg5[%c0_9, %c0_10] : memref<4x256xf32, #tpu.memory_space<vmem>>, vector<4x256xf32>
    %c0_11 = arith.constant 0 : index
    %c0_12 = arith.constant 0 : index
    %9 = vector.load %arg6[%c0_11, %c0_12] : memref<4x128xf32, #tpu.memory_space<vmem>>, vector<4x128xf32>
    %c0_13 = arith.constant 0 : index
    %c0_14 = arith.constant 0 : index
    %10 = vector.load %arg7[%c0_13, %c0_14] : memref<4x128xf32, #tpu.memory_space<vmem>>, vector<4x128xf32>
    %c0_15 = arith.constant 0 : index
    %c0_16 = arith.constant 0 : index
    %11 = vector.load %arg8[%c0_15, %c0_16] : memref<4x256xf32, #tpu.memory_space<vmem>>, vector<4x256xf32>
    %c0_17 = arith.constant 0 : index
    %c0_18 = arith.constant 0 : index
    %12 = vector.load %arg9[%c0_17, %c0_18] : memref<4x128xf32, #tpu.memory_space<vmem>>, vector<4x128xf32>
    %c0_19 = arith.constant 0 : index
    %c0_20 = arith.constant 0 : index
    %13 = vector.load %arg10[%c0_19, %c0_20] : memref<4x128xf32, #tpu.memory_space<vmem>>, vector<4x128xf32>
    %14 = vector.extract_strided_slice %6 {offsets = [0, 384], sizes = [128, 384], strides = [1, 1]} : vector<128x768xf32> to vector<128x384xf32>
    %cst_21 = arith.constant dense<0.000000e+00> : vector<4x384xf32>
    %15 = tpu.matmul %5, %14, %cst_21 {dimension_numbers = #tpu.dot_dimension_numbers<[1], [0], [0], [1], [0, 0, 1, 1], [], []>} : vector<4x128xf32>, vector<128x384xf32>, vector<4x384xf32> -> vector<4x384xf32>
    %16 = vector.extract_strided_slice %15 {offsets = [0, 0], sizes = [4, 256], strides = [1, 1]} : vector<4x384xf32> to vector<4x256xf32>
    %17 = arith.addf %16, %8 : vector<4x256xf32>
    %18 = arith.negf %17 : vector<4x256xf32>
    %19 = math.exp %18 : vector<4x256xf32>
    %cst_22 = arith.constant 1.000000e+00 : f32
    %20 = vector.broadcast %cst_22 : f32 to vector<4x256xf32>
    %21 = arith.addf %20, %19 : vector<4x256xf32>
    %22 = arith.divf %20, %21 : vector<4x256xf32>
    %23 = vector.extract_strided_slice %22 {offsets = [0, 0], sizes = [4, 128], strides = [1, 1]} : vector<4x256xf32> to vector<4x128xf32>
    %24 = vector.extract_strided_slice %22 {offsets = [0, 128], sizes = [4, 128], strides = [1, 1]} : vector<4x256xf32> to vector<4x128xf32>
    %25 = vector.extract_strided_slice %15 {offsets = [0, 256], sizes = [4, 128], strides = [1, 1]} : vector<4x384xf32> to vector<4x128xf32>
    %26 = arith.addf %25, %10 : vector<4x128xf32>
    %27 = arith.mulf %23, %26 : vector<4x128xf32>
    %28 = arith.addf %9, %27 : vector<4x128xf32>
    %29 = math.tanh %28 : vector<4x128xf32>
    %30 = arith.subf %5, %29 : vector<4x128xf32>
    %31 = arith.mulf %24, %30 : vector<4x128xf32>
    %32 = arith.addf %29, %31 : vector<4x128xf32>
    %cst_23 = arith.constant dense<0.000000e+00> : vector<4x768xf32>
    %33 = tpu.matmul %32, %6, %cst_23 {dimension_numbers = #tpu.dot_dimension_numbers<[1], [0], [0], [1], [0, 0, 1, 1], [], []>} : vector<4x128xf32>, vector<128x768xf32>, vector<4x768xf32> -> vector<4x768xf32>
    %34 = vector.extract_strided_slice %33 {offsets = [0, 0], sizes = [4, 384], strides = [1, 1]} : vector<4x768xf32> to vector<4x384xf32>
    %35 = vector.extract_strided_slice %33 {offsets = [0, 384], sizes = [4, 384], strides = [1, 1]} : vector<4x768xf32> to vector<4x384xf32>
    %cst_24 = arith.constant dense<0.000000e+00> : vector<4x384xf32>
    %36 = tpu.matmul %5, %7, %cst_24 {dimension_numbers = #tpu.dot_dimension_numbers<[1], [0], [0], [1], [0, 0, 1, 1], [], []>} : vector<4x128xf32>, vector<128x384xf32>, vector<4x384xf32> -> vector<4x384xf32>
    %37 = vector.extract_strided_slice %34 {offsets = [0, 0], sizes = [4, 256], strides = [1, 1]} : vector<4x384xf32> to vector<4x256xf32>
    %38 = vector.extract_strided_slice %36 {offsets = [0, 0], sizes = [4, 256], strides = [1, 1]} : vector<4x384xf32> to vector<4x256xf32>
    %39 = arith.addf %37, %38 : vector<4x256xf32>
    %40 = arith.addf %39, %11 : vector<4x256xf32>
    %41 = arith.negf %40 : vector<4x256xf32>
    %42 = math.exp %41 : vector<4x256xf32>
    %cst_25 = arith.constant 1.000000e+00 : f32
    %43 = vector.broadcast %cst_25 : f32 to vector<4x256xf32>
    %44 = arith.addf %43, %42 : vector<4x256xf32>
    %45 = arith.divf %43, %44 : vector<4x256xf32>
    %46 = vector.extract_strided_slice %45 {offsets = [0, 0], sizes = [4, 128], strides = [1, 1]} : vector<4x256xf32> to vector<4x128xf32>
    %47 = vector.extract_strided_slice %45 {offsets = [0, 128], sizes = [4, 128], strides = [1, 1]} : vector<4x256xf32> to vector<4x128xf32>
    %48 = vector.extract_strided_slice %34 {offsets = [0, 256], sizes = [4, 128], strides = [1, 1]} : vector<4x384xf32> to vector<4x128xf32>
    %49 = arith.addf %48, %12 : vector<4x128xf32>
    %50 = vector.extract_strided_slice %36 {offsets = [0, 256], sizes = [4, 128], strides = [1, 1]} : vector<4x384xf32> to vector<4x128xf32>
    %51 = arith.addf %50, %13 : vector<4x128xf32>
    %52 = arith.mulf %46, %51 : vector<4x128xf32>
    %53 = arith.addf %49, %52 : vector<4x128xf32>
    %54 = math.tanh %53 : vector<4x128xf32>
    %55 = arith.subf %5, %54 : vector<4x128xf32>
    %56 = arith.mulf %47, %55 : vector<4x128xf32>
    %57 = arith.addf %54, %56 : vector<4x128xf32>
    %58 = vector.extract_strided_slice %35 {offsets = [0, 0], sizes = [4, 256], strides = [1, 1]} : vector<4x384xf32> to vector<4x256xf32>
    %59 = arith.addf %58, %8 : vector<4x256xf32>
    %60 = arith.negf %59 : vector<4x256xf32>
    %61 = math.exp %60 : vector<4x256xf32>
    %cst_26 = arith.constant 1.000000e+00 : f32
    %62 = vector.broadcast %cst_26 : f32 to vector<4x256xf32>
    %63 = arith.addf %62, %61 : vector<4x256xf32>
    %64 = arith.divf %62, %63 : vector<4x256xf32>
    %65 = vector.extract_strided_slice %64 {offsets = [0, 0], sizes = [4, 128], strides = [1, 1]} : vector<4x256xf32> to vector<4x128xf32>
    %66 = vector.extract_strided_slice %64 {offsets = [0, 128], sizes = [4, 128], strides = [1, 1]} : vector<4x256xf32> to vector<4x128xf32>
    %67 = vector.extract_strided_slice %35 {offsets = [0, 256], sizes = [4, 128], strides = [1, 1]} : vector<4x384xf32> to vector<4x128xf32>
    %68 = arith.addf %67, %10 : vector<4x128xf32>
    %69 = arith.mulf %65, %68 : vector<4x128xf32>
    %70 = arith.addf %9, %69 : vector<4x128xf32>
    %71 = math.tanh %70 : vector<4x128xf32>
    %72 = arith.subf %32, %71 : vector<4x128xf32>
    %73 = arith.mulf %66, %72 : vector<4x128xf32>
    %74 = arith.addf %71, %73 : vector<4x128xf32>
    %cst_27 = arith.constant dense<0.000000e+00> : vector<4x768xf32>
    %75 = tpu.matmul %74, %6, %cst_27 {dimension_numbers = #tpu.dot_dimension_numbers<[1], [0], [0], [1], [0, 0, 1, 1], [], []>} : vector<4x128xf32>, vector<128x768xf32>, vector<4x768xf32> -> vector<4x768xf32>
    %76 = vector.extract_strided_slice %75 {offsets = [0, 0], sizes = [4, 384], strides = [1, 1]} : vector<4x768xf32> to vector<4x384xf32>
    %77 = vector.extract_strided_slice %75 {offsets = [0, 384], sizes = [4, 384], strides = [1, 1]} : vector<4x768xf32> to vector<4x384xf32>
    %cst_28 = arith.constant dense<0.000000e+00> : vector<4x384xf32>
    %78 = tpu.matmul %57, %7, %cst_28 {dimension_numbers = #tpu.dot_dimension_numbers<[1], [0], [0], [1], [0, 0, 1, 1], [], []>} : vector<4x128xf32>, vector<128x384xf32>, vector<4x384xf32> -> vector<4x384xf32>
    %79 = vector.extract_strided_slice %76 {offsets = [0, 0], sizes = [4, 256], strides = [1, 1]} : vector<4x384xf32> to vector<4x256xf32>
    %80 = vector.extract_strided_slice %78 {offsets = [0, 0], sizes = [4, 256], strides = [1, 1]} : vector<4x384xf32> to vector<4x256xf32>
    %81 = arith.addf %79, %80 : vector<4x256xf32>
    %82 = arith.addf %81, %11 : vector<4x256xf32>
    %83 = arith.negf %82 : vector<4x256xf32>
    %84 = math.exp %83 : vector<4x256xf32>
    %cst_29 = arith.constant 1.000000e+00 : f32
    %85 = vector.broadcast %cst_29 : f32 to vector<4x256xf32>
    %86 = arith.addf %85, %84 : vector<4x256xf32>
    %87 = arith.divf %85, %86 : vector<4x256xf32>
    %88 = vector.extract_strided_slice %87 {offsets = [0, 0], sizes = [4, 128], strides = [1, 1]} : vector<4x256xf32> to vector<4x128xf32>
    %89 = vector.extract_strided_slice %87 {offsets = [0, 128], sizes = [4, 128], strides = [1, 1]} : vector<4x256xf32> to vector<4x128xf32>
    %90 = vector.extract_strided_slice %76 {offsets = [0, 256], sizes = [4, 128], strides = [1, 1]} : vector<4x384xf32> to vector<4x128xf32>
    %91 = arith.addf %90, %12 : vector<4x128xf32>
    %92 = vector.extract_strided_slice %78 {offsets = [0, 256], sizes = [4, 128], strides = [1, 1]} : vector<4x384xf32> to vector<4x128xf32>
    %93 = arith.addf %92, %13 : vector<4x128xf32>
    %94 = arith.mulf %88, %93 : vector<4x128xf32>
    %95 = arith.addf %91, %94 : vector<4x128xf32>
    %96 = math.tanh %95 : vector<4x128xf32>
    %97 = arith.subf %57, %96 : vector<4x128xf32>
    %98 = arith.mulf %89, %97 : vector<4x128xf32>
    %99 = arith.addf %96, %98 : vector<4x128xf32>
    %100 = vector.extract_strided_slice %77 {offsets = [0, 0], sizes = [4, 256], strides = [1, 1]} : vector<4x384xf32> to vector<4x256xf32>
    %101 = arith.addf %100, %8 : vector<4x256xf32>
    %102 = arith.negf %101 : vector<4x256xf32>
    %103 = math.exp %102 : vector<4x256xf32>
    %cst_30 = arith.constant 1.000000e+00 : f32
    %104 = vector.broadcast %cst_30 : f32 to vector<4x256xf32>
    %105 = arith.addf %104, %103 : vector<4x256xf32>
    %106 = arith.divf %104, %105 : vector<4x256xf32>
    %107 = vector.extract_strided_slice %106 {offsets = [0, 0], sizes = [4, 128], strides = [1, 1]} : vector<4x256xf32> to vector<4x128xf32>
    %108 = vector.extract_strided_slice %106 {offsets = [0, 128], sizes = [4, 128], strides = [1, 1]} : vector<4x256xf32> to vector<4x128xf32>
    %109 = vector.extract_strided_slice %77 {offsets = [0, 256], sizes = [4, 128], strides = [1, 1]} : vector<4x384xf32> to vector<4x128xf32>
    %110 = arith.addf %109, %10 : vector<4x128xf32>
    %111 = arith.mulf %107, %110 : vector<4x128xf32>
    %112 = arith.addf %9, %111 : vector<4x128xf32>
    %113 = math.tanh %112 : vector<4x128xf32>
    %114 = arith.subf %74, %113 : vector<4x128xf32>
    %115 = arith.mulf %108, %114 : vector<4x128xf32>
    %116 = arith.addf %113, %115 : vector<4x128xf32>
    %cst_31 = arith.constant dense<0.000000e+00> : vector<4x768xf32>
    %117 = tpu.matmul %116, %6, %cst_31 {dimension_numbers = #tpu.dot_dimension_numbers<[1], [0], [0], [1], [0, 0, 1, 1], [], []>} : vector<4x128xf32>, vector<128x768xf32>, vector<4x768xf32> -> vector<4x768xf32>
    %118 = vector.extract_strided_slice %117 {offsets = [0, 0], sizes = [4, 384], strides = [1, 1]} : vector<4x768xf32> to vector<4x384xf32>
    %119 = vector.extract_strided_slice %117 {offsets = [0, 384], sizes = [4, 384], strides = [1, 1]} : vector<4x768xf32> to vector<4x384xf32>
    %cst_32 = arith.constant dense<0.000000e+00> : vector<4x384xf32>
    %120 = tpu.matmul %99, %7, %cst_32 {dimension_numbers = #tpu.dot_dimension_numbers<[1], [0], [0], [1], [0, 0, 1, 1], [], []>} : vector<4x128xf32>, vector<128x384xf32>, vector<4x384xf32> -> vector<4x384xf32>
    %121 = vector.extract_strided_slice %118 {offsets = [0, 0], sizes = [4, 256], strides = [1, 1]} : vector<4x384xf32> to vector<4x256xf32>
    %122 = vector.extract_strided_slice %120 {offsets = [0, 0], sizes = [4, 256], strides = [1, 1]} : vector<4x384xf32> to vector<4x256xf32>
    %123 = arith.addf %121, %122 : vector<4x256xf32>
    %124 = arith.addf %123, %11 : vector<4x256xf32>
    %125 = arith.negf %124 : vector<4x256xf32>
    %126 = math.exp %125 : vector<4x256xf32>
    %cst_33 = arith.constant 1.000000e+00 : f32
    %127 = vector.broadcast %cst_33 : f32 to vector<4x256xf32>
    %128 = arith.addf %127, %126 : vector<4x256xf32>
    %129 = arith.divf %127, %128 : vector<4x256xf32>
    %130 = vector.extract_strided_slice %129 {offsets = [0, 0], sizes = [4, 128], strides = [1, 1]} : vector<4x256xf32> to vector<4x128xf32>
    %131 = vector.extract_strided_slice %129 {offsets = [0, 128], sizes = [4, 128], strides = [1, 1]} : vector<4x256xf32> to vector<4x128xf32>
    %132 = vector.extract_strided_slice %118 {offsets = [0, 256], sizes = [4, 128], strides = [1, 1]} : vector<4x384xf32> to vector<4x128xf32>
    %133 = arith.addf %132, %12 : vector<4x128xf32>
    %134 = vector.extract_strided_slice %120 {offsets = [0, 256], sizes = [4, 128], strides = [1, 1]} : vector<4x384xf32> to vector<4x128xf32>
    %135 = arith.addf %134, %13 : vector<4x128xf32>
    %136 = arith.mulf %130, %135 : vector<4x128xf32>
    %137 = arith.addf %133, %136 : vector<4x128xf32>
    %138 = math.tanh %137 : vector<4x128xf32>
    %139 = arith.subf %99, %138 : vector<4x128xf32>
    %140 = arith.mulf %131, %139 : vector<4x128xf32>
    %141 = arith.addf %138, %140 : vector<4x128xf32>
    %142 = vector.extract_strided_slice %119 {offsets = [0, 0], sizes = [4, 256], strides = [1, 1]} : vector<4x384xf32> to vector<4x256xf32>
    %143 = arith.addf %142, %8 : vector<4x256xf32>
    %144 = arith.negf %143 : vector<4x256xf32>
    %145 = math.exp %144 : vector<4x256xf32>
    %cst_34 = arith.constant 1.000000e+00 : f32
    %146 = vector.broadcast %cst_34 : f32 to vector<4x256xf32>
    %147 = arith.addf %146, %145 : vector<4x256xf32>
    %148 = arith.divf %146, %147 : vector<4x256xf32>
    %149 = vector.extract_strided_slice %148 {offsets = [0, 0], sizes = [4, 128], strides = [1, 1]} : vector<4x256xf32> to vector<4x128xf32>
    %150 = vector.extract_strided_slice %148 {offsets = [0, 128], sizes = [4, 128], strides = [1, 1]} : vector<4x256xf32> to vector<4x128xf32>
    %151 = vector.extract_strided_slice %119 {offsets = [0, 256], sizes = [4, 128], strides = [1, 1]} : vector<4x384xf32> to vector<4x128xf32>
    %152 = arith.addf %151, %10 : vector<4x128xf32>
    %153 = arith.mulf %149, %152 : vector<4x128xf32>
    %154 = arith.addf %9, %153 : vector<4x128xf32>
    %155 = math.tanh %154 : vector<4x128xf32>
    %156 = arith.subf %116, %155 : vector<4x128xf32>
    %157 = arith.mulf %150, %156 : vector<4x128xf32>
    %158 = arith.addf %155, %157 : vector<4x128xf32>
    %cst_35 = arith.constant dense<0.000000e+00> : vector<4x768xf32>
    %159 = tpu.matmul %158, %6, %cst_35 {dimension_numbers = #tpu.dot_dimension_numbers<[1], [0], [0], [1], [0, 0, 1, 1], [], []>} : vector<4x128xf32>, vector<128x768xf32>, vector<4x768xf32> -> vector<4x768xf32>
    %160 = vector.extract_strided_slice %159 {offsets = [0, 0], sizes = [4, 384], strides = [1, 1]} : vector<4x768xf32> to vector<4x384xf32>
    %161 = vector.extract_strided_slice %159 {offsets = [0, 384], sizes = [4, 384], strides = [1, 1]} : vector<4x768xf32> to vector<4x384xf32>
    %cst_36 = arith.constant dense<0.000000e+00> : vector<4x384xf32>
    %162 = tpu.matmul %141, %7, %cst_36 {dimension_numbers = #tpu.dot_dimension_numbers<[1], [0], [0], [1], [0, 0, 1, 1], [], []>} : vector<4x128xf32>, vector<128x384xf32>, vector<4x384xf32> -> vector<4x384xf32>
    %163 = vector.extract_strided_slice %160 {offsets = [0, 0], sizes = [4, 256], strides = [1, 1]} : vector<4x384xf32> to vector<4x256xf32>
    %164 = vector.extract_strided_slice %162 {offsets = [0, 0], sizes = [4, 256], strides = [1, 1]} : vector<4x384xf32> to vector<4x256xf32>
    %165 = arith.addf %163, %164 : vector<4x256xf32>
    %166 = arith.addf %165, %11 : vector<4x256xf32>
    %167 = arith.negf %166 : vector<4x256xf32>
    %168 = math.exp %167 : vector<4x256xf32>
    %cst_37 = arith.constant 1.000000e+00 : f32
    %169 = vector.broadcast %cst_37 : f32 to vector<4x256xf32>
    %170 = arith.addf %169, %168 : vector<4x256xf32>
    %171 = arith.divf %169, %170 : vector<4x256xf32>
    %172 = vector.extract_strided_slice %171 {offsets = [0, 0], sizes = [4, 128], strides = [1, 1]} : vector<4x256xf32> to vector<4x128xf32>
    %173 = vector.extract_strided_slice %171 {offsets = [0, 128], sizes = [4, 128], strides = [1, 1]} : vector<4x256xf32> to vector<4x128xf32>
    %174 = vector.extract_strided_slice %160 {offsets = [0, 256], sizes = [4, 128], strides = [1, 1]} : vector<4x384xf32> to vector<4x128xf32>
    %175 = arith.addf %174, %12 : vector<4x128xf32>
    %176 = vector.extract_strided_slice %162 {offsets = [0, 256], sizes = [4, 128], strides = [1, 1]} : vector<4x384xf32> to vector<4x128xf32>
    %177 = arith.addf %176, %13 : vector<4x128xf32>
    %178 = arith.mulf %172, %177 : vector<4x128xf32>
    %179 = arith.addf %175, %178 : vector<4x128xf32>
    %180 = math.tanh %179 : vector<4x128xf32>
    %181 = arith.subf %141, %180 : vector<4x128xf32>
    %182 = arith.mulf %173, %181 : vector<4x128xf32>
    %183 = arith.addf %180, %182 : vector<4x128xf32>
    %184 = vector.extract_strided_slice %161 {offsets = [0, 0], sizes = [4, 256], strides = [1, 1]} : vector<4x384xf32> to vector<4x256xf32>
    %185 = arith.addf %184, %8 : vector<4x256xf32>
    %186 = arith.negf %185 : vector<4x256xf32>
    %187 = math.exp %186 : vector<4x256xf32>
    %cst_38 = arith.constant 1.000000e+00 : f32
    %188 = vector.broadcast %cst_38 : f32 to vector<4x256xf32>
    %189 = arith.addf %188, %187 : vector<4x256xf32>
    %190 = arith.divf %188, %189 : vector<4x256xf32>
    %191 = vector.extract_strided_slice %190 {offsets = [0, 0], sizes = [4, 128], strides = [1, 1]} : vector<4x256xf32> to vector<4x128xf32>
    %192 = vector.extract_strided_slice %190 {offsets = [0, 128], sizes = [4, 128], strides = [1, 1]} : vector<4x256xf32> to vector<4x128xf32>
    %193 = vector.extract_strided_slice %161 {offsets = [0, 256], sizes = [4, 128], strides = [1, 1]} : vector<4x384xf32> to vector<4x128xf32>
    %194 = arith.addf %193, %10 : vector<4x128xf32>
    %195 = arith.mulf %191, %194 : vector<4x128xf32>
    %196 = arith.addf %9, %195 : vector<4x128xf32>
    %197 = math.tanh %196 : vector<4x128xf32>
    %198 = arith.subf %158, %197 : vector<4x128xf32>
    %199 = arith.mulf %192, %198 : vector<4x128xf32>
    %200 = arith.addf %197, %199 : vector<4x128xf32>
    %cst_39 = arith.constant dense<0.000000e+00> : vector<4x768xf32>
    %201 = tpu.matmul %200, %6, %cst_39 {dimension_numbers = #tpu.dot_dimension_numbers<[1], [0], [0], [1], [0, 0, 1, 1], [], []>} : vector<4x128xf32>, vector<128x768xf32>, vector<4x768xf32> -> vector<4x768xf32>
    %202 = vector.extract_strided_slice %201 {offsets = [0, 0], sizes = [4, 384], strides = [1, 1]} : vector<4x768xf32> to vector<4x384xf32>
    %203 = vector.extract_strided_slice %201 {offsets = [0, 384], sizes = [4, 384], strides = [1, 1]} : vector<4x768xf32> to vector<4x384xf32>
    %cst_40 = arith.constant dense<0.000000e+00> : vector<4x384xf32>
    %204 = tpu.matmul %183, %7, %cst_40 {dimension_numbers = #tpu.dot_dimension_numbers<[1], [0], [0], [1], [0, 0, 1, 1], [], []>} : vector<4x128xf32>, vector<128x384xf32>, vector<4x384xf32> -> vector<4x384xf32>
    %205 = vector.extract_strided_slice %202 {offsets = [0, 0], sizes = [4, 256], strides = [1, 1]} : vector<4x384xf32> to vector<4x256xf32>
    %206 = vector.extract_strided_slice %204 {offsets = [0, 0], sizes = [4, 256], strides = [1, 1]} : vector<4x384xf32> to vector<4x256xf32>
    %207 = arith.addf %205, %206 : vector<4x256xf32>
    %208 = arith.addf %207, %11 : vector<4x256xf32>
    %209 = arith.negf %208 : vector<4x256xf32>
    %210 = math.exp %209 : vector<4x256xf32>
    %cst_41 = arith.constant 1.000000e+00 : f32
    %211 = vector.broadcast %cst_41 : f32 to vector<4x256xf32>
    %212 = arith.addf %211, %210 : vector<4x256xf32>
    %213 = arith.divf %211, %212 : vector<4x256xf32>
    %214 = vector.extract_strided_slice %213 {offsets = [0, 0], sizes = [4, 128], strides = [1, 1]} : vector<4x256xf32> to vector<4x128xf32>
    %215 = vector.extract_strided_slice %213 {offsets = [0, 128], sizes = [4, 128], strides = [1, 1]} : vector<4x256xf32> to vector<4x128xf32>
    %216 = vector.extract_strided_slice %202 {offsets = [0, 256], sizes = [4, 128], strides = [1, 1]} : vector<4x384xf32> to vector<4x128xf32>
    %217 = arith.addf %216, %12 : vector<4x128xf32>
    %218 = vector.extract_strided_slice %204 {offsets = [0, 256], sizes = [4, 128], strides = [1, 1]} : vector<4x384xf32> to vector<4x128xf32>
    %219 = arith.addf %218, %13 : vector<4x128xf32>
    %220 = arith.mulf %214, %219 : vector<4x128xf32>
    %221 = arith.addf %217, %220 : vector<4x128xf32>
    %222 = math.tanh %221 : vector<4x128xf32>
    %223 = arith.subf %183, %222 : vector<4x128xf32>
    %224 = arith.mulf %215, %223 : vector<4x128xf32>
    %225 = arith.addf %222, %224 : vector<4x128xf32>
    %226 = vector.extract_strided_slice %203 {offsets = [0, 0], sizes = [4, 256], strides = [1, 1]} : vector<4x384xf32> to vector<4x256xf32>
    %227 = arith.addf %226, %8 : vector<4x256xf32>
    %228 = arith.negf %227 : vector<4x256xf32>
    %229 = math.exp %228 : vector<4x256xf32>
    %cst_42 = arith.constant 1.000000e+00 : f32
    %230 = vector.broadcast %cst_42 : f32 to vector<4x256xf32>
    %231 = arith.addf %230, %229 : vector<4x256xf32>
    %232 = arith.divf %230, %231 : vector<4x256xf32>
    %233 = vector.extract_strided_slice %232 {offsets = [0, 0], sizes = [4, 128], strides = [1, 1]} : vector<4x256xf32> to vector<4x128xf32>
    %234 = vector.extract_strided_slice %232 {offsets = [0, 128], sizes = [4, 128], strides = [1, 1]} : vector<4x256xf32> to vector<4x128xf32>
    %235 = vector.extract_strided_slice %203 {offsets = [0, 256], sizes = [4, 128], strides = [1, 1]} : vector<4x384xf32> to vector<4x128xf32>
    %236 = arith.addf %235, %10 : vector<4x128xf32>
    %237 = arith.mulf %233, %236 : vector<4x128xf32>
    %238 = arith.addf %9, %237 : vector<4x128xf32>
    %239 = math.tanh %238 : vector<4x128xf32>
    %240 = arith.subf %200, %239 : vector<4x128xf32>
    %241 = arith.mulf %234, %240 : vector<4x128xf32>
    %242 = arith.addf %239, %241 : vector<4x128xf32>
    %cst_43 = arith.constant dense<0.000000e+00> : vector<4x768xf32>
    %243 = tpu.matmul %242, %6, %cst_43 {dimension_numbers = #tpu.dot_dimension_numbers<[1], [0], [0], [1], [0, 0, 1, 1], [], []>} : vector<4x128xf32>, vector<128x768xf32>, vector<4x768xf32> -> vector<4x768xf32>
    %244 = vector.extract_strided_slice %243 {offsets = [0, 0], sizes = [4, 384], strides = [1, 1]} : vector<4x768xf32> to vector<4x384xf32>
    %245 = vector.extract_strided_slice %243 {offsets = [0, 384], sizes = [4, 384], strides = [1, 1]} : vector<4x768xf32> to vector<4x384xf32>
    %cst_44 = arith.constant dense<0.000000e+00> : vector<4x384xf32>
    %246 = tpu.matmul %225, %7, %cst_44 {dimension_numbers = #tpu.dot_dimension_numbers<[1], [0], [0], [1], [0, 0, 1, 1], [], []>} : vector<4x128xf32>, vector<128x384xf32>, vector<4x384xf32> -> vector<4x384xf32>
    %247 = vector.extract_strided_slice %244 {offsets = [0, 0], sizes = [4, 256], strides = [1, 1]} : vector<4x384xf32> to vector<4x256xf32>
    %248 = vector.extract_strided_slice %246 {offsets = [0, 0], sizes = [4, 256], strides = [1, 1]} : vector<4x384xf32> to vector<4x256xf32>
    %249 = arith.addf %247, %248 : vector<4x256xf32>
    %250 = arith.addf %249, %11 : vector<4x256xf32>
    %251 = arith.negf %250 : vector<4x256xf32>
    %252 = math.exp %251 : vector<4x256xf32>
    %cst_45 = arith.constant 1.000000e+00 : f32
    %253 = vector.broadcast %cst_45 : f32 to vector<4x256xf32>
    %254 = arith.addf %253, %252 : vector<4x256xf32>
    %255 = arith.divf %253, %254 : vector<4x256xf32>
    %256 = vector.extract_strided_slice %255 {offsets = [0, 0], sizes = [4, 128], strides = [1, 1]} : vector<4x256xf32> to vector<4x128xf32>
    %257 = vector.extract_strided_slice %255 {offsets = [0, 128], sizes = [4, 128], strides = [1, 1]} : vector<4x256xf32> to vector<4x128xf32>
    %258 = vector.extract_strided_slice %244 {offsets = [0, 256], sizes = [4, 128], strides = [1, 1]} : vector<4x384xf32> to vector<4x128xf32>
    %259 = arith.addf %258, %12 : vector<4x128xf32>
    %260 = vector.extract_strided_slice %246 {offsets = [0, 256], sizes = [4, 128], strides = [1, 1]} : vector<4x384xf32> to vector<4x128xf32>
    %261 = arith.addf %260, %13 : vector<4x128xf32>
    %262 = arith.mulf %256, %261 : vector<4x128xf32>
    %263 = arith.addf %259, %262 : vector<4x128xf32>
    %264 = math.tanh %263 : vector<4x128xf32>
    %265 = arith.subf %225, %264 : vector<4x128xf32>
    %266 = arith.mulf %257, %265 : vector<4x128xf32>
    %267 = arith.addf %264, %266 : vector<4x128xf32>
    %268 = vector.extract_strided_slice %245 {offsets = [0, 0], sizes = [4, 256], strides = [1, 1]} : vector<4x384xf32> to vector<4x256xf32>
    %269 = arith.addf %268, %8 : vector<4x256xf32>
    %270 = arith.negf %269 : vector<4x256xf32>
    %271 = math.exp %270 : vector<4x256xf32>
    %cst_46 = arith.constant 1.000000e+00 : f32
    %272 = vector.broadcast %cst_46 : f32 to vector<4x256xf32>
    %273 = arith.addf %272, %271 : vector<4x256xf32>
    %274 = arith.divf %272, %273 : vector<4x256xf32>
    %275 = vector.extract_strided_slice %274 {offsets = [0, 0], sizes = [4, 128], strides = [1, 1]} : vector<4x256xf32> to vector<4x128xf32>
    %276 = vector.extract_strided_slice %274 {offsets = [0, 128], sizes = [4, 128], strides = [1, 1]} : vector<4x256xf32> to vector<4x128xf32>
    %277 = vector.extract_strided_slice %245 {offsets = [0, 256], sizes = [4, 128], strides = [1, 1]} : vector<4x384xf32> to vector<4x128xf32>
    %278 = arith.addf %277, %10 : vector<4x128xf32>
    %279 = arith.mulf %275, %278 : vector<4x128xf32>
    %280 = arith.addf %9, %279 : vector<4x128xf32>
    %281 = math.tanh %280 : vector<4x128xf32>
    %282 = arith.subf %242, %281 : vector<4x128xf32>
    %283 = arith.mulf %276, %282 : vector<4x128xf32>
    %284 = arith.addf %281, %283 : vector<4x128xf32>
    %cst_47 = arith.constant dense<0.000000e+00> : vector<4x768xf32>
    %285 = tpu.matmul %284, %6, %cst_47 {dimension_numbers = #tpu.dot_dimension_numbers<[1], [0], [0], [1], [0, 0, 1, 1], [], []>} : vector<4x128xf32>, vector<128x768xf32>, vector<4x768xf32> -> vector<4x768xf32>
    %286 = vector.extract_strided_slice %285 {offsets = [0, 0], sizes = [4, 384], strides = [1, 1]} : vector<4x768xf32> to vector<4x384xf32>
    %287 = vector.extract_strided_slice %285 {offsets = [0, 384], sizes = [4, 384], strides = [1, 1]} : vector<4x768xf32> to vector<4x384xf32>
    %cst_48 = arith.constant dense<0.000000e+00> : vector<4x384xf32>
    %288 = tpu.matmul %267, %7, %cst_48 {dimension_numbers = #tpu.dot_dimension_numbers<[1], [0], [0], [1], [0, 0, 1, 1], [], []>} : vector<4x128xf32>, vector<128x384xf32>, vector<4x384xf32> -> vector<4x384xf32>
    %289 = vector.extract_strided_slice %286 {offsets = [0, 0], sizes = [4, 256], strides = [1, 1]} : vector<4x384xf32> to vector<4x256xf32>
    %290 = vector.extract_strided_slice %288 {offsets = [0, 0], sizes = [4, 256], strides = [1, 1]} : vector<4x384xf32> to vector<4x256xf32>
    %291 = arith.addf %289, %290 : vector<4x256xf32>
    %292 = arith.addf %291, %11 : vector<4x256xf32>
    %293 = arith.negf %292 : vector<4x256xf32>
    %294 = math.exp %293 : vector<4x256xf32>
    %cst_49 = arith.constant 1.000000e+00 : f32
    %295 = vector.broadcast %cst_49 : f32 to vector<4x256xf32>
    %296 = arith.addf %295, %294 : vector<4x256xf32>
    %297 = arith.divf %295, %296 : vector<4x256xf32>
    %298 = vector.extract_strided_slice %297 {offsets = [0, 0], sizes = [4, 128], strides = [1, 1]} : vector<4x256xf32> to vector<4x128xf32>
    %299 = vector.extract_strided_slice %297 {offsets = [0, 128], sizes = [4, 128], strides = [1, 1]} : vector<4x256xf32> to vector<4x128xf32>
    %300 = vector.extract_strided_slice %286 {offsets = [0, 256], sizes = [4, 128], strides = [1, 1]} : vector<4x384xf32> to vector<4x128xf32>
    %301 = arith.addf %300, %12 : vector<4x128xf32>
    %302 = vector.extract_strided_slice %288 {offsets = [0, 256], sizes = [4, 128], strides = [1, 1]} : vector<4x384xf32> to vector<4x128xf32>
    %303 = arith.addf %302, %13 : vector<4x128xf32>
    %304 = arith.mulf %298, %303 : vector<4x128xf32>
    %305 = arith.addf %301, %304 : vector<4x128xf32>
    %306 = math.tanh %305 : vector<4x128xf32>
    %307 = arith.subf %267, %306 : vector<4x128xf32>
    %308 = arith.mulf %299, %307 : vector<4x128xf32>
    %309 = arith.addf %306, %308 : vector<4x128xf32>
    %310 = vector.extract_strided_slice %287 {offsets = [0, 0], sizes = [4, 256], strides = [1, 1]} : vector<4x384xf32> to vector<4x256xf32>
    %311 = arith.addf %310, %8 : vector<4x256xf32>
    %312 = arith.negf %311 : vector<4x256xf32>
    %313 = math.exp %312 : vector<4x256xf32>
    %cst_50 = arith.constant 1.000000e+00 : f32
    %314 = vector.broadcast %cst_50 : f32 to vector<4x256xf32>
    %315 = arith.addf %314, %313 : vector<4x256xf32>
    %316 = arith.divf %314, %315 : vector<4x256xf32>
    %317 = vector.extract_strided_slice %316 {offsets = [0, 0], sizes = [4, 128], strides = [1, 1]} : vector<4x256xf32> to vector<4x128xf32>
    %318 = vector.extract_strided_slice %316 {offsets = [0, 128], sizes = [4, 128], strides = [1, 1]} : vector<4x256xf32> to vector<4x128xf32>
    %319 = vector.extract_strided_slice %287 {offsets = [0, 256], sizes = [4, 128], strides = [1, 1]} : vector<4x384xf32> to vector<4x128xf32>
    %320 = arith.addf %319, %10 : vector<4x128xf32>
    %321 = arith.mulf %317, %320 : vector<4x128xf32>
    %322 = arith.addf %9, %321 : vector<4x128xf32>
    %323 = math.tanh %322 : vector<4x128xf32>
    %324 = arith.subf %284, %323 : vector<4x128xf32>
    %325 = arith.mulf %318, %324 : vector<4x128xf32>
    %326 = arith.addf %323, %325 : vector<4x128xf32>
    %cst_51 = arith.constant dense<0.000000e+00> : vector<4x768xf32>
    %327 = tpu.matmul %326, %6, %cst_51 {dimension_numbers = #tpu.dot_dimension_numbers<[1], [0], [0], [1], [0, 0, 1, 1], [], []>} : vector<4x128xf32>, vector<128x768xf32>, vector<4x768xf32> -> vector<4x768xf32>
    %328 = vector.extract_strided_slice %327 {offsets = [0, 0], sizes = [4, 384], strides = [1, 1]} : vector<4x768xf32> to vector<4x384xf32>
    %cst_52 = arith.constant dense<0.000000e+00> : vector<4x384xf32>
    %329 = tpu.matmul %309, %7, %cst_52 {dimension_numbers = #tpu.dot_dimension_numbers<[1], [0], [0], [1], [0, 0, 1, 1], [], []>} : vector<4x128xf32>, vector<128x384xf32>, vector<4x384xf32> -> vector<4x384xf32>
    %330 = vector.extract_strided_slice %328 {offsets = [0, 0], sizes = [4, 256], strides = [1, 1]} : vector<4x384xf32> to vector<4x256xf32>
    %331 = vector.extract_strided_slice %329 {offsets = [0, 0], sizes = [4, 256], strides = [1, 1]} : vector<4x384xf32> to vector<4x256xf32>
    %332 = arith.addf %330, %331 : vector<4x256xf32>
    %333 = arith.addf %332, %11 : vector<4x256xf32>
    %334 = arith.negf %333 : vector<4x256xf32>
    %335 = math.exp %334 : vector<4x256xf32>
    %cst_53 = arith.constant 1.000000e+00 : f32
    %336 = vector.broadcast %cst_53 : f32 to vector<4x256xf32>
    %337 = arith.addf %336, %335 : vector<4x256xf32>
    %338 = arith.divf %336, %337 : vector<4x256xf32>
    %339 = vector.extract_strided_slice %338 {offsets = [0, 0], sizes = [4, 128], strides = [1, 1]} : vector<4x256xf32> to vector<4x128xf32>
    %340 = vector.extract_strided_slice %338 {offsets = [0, 128], sizes = [4, 128], strides = [1, 1]} : vector<4x256xf32> to vector<4x128xf32>
    %341 = vector.extract_strided_slice %328 {offsets = [0, 256], sizes = [4, 128], strides = [1, 1]} : vector<4x384xf32> to vector<4x128xf32>
    %342 = arith.addf %341, %12 : vector<4x128xf32>
    %343 = vector.extract_strided_slice %329 {offsets = [0, 256], sizes = [4, 128], strides = [1, 1]} : vector<4x384xf32> to vector<4x128xf32>
    %344 = arith.addf %343, %13 : vector<4x128xf32>
    %345 = arith.mulf %339, %344 : vector<4x128xf32>
    %346 = arith.addf %342, %345 : vector<4x128xf32>
    %347 = math.tanh %346 : vector<4x128xf32>
    %348 = arith.subf %309, %347 : vector<4x128xf32>
    %349 = arith.mulf %340, %348 : vector<4x128xf32>
    %350 = arith.addf %347, %349 : vector<4x128xf32>
    %c0_54 = arith.constant 0 : index
    %c0_55 = arith.constant 0 : index
    %351 = vector.load %arg11[%c0_54, %c0_55] : memref<128x16xf32, #tpu.memory_space<vmem>>, vector<128x16xf32>
    %cst_56 = arith.constant dense<0.000000e+00> : vector<4x16xf32>
    %352 = tpu.matmul %350, %351, %cst_56 {dimension_numbers = #tpu.dot_dimension_numbers<[1], [0], [0], [1], [0, 0, 1, 1], [], []>} : vector<4x128xf32>, vector<128x16xf32>, vector<4x16xf32> -> vector<4x16xf32>
    %c0_57 = arith.constant 0 : index
    %c0_58 = arith.constant 0 : index
    %353 = vector.load %arg12[%c0_57, %c0_58] : memref<1x16xf32, #tpu.memory_space<vmem>>, vector<1x16xf32>
    %354 = vector.broadcast %353 : vector<1x16xf32> to vector<4x16xf32>
    %355 = arith.addf %352, %354 : vector<4x16xf32>
    %c0_59 = arith.constant 0 : index
    %c0_60 = arith.constant 0 : index
    %356 = vector.load %arg13[%c0_59, %c0_60] : memref<4x16xf32, #tpu.memory_space<vmem>>, vector<4x16xf32>
    tpu.vector_store %arg13[%c0_59, %c0_60], %355 {strides = array<i32>} : memref<4x16xf32, #tpu.memory_space<vmem>>, vector<4x16xf32>,
    return
  }
}

</mosaic_0001>

<llo_original>
// kernel: tpu_custom_call.1
$region0: #{tpu_custom_call.1}
  #allocation0 [shape = 'u32[]', space=smem, size = 0x4, offset = 0x4, fixed_abs, tag = 'smem constant byte address 0x4 - core index']
  #allocation1 [shape = 'u32[72,128]{1,0:T(1,128)}', space=vmem, size = 0x9000, scoped, tag = 'internal scratch']
  %s0 = inlined_call_operand.vmem [shape: f32[4,8], index: 0, kind: input, shape index: {}]
  %s1 = inlined_call_operand.vmem [shape: f32[8,128], index: 1, kind: input, shape index: {}]
  %s2 = inlined_call_operand.vmem [shape: f32[1,128], index: 2, kind: input, shape index: {}]
  %s3 = inlined_call_operand.hbm [shape: f32[128,768], index: 3, kind: input, shape index: {}]
  %s4 = inlined_call_operand.hbm [shape: f32[128,384], index: 4, kind: input, shape index: {}]
  %s5 = inlined_call_operand.vmem [shape: f32[4,256], index: 5, kind: input, shape index: {}]
  %s6 = inlined_call_operand.vmem [shape: f32[4,128], index: 6, kind: input, shape index: {}]
  %s7 = inlined_call_operand.vmem [shape: f32[4,128], index: 7, kind: input, shape index: {}]
  %s8 = inlined_call_operand.vmem [shape: f32[4,256], index: 8, kind: input, shape index: {}]
  %s9 = inlined_call_operand.vmem [shape: f32[4,128], index: 9, kind: input, shape index: {}]
  %s10 = inlined_call_operand.vmem [shape: f32[4,128], index: 10, kind: input, shape index: {}]
  %s11 = inlined_call_operand.vmem [shape: f32[128,16], index: 11, kind: input, shape index: {}]
  %s12 = inlined_call_operand.vmem [shape: f32[1,16], index: 12, kind: input, shape index: {}]
  %s13 = inlined_call_operand.hbm [shape: f32[4,16], index: 13, kind: output, shape index: {}]
  %s14 = sld [smem:[#allocation0]]
  $region70: #{tpu_custom_call.1} parent=0
    _
  %s16 = ssub.s32 1, %s14
  %s17 = scalar_select 0, %s16, %s14
  $region1: #{tpu_custom_call.1} parent=0
    #allocation2 [shape = 'u8[393216]{0}', space=vmem, size = 0x60000, scoped, tag = 'input window, operand 3, single buffered']
    #allocation3 [shape = 's32[1]{0}', space=sflag, size = 0x4, scoped, tag = 'scoped memory for tpu_custom_call.1']
    #allocation4 [shape = 's32[1]{0}', space=sflag, size = 0x4, scoped, tag = 'scoped memory for tpu_custom_call.1']
    #allocation5 [shape = 'u8[196608]{0}', space=vmem, size = 0x30000, scoped, tag = 'input window, operand 4, single buffered']
    #allocation6 [shape = 's32[1]{0}', space=sflag, size = 0x4, scoped, tag = 'scoped memory for tpu_custom_call.1']
    #allocation7 [shape = 'u8[2048]{0}', space=vmem, size = 0x800, scoped, tag = 'output window, operand 0, single buffered']
    %18 = vsyncpa [#allocation3], 0
    %19 = vsyncpa [#allocation6], 0
    %20 = vsyncpa [#allocation4], 0
    // Predicated region
    $region2: #{tpu_custom_call.1} parent=1 // pred_check
      _
    $region3: #{tpu_custom_call.1} parent=1 // pred_check_branch
      %22 = sbr.rel (0) target = $region5
    $region4: #{tpu_custom_call.1} parent=1 // pred_region
      _
    $region5: #{tpu_custom_call.1} parent=1 // pred_fallthru
      _
    // Predicated region
    $region6: #{tpu_custom_call.1} parent=1 // pred_check
      _
    $region7: #{tpu_custom_call.1} parent=1 // pred_check_branch
      %24 = sbr.rel (0) target = $region9
    $region8: #{tpu_custom_call.1} parent=1 // pred_region
      _
    $region9: #{tpu_custom_call.1} parent=1 // pred_fallthru
      _
    // Predicated region
    $region10: #{tpu_custom_call.1} parent=1 // pred_check
      _
    $region11: #{tpu_custom_call.1} parent=1 // pred_check_branch
      %26 = sbr.rel (0) target = $region13
    $region12: #{tpu_custom_call.1} parent=1 // pred_region
      _
    $region13: #{tpu_custom_call.1} parent=1 // pred_fallthru
      _
    // Predicated region
    $region14: #{tpu_custom_call.1} parent=1 // pred_check
      _
    $region15: #{tpu_custom_call.1} parent=1 // pred_check_branch
      %28 = sbr.rel (0) target = $region17
    $region16: #{tpu_custom_call.1} parent=1 // pred_region
      %30 = vsyncadd [#allocation3], 0
      %s31 = sshll.u32 %s3, 4
      %s32 = int_to_ptr.hbm [resolvable:$true] %s31
      %s33 = sshll.u32 [#allocation2], 4
      %s34 = int_to_ptr.vmem [resolvable:$true] %s33
      %39 = dma.hbm_to_vmem [thread:$0]  %s32, 12288, %s34, [#allocation3], 768, 768, 48
    $region17: #{tpu_custom_call.1} parent=1 // pred_fallthru
      _
    // Predicated region
    $region18: #{tpu_custom_call.1} parent=1 // pred_check
      _
    $region19: #{tpu_custom_call.1} parent=1 // pred_check_branch
      %41 = sbr.rel (0) target = $region21
    $region20: #{tpu_custom_call.1} parent=1 // pred_region
      %43 = vsyncadd [#allocation6], 0
      %s44 = sshll.u32 %s4, 4
      %s45 = int_to_ptr.hbm [resolvable:$true] %s44
      %s46 = sshll.u32 [#allocation5], 4
      %s47 = int_to_ptr.vmem [resolvable:$true] %s46
      %52 = dma.hbm_to_vmem [thread:$0]  %s45, 6144, %s47, [#allocation6], 384, 384, 24
    $region21: #{tpu_custom_call.1} parent=1 // pred_fallthru
      _
    // Predicated region
    $region22: #{tpu_custom_call.1} parent=1 // pred_check
      _
    $region23: #{tpu_custom_call.1} parent=1 // pred_check_branch
      %54 = sbr.rel (0) target = $region25
    $region24: #{tpu_custom_call.1} parent=1 // pred_region
      _
    $region25: #{tpu_custom_call.1} parent=1 // pred_fallthru
      _
    // Predicated region
    $region26: #{tpu_custom_call.1} parent=1 // pred_check
      _
    $region27: #{tpu_custom_call.1} parent=1 // pred_check_branch
      %56 = sbr.rel (0) target = $region29
    $region28: #{tpu_custom_call.1} parent=1 // pred_region
      _
    $region29: #{tpu_custom_call.1} parent=1 // pred_fallthru
      _
    // Predicated region
    $region30: #{tpu_custom_call.1} parent=1 // pred_check
      _
    $region31: #{tpu_custom_call.1} parent=1 // pred_check_branch
      %58 = sbr.rel (0) target = $region33
    $region32: #{tpu_custom_call.1} parent=1 // pred_region
      _
    $region33: #{tpu_custom_call.1} parent=1 // pred_fallthru
      _
    // Predicated region
    $region34: #{tpu_custom_call.1} parent=1 // pred_check
      _
    $region35: #{tpu_custom_call.1} parent=1 // pred_check_branch
      %60 = sbr.rel (0) target = $region37
    $region36: #{tpu_custom_call.1} parent=1 // pred_region
      _
    $region37: #{tpu_custom_call.1} parent=1 // pred_fallthru
      _
    // Predicated region
    $region38: #{tpu_custom_call.1} parent=1 // pred_check
      _
    $region39: #{tpu_custom_call.1} parent=1 // pred_check_branch
      %62 = sbr.rel (0) target = $region41
    $region40: #{tpu_custom_call.1} parent=1 // pred_region
      _
    $region41: #{tpu_custom_call.1} parent=1 // pred_fallthru
      _
    // Predicated region
    $region42: #{tpu_custom_call.1} parent=1 // pred_check
      _
    $region43: #{tpu_custom_call.1} parent=1 // pred_check_branch
      %64 = sbr.rel (0) target = $region45
    $region44: #{tpu_custom_call.1} parent=1 // pred_region
      _
    $region45: #{tpu_custom_call.1} parent=1 // pred_fallthru
      _
    // Predicated region
    $region46: #{tpu_custom_call.1} parent=1 // pred_check
      _
    $region47: #{tpu_custom_call.1} parent=1 // pred_check_branch
      %66 = sbr.rel (0) target = $region49
    $region48: #{tpu_custom_call.1} parent=1 // pred_region
      _
    $region49: #{tpu_custom_call.1} parent=1 // pred_fallthru
      _
    // Predicated region
    $region50: #{tpu_custom_call.1} parent=1 // pred_check
      _
    $region51: #{tpu_custom_call.1} parent=1 // pred_check_branch
      %68 = sbr.rel (0) target = $region53
    $region52: #{tpu_custom_call.1} parent=1 // pred_region
      _
    $region53: #{tpu_custom_call.1} parent=1 // pred_fallthru
      _
    // Predicated region
    $region54: #{tpu_custom_call.1} parent=1 // pred_check
      _
    $region55: #{tpu_custom_call.1} parent=1 // pred_check_branch
      %70 = sbr.rel (0) target = $region57
    $region56: #{tpu_custom_call.1} parent=1 // pred_region
      %72 = dma.done [#allocation3], 12288
    $region57: #{tpu_custom_call.1} parent=1 // pred_fallthru
      _
    // Predicated region
    $region58: #{tpu_custom_call.1} parent=1 // pred_check
      _
    $region59: #{tpu_custom_call.1} parent=1 // pred_check_branch
      %74 = sbr.rel (0) target = $region61
    $region60: #{tpu_custom_call.1} parent=1 // pred_region
      %76 = dma.done [#allocation6], 6144
    $region61: #{tpu_custom_call.1} parent=1 // pred_fallthru
      _
    %v77 = vld [vmem:[%s0] sm:$0xf]
    %v78 = vld [vmem:[%s1] sm:$0xff]
    %v79 = vld [vmem:[%s2] sm:$0x1]
    %v81 = vperm.slane %v79, 0
    %vm83 = vcmask 64512
    %v85 = vsel %vm83, %v77, 0
    %87 = vmatpush.msra.mxu0 0.0
    %88 = vmatpush.msra.mxu0 0.0
    %89 = vmatpush.msra.mxu0 0.0
    %90 = vmatpush.msra.mxu0 0.0
    %91 = vmatpush.msra.mxu0 0.0
    %92 = vmatpush.msra.mxu0 0.0
    %93 = vmatpush.msra.mxu0 0.0
    %94 = vmatpush.msra.mxu0 0.0
    %95 = vmatpush.msra.mxu0 0.0
    %96 = vmatpush.msra.mxu0 0.0
    %97 = vmatpush.msra.mxu0 0.0
    %98 = vmatpush.msra.mxu0 0.0
    %99 = vmatpush.msra.mxu0 0.0
    %100 = vmatpush.msra.mxu0 0.0
    %101 = vmatpush.msra.mxu0 0.0
    %102 = vmatpush.msra.mxu0 %v78
    %103 = vmatmul.f32.gmra.mxu0 %v85
    %v104 = vpop.f32.mrf.mxu0
    %v105 = vadd.f32 %v81, %v104
    %106 = vdwg.mxu0
    %v107 = vld [vmem:[#allocation2] sm:$0xff]
    %v108 = vld [vmem:[#allocation2 + $0x8] sm:$0xff]
    %v109 = vld [vmem:[#allocation2 + $0x10] sm:$0xff]
    %v110 = vld [vmem:[#allocation2 + $0x18] sm:$0xff]
    %v111 = vld [vmem:[#allocation2 + $0x20] sm:$0xff]
    %v112 = vld [vmem:[#allocation2 + $0x28] sm:$0xff]
    %v113 = vld [vmem:[#allocation2 + $0x30] sm:$0xff]
    %v114 = vld [vmem:[#allocation2 + $0x38] sm:$0xff]
    %v115 = vld [vmem:[#allocation2 + $0x40] sm:$0xff]
    %v116 = vld [vmem:[#allocation2 + $0x48] sm:$0xff]
    %v117 = vld [vmem:[#allocation2 + $0x50] sm:$0xff]
    %v118 = vld [vmem:[#allocation2 + $0x58] sm:$0xff]
    %v119 = vld [vmem:[#allocation2 + $0x60] sm:$0xff]
    %v120 = vld [vmem:[#allocation2 + $0x68] sm:$0xff]
    %v121 = vld [vmem:[#allocation2 + $0x70] sm:$0xff]
    %v122 = vld [vmem:[#allocation2 + $0x78] sm:$0xff]
    %v123 = vld [vmem:[#allocation2 + $0x80] sm:$0xff]
    %v124 = vld [vmem:[#allocation2 + $0x88] sm:$0xff]
    %v125 = vld [vmem:[#allocation2 + $0x90] sm:$0xff]
    %v126 = vld [vmem:[#allocation2 + $0x98] sm:$0xff]
    %v127 = vld [vmem:[#allocation2 + $0xa0] sm:$0xff]
    %v128 = vld [vmem:[#allocation2 + $0xa8] sm:$0xff]
    %v129 = vld [vmem:[#allocation2 + $0xb0] sm:$0xff]
    %v130 = vld [vmem:[#allocation2 + $0xb8] sm:$0xff]
    %v131 = vld [vmem:[#allocation2 + $0xc0] sm:$0xff]
    %v132 = vld [vmem:[#allocation2 + $0xc8] sm:$0xff]
    %v133 = vld [vmem:[#allocation2 + $0xd0] sm:$0xff]
    %v134 = vld [vmem:[#allocation2 + $0xd8] sm:$0xff]
    %v135 = vld [vmem:[#allocation2 + $0xe0] sm:$0xff]
    %v136 = vld [vmem:[#allocation2 + $0xe8] sm:$0xff]
    %v137 = vld [vmem:[#allocation2 + $0xf0] sm:$0xff]
    %v138 = vld [vmem:[#allocation2 + $0xf8] sm:$0xff]
    %v139 = vld [vmem:[#allocation2 + $0x100] sm:$0xff]
    %v140 = vld [vmem:[#allocation2 + $0x108] sm:$0xff]
    %v141 = vld [vmem:[#allocation2 + $0x110] sm:$0xff]
    %v142 = vld [vmem:[#allocation2 + $0x118] sm:$0xff]
    %v143 = vld [vmem:[#allocation2 + $0x120] sm:$0xff]
    %v144 = vld [vmem:[#allocation2 + $0x128] sm:$0xff]
    %v145 = vld [vmem:[#allocation2 + $0x130] sm:$0xff]
    %v146 = vld [vmem:[#allocation2 + $0x138] sm:$0xff]
    %v147 = vld [vmem:[#allocation2 + $0x140] sm:$0xff]
    %v148 = vld [vmem:[#allocation2 + $0x148] sm:$0xff]
    %v149 = vld [vmem:[#allocation2 + $0x150] sm:$0xff]
    %v150 = vld [vmem:[#allocation2 + $0x158] sm:$0xff]
    %v151 = vld [vmem:[#allocation2 + $0x160] sm:$0xff]
    %v152 = vld [vmem:[#allocation2 + $0x168] sm:$0xff]
    %v153 = vld [vmem:[#allocation2 + $0x170] sm:$0xff]
    %v154 = vld [vmem:[#allocation2 + $0x178] sm:$0xff]
    %v155 = vld [vmem:[#allocation2 + $0x180] sm:$0xff]
    %v156 = vld [vmem:[#allocation2 + $0x188] sm:$0xff]
    %v157 = vld [vmem:[#allocation2 + $0x190] sm:$0xff]
    %v158 = vld [vmem:[#allocation2 + $0x198] sm:$0xff]
    %v159 = vld [vmem:[#allocation2 + $0x1a0] sm:$0xff]
    %v160 = vld [vmem:[#allocation2 + $0x1a8] sm:$0xff]
    %v161 = vld [vmem:[#allocation2 + $0x1b0] sm:$0xff]
    %v162 = vld [vmem:[#allocation2 + $0x1b8] sm:$0xff]
    %v163 = vld [vmem:[#allocation2 + $0x1c0] sm:$0xff]
    %v164 = vld [vmem:[#allocation2 + $0x1c8] sm:$0xff]
    %v165 = vld [vmem:[#allocation2 + $0x1d0] sm:$0xff]
    %v166 = vld [vmem:[#allocation2 + $0x1d8] sm:$0xff]
    %v167 = vld [vmem:[#allocation2 + $0x1e0] sm:$0xff]
    %v168 = vld [vmem:[#allocation2 + $0x1e8] sm:$0xff]
    %v169 = vld [vmem:[#allocation2 + $0x1f0] sm:$0xff]
    %v170 = vld [vmem:[#allocation2 + $0x1f8] sm:$0xff]
    %v171 = vld [vmem:[#allocation2 + $0x200] sm:$0xff]
    %v172 = vld [vmem:[#allocation2 + $0x208] sm:$0xff]
    %v173 = vld [vmem:[#allocation2 + $0x210] sm:$0xff]
    %v174 = vld [vmem:[#allocation2 + $0x218] sm:$0xff]
    %v175 = vld [vmem:[#allocation2 + $0x220] sm:$0xff]
    %v176 = vld [vmem:[#allocation2 + $0x228] sm:$0xff]
    %v177 = vld [vmem:[#allocation2 + $0x230] sm:$0xff]
    %v178 = vld [vmem:[#allocation2 + $0x238] sm:$0xff]
    %v179 = vld [vmem:[#allocation2 + $0x240] sm:$0xff]
    %v180 = vld [vmem:[#allocation2 + $0x248] sm:$0xff]
    %v181 = vld [vmem:[#allocation2 + $0x250] sm:$0xff]
    %v182 = vld [vmem:[#allocation2 + $0x258] sm:$0xff]
    %v183 = vld [vmem:[#allocation2 + $0x260] sm:$0xff]
    %v184 = vld [vmem:[#allocation2 + $0x268] sm:$0xff]
    %v185 = vld [vmem:[#allocation2 + $0x270] sm:$0xff]
    %v186 = vld [vmem:[#allocation2 + $0x278] sm:$0xff]
    %v187 = vld [vmem:[#allocation2 + $0x280] sm:$0xff]
    %v188 = vld [vmem:[#allocation2 + $0x288] sm:$0xff]
    %v189 = vld [vmem:[#allocation2 + $0x290] sm:$0xff]
    %v190 = vld [vmem:[#allocation2 + $0x298] sm:$0xff]
    %v191 = vld [vmem:[#allocation2 + $0x2a0] sm:$0xff]
    %v192 = vld [vmem:[#allocation2 + $0x2a8] sm:$0xff]
    %v193 = vld [vmem:[#allocation2 + $0x2b0] sm:$0xff]
    %v194 = vld [vmem:[#allocation2 + $0x2b8] sm:$0xff]
    %v195 = vld [vmem:[#allocation2 + $0x2c0] sm:$0xff]
    %v196 = vld [vmem:[#allocation2 + $0x2c8] sm:$0xff]
    %v197 = vld [vmem:[#allocation2 + $0x2d0] sm:$0xff]
    %v198 = vld [vmem:[#allocation2 + $0x2d8] sm:$0xff]
    %v199 = vld [vmem:[#allocation2 + $0x2e0] sm:$0xff]
    %v200 = vld [vmem:[#allocation2 + $0x2e8] sm:$0xff]
    %v201 = vld [vmem:[#allocation2 + $0x2f0] sm:$0xff]
    %v202 = vld [vmem:[#allocation2 + $0x2f8] sm:$0xff]
    %v203 = vld [vmem:[#allocation5] sm:$0xff]
    %v204 = vld [vmem:[#allocation5 + $0x8] sm:$0xff]
    %v205 = vld [vmem:[#allocation5 + $0x10] sm:$0xff]
    %v206 = vld [vmem:[#allocation5 + $0x18] sm:$0xff]
    %v207 = vld [vmem:[#allocation5 + $0x20] sm:$0xff]
    %v208 = vld [vmem:[#allocation5 + $0x28] sm:$0xff]
    %v209 = vld [vmem:[#allocation5 + $0x30] sm:$0xff]
    %v210 = vld [vmem:[#allocation5 + $0x38] sm:$0xff]
    %v211 = vld [vmem:[#allocation5 + $0x40] sm:$0xff]
    %v212 = vld [vmem:[#allocation5 + $0x48] sm:$0xff]
    %v213 = vld [vmem:[#allocation5 + $0x50] sm:$0xff]
    %v214 = vld [vmem:[#allocation5 + $0x58] sm:$0xff]
    %v215 = vld [vmem:[#allocation5 + $0x60] sm:$0xff]
    %v216 = vld [vmem:[#allocation5 + $0x68] sm:$0xff]
    %v217 = vld [vmem:[#allocation5 + $0x70] sm:$0xff]
    %v218 = vld [vmem:[#allocation5 + $0x78] sm:$0xff]
    %v219 = vld [vmem:[#allocation5 + $0x80] sm:$0xff]
    %v220 = vld [vmem:[#allocation5 + $0x88] sm:$0xff]
    %v221 = vld [vmem:[#allocation5 + $0x90] sm:$0xff]
    %v222 = vld [vmem:[#allocation5 + $0x98] sm:$0xff]
    %v223 = vld [vmem:[#allocation5 + $0xa0] sm:$0xff]
    %v224 = vld [vmem:[#allocation5 + $0xa8] sm:$0xff]
    %v225 = vld [vmem:[#allocation5 + $0xb0] sm:$0xff]
    %v226 = vld [vmem:[#allocation5 + $0xb8] sm:$0xff]
    %v227 = vld [vmem:[#allocation5 + $0xc0] sm:$0xff]
    %v228 = vld [vmem:[#allocation5 + $0xc8] sm:$0xff]
    %v229 = vld [vmem:[#allocation5 + $0xd0] sm:$0xff]
    %v230 = vld [vmem:[#allocation5 + $0xd8] sm:$0xff]
    %v231 = vld [vmem:[#allocation5 + $0xe0] sm:$0xff]
    %v232 = vld [vmem:[#allocation5 + $0xe8] sm:$0xff]
    %v233 = vld [vmem:[#allocation5 + $0xf0] sm:$0xff]
    %v234 = vld [vmem:[#allocation5 + $0xf8] sm:$0xff]
    %v235 = vld [vmem:[#allocation5 + $0x100] sm:$0xff]
    %v236 = vld [vmem:[#allocation5 + $0x108] sm:$0xff]
    %v237 = vld [vmem:[#allocation5 + $0x110] sm:$0xff]
    %v238 = vld [vmem:[#allocation5 + $0x118] sm:$0xff]
    %v239 = vld [vmem:[#allocation5 + $0x120] sm:$0xff]
    %v240 = vld [vmem:[#allocation5 + $0x128] sm:$0xff]
    %v241 = vld [vmem:[#allocation5 + $0x130] sm:$0xff]
    %v242 = vld [vmem:[#allocation5 + $0x138] sm:$0xff]
    %v243 = vld [vmem:[#allocation5 + $0x140] sm:$0xff]
    %v244 = vld [vmem:[#allocation5 + $0x148] sm:$0xff]
    %v245 = vld [vmem:[#allocation5 + $0x150] sm:$0xff]
    %v246 = vld [vmem:[#allocation5 + $0x158] sm:$0xff]
    %v247 = vld [vmem:[#allocation5 + $0x160] sm:$0xff]
    %v248 = vld [vmem:[#allocation5 + $0x168] sm:$0xff]
    %v249 = vld [vmem:[#allocation5 + $0x170] sm:$0xff]
    %v250 = vld [vmem:[#allocation5 + $0x178] sm:$0xff]
    %v251 = vld [vmem:[%s5] sm:$0xff]
    %v252 = vld [vmem:[%s6] sm:$0xf]
    %v253 = vld [vmem:[%s7] sm:$0xf]
    %v254 = vld [vmem:[%s8] sm:$0xff]
    %v255 = vld [vmem:[%s9] sm:$0xf]
    %v256 = vld [vmem:[%s10] sm:$0xf]
    %257 = vmatpush.msra.mxu0 %v200
    %258 = vmatpush.msra.mxu0 %v194
    %259 = vmatpush.msra.mxu0 %v188
    %260 = vmatpush.msra.mxu0 %v182
    %261 = vmatpush.msra.mxu0 %v176
    %262 = vmatpush.msra.mxu0 %v170
    %263 = vmatpush.msra.mxu0 %v164
    %264 = vmatpush.msra.mxu0 %v158
    %265 = vmatpush.msra.mxu0 %v152
    %266 = vmatpush.msra.mxu0 %v146
    %267 = vmatpush.msra.mxu0 %v140
    %268 = vmatpush.msra.mxu0 %v134
    %269 = vmatpush.msra.mxu0 %v128
    %270 = vmatpush.msra.mxu0 %v122
    %271 = vmatpush.msra.mxu0 %v116
    %272 = vmatpush.msra.mxu0 %v110
    %273 = vmatmul.f32.gmra.mxu0 %v105
    %v274 = vpop.f32.mrf.mxu0
    %v275 = vadd.f32 0.0, %v274
    %276 = vdwg.mxu0
    %277 = vmatpush.msra.mxu0 %v201
    %278 = vmatpush.msra.mxu0 %v195
    %279 = vmatpush.msra.mxu0 %v189
    %280 = vmatpush.msra.mxu0 %v183
    %281 = vmatpush.msra.mxu0 %v177
    %282 = vmatpush.msra.mxu0 %v171
    %283 = vmatpush.msra.mxu0 %v165
    %284 = vmatpush.msra.mxu0 %v159
    %285 = vmatpush.msra.mxu0 %v153
    %286 = vmatpush.msra.mxu0 %v147
    %287 = vmatpush.msra.mxu0 %v141
    %288 = vmatpush.msra.mxu0 %v135
    %289 = vmatpush.msra.mxu0 %v129
    %290 = vmatpush.msra.mxu0 %v123
    %291 = vmatpush.msra.mxu0 %v117
    %292 = vmatpush.msra.mxu0 %v111
    %293 = vmatmul.f32.gmra.mxu0 %v105
    %v294 = vpop.f32.mrf.mxu0
    %v295 = vadd.f32 0.0, %v294
    %296 = vdwg.mxu0
    %297 = vmatpush.msra.mxu0 %v202
    %298 = vmatpush.msra.mxu0 %v196
    %299 = vmatpush.msra.mxu0 %v190
    %300 = vmatpush.msra.mxu0 %v184
    %301 = vmatpush.msra.mxu0 %v178
    %302 = vmatpush.msra.mxu0 %v172
    %303 = vmatpush.msra.mxu0 %v166
    %304 = vmatpush.msra.mxu0 %v160
    %305 = vmatpush.msra.mxu0 %v154
    %306 = vmatpush.msra.mxu0 %v148
    %307 = vmatpush.msra.mxu0 %v142
    %308 = vmatpush.msra.mxu0 %v136
    %309 = vmatpush.msra.mxu0 %v130
    %310 = vmatpush.msra.mxu0 %v124
    %311 = vmatpush.msra.mxu0 %v118
    %312 = vmatpush.msra.mxu0 %v112
    %313 = vmatmul.f32.gmra.mxu0 %v105
    %v314 = vpop.f32.mrf.mxu0
    %v315 = vadd.f32 0.0, %v314
    %316 = vdwg.mxu0
    %318 = vst [vmem:[#allocation1] ss:$2 sm:$0xff] %v251
    %v319 = vld.sshfl [vmem:[#allocation1] sm:$0xff pattern:$0x75316420]
    %v320 = vld.sshfl [vmem:[#allocation1 + $0x8] sm:$0xff pattern:$0x75316420]
    %v323 = vadd.f32 %v275, %v319
    %v324 = vadd.f32 %v295, %v320
    %v325 = vxor.u32 %v323, 2147483648
    %v326 = vxor.u32 %v324, 2147483648
    %v327 = vmul.f32 %v325, 1.442695
    %v328 = vpow.pop %v327
    %v329 = vmul.f32 %v326, 1.442695
    %v330 = vpow.pop %v329
    %v331 = vadd.f32 %v328, 1.0
    %v332 = vadd.f32 %v330, 1.0
    %v333 = vrcp.pop %v331
    %v334 = vmul.f32 %v331, %v333
    %v335 = vsub.f32 1.0, %v334
    %v336 = vmul.f32 %v333, %v335
    %v337 = vadd.f32 %v333, %v336
    %vm338 = vweird.f32 %v331
    %vm339 = vweird.f32 %v333
    %vm340 = vmor %vm338, %vm339
    %v341 = vsel %vm340, %v333, %v337
    %v342 = vand.u32 2147483647, %v331
    %vm343 = vcmp.eq.f32.partialorder %v342, 8.507059e+37
    %v344 = vand.u32 %v331, 2147483648
    %v345 = vor.u32 1.1754944e-38, %v344
    %v346 = vsel %vm343, %v345, %v341
    %v347 = vmul.f32 1.0, %v346
    %v348 = vrcp.pop %v332
    %v349 = vmul.f32 %v332, %v348
    %v350 = vsub.f32 1.0, %v349
    %v351 = vmul.f32 %v348, %v350
    %v352 = vadd.f32 %v348, %v351
    %vm353 = vweird.f32 %v332
    %vm354 = vweird.f32 %v348
    %vm355 = vmor %vm353, %vm354
    %v356 = vsel %vm355, %v348, %v352
    %v357 = vand.u32 2147483647, %v332
    %vm358 = vcmp.eq.f32.partialorder %v357, 8.507059e+37
    %v359 = vand.u32 %v332, 2147483648
    %v360 = vor.u32 1.1754944e-38, %v359
    %v361 = vsel %vm358, %v360, %v356
    %v362 = vmul.f32 1.0, %v361
    %v363 = vadd.f32 %v315, %v253
    %v364 = vmul.f32 %v347, %v363
    %v365 = vadd.f32 %v252, %v364
    %v366 = vtanh.pop %v365
    %v367 = vsub.f32 %v105, %v366
    %v368 = vmul.f32 %v362, %v367
    %v369 = vadd.f32 %v366, %v368
    %370 = vmatpush.msra.mxu0 %v197
    %371 = vmatpush.msra.mxu0 %v191
    %372 = vmatpush.msra.mxu0 %v185
    %373 = vmatpush.msra.mxu0 %v179
    %374 = vmatpush.msra.mxu0 %v173
    %375 = vmatpush.msra.mxu0 %v167
    %376 = vmatpush.msra.mxu0 %v161
    %377 = vmatpush.msra.mxu0 %v155
    %378 = vmatpush.msra.mxu0 %v149
    %379 = vmatpush.msra.mxu0 %v143
    %380 = vmatpush.msra.mxu0 %v137
    %381 = vmatpush.msra.mxu0 %v131
    %382 = vmatpush.msra.mxu0 %v125
    %383 = vmatpush.msra.mxu0 %v119
    %384 = vmatpush.msra.mxu0 %v113
    %385 = vmatpush.msra.mxu0 %v107
    %386 = vmatmul.f32.gmra.mxu0 %v369
    %v387 = vpop.f32.mrf.mxu0
    %v388 = vadd.f32 0.0, %v387
    %389 = vdwg.mxu0
    %390 = vmatpush.msra.mxu0 %v198
    %391 = vmatpush.msra.mxu0 %v192
    %392 = vmatpush.msra.mxu0 %v186
    %393 = vmatpush.msra.mxu0 %v180
    %394 = vmatpush.msra.mxu0 %v174
    %395 = vmatpush.msra.mxu0 %v168
    %396 = vmatpush.msra.mxu0 %v162
    %397 = vmatpush.msra.mxu0 %v156
    %398 = vmatpush.msra.mxu0 %v150
    %399 = vmatpush.msra.mxu0 %v144
    %400 = vmatpush.msra.mxu0 %v138
    %401 = vmatpush.msra.mxu0 %v132
    %402 = vmatpush.msra.mxu0 %v126
    %403 = vmatpush.msra.mxu0 %v120
    %404 = vmatpush.msra.mxu0 %v114
    %405 = vmatpush.msra.mxu0 %v108
    %406 = vmatmul.f32.gmra.mxu0 %v369
    %v407 = vpop.f32.mrf.mxu0
    %v408 = vadd.f32 0.0, %v407
    %409 = vdwg.mxu0
    %410 = vmatpush.msra.mxu0 %v199
    %411 = vmatpush.msra.mxu0 %v193
    %412 = vmatpush.msra.mxu0 %v187
    %413 = vmatpush.msra.mxu0 %v181
    %414 = vmatpush.msra.mxu0 %v175
    %415 = vmatpush.msra.mxu0 %v169
    %416 = vmatpush.msra.mxu0 %v163
    %417 = vmatpush.msra.mxu0 %v157
    %418 = vmatpush.msra.mxu0 %v151
    %419 = vmatpush.msra.mxu0 %v145
    %420 = vmatpush.msra.mxu0 %v139
    %421 = vmatpush.msra.mxu0 %v133
    %422 = vmatpush.msra.mxu0 %v127
    %423 = vmatpush.msra.mxu0 %v121
    %424 = vmatpush.msra.mxu0 %v115
    %425 = vmatpush.msra.mxu0 %v109
    %426 = vmatmul.f32.gmra.mxu0 %v369
    %v427 = vpop.f32.mrf.mxu0
    %v428 = vadd.f32 0.0, %v427
    %429 = vdwg.mxu0
    %430 = vmatpush.msra.mxu0 %v200
    %431 = vmatpush.msra.mxu0 %v194
    %432 = vmatpush.msra.mxu0 %v188
    %433 = vmatpush.msra.mxu0 %v182
    %434 = vmatpush.msra.mxu0 %v176
    %435 = vmatpush.msra.mxu0 %v170
    %436 = vmatpush.msra.mxu0 %v164
    %437 = vmatpush.msra.mxu0 %v158
    %438 = vmatpush.msra.mxu0 %v152
    %439 = vmatpush.msra.mxu0 %v146
    %440 = vmatpush.msra.mxu0 %v140
    %441 = vmatpush.msra.mxu0 %v134
    %442 = vmatpush.msra.mxu0 %v128
    %443 = vmatpush.msra.mxu0 %v122
    %444 = vmatpush.msra.mxu0 %v116
    %445 = vmatpush.msra.mxu0 %v110
    %446 = vmatmul.f32.gmra.mxu0 %v369
    %v447 = vpop.f32.mrf.mxu0
    %v448 = vadd.f32 0.0, %v447
    %449 = vdwg.mxu0
    %450 = vmatpush.msra.mxu0 %v201
    %451 = vmatpush.msra.mxu0 %v195
    %452 = vmatpush.msra.mxu0 %v189
    %453 = vmatpush.msra.mxu0 %v183
    %454 = vmatpush.msra.mxu0 %v177
    %455 = vmatpush.msra.mxu0 %v171
    %456 = vmatpush.msra.mxu0 %v165
    %457 = vmatpush.msra.mxu0 %v159
    %458 = vmatpush.msra.mxu0 %v153
    %459 = vmatpush.msra.mxu0 %v147
    %460 = vmatpush.msra.mxu0 %v141
    %461 = vmatpush.msra.mxu0 %v135
    %462 = vmatpush.msra.mxu0 %v129
    %463 = vmatpush.msra.mxu0 %v123
    %464 = vmatpush.msra.mxu0 %v117
    %465 = vmatpush.msra.mxu0 %v111
    %466 = vmatmul.f32.gmra.mxu0 %v369
    %v467 = vpop.f32.mrf.mxu0
    %v468 = vadd.f32 0.0, %v467
    %469 = vdwg.mxu0
    %470 = vmatpush.msra.mxu0 %v202
    %471 = vmatpush.msra.mxu0 %v196
    %472 = vmatpush.msra.mxu0 %v190
    %473 = vmatpush.msra.mxu0 %v184
    %474 = vmatpush.msra.mxu0 %v178
    %475 = vmatpush.msra.mxu0 %v172
    %476 = vmatpush.msra.mxu0 %v166
    %477 = vmatpush.msra.mxu0 %v160
    %478 = vmatpush.msra.mxu0 %v154
    %479 = vmatpush.msra.mxu0 %v148
    %480 = vmatpush.msra.mxu0 %v142
    %481 = vmatpush.msra.mxu0 %v136
    %482 = vmatpush.msra.mxu0 %v130
    %483 = vmatpush.msra.mxu0 %v124
    %484 = vmatpush.msra.mxu0 %v118
    %485 = vmatpush.msra.mxu0 %v112
    %486 = vmatmul.f32.gmra.mxu0 %v369
    %v487 = vpop.f32.mrf.mxu0
    %v488 = vadd.f32 0.0, %v487
    %489 = vdwg.mxu0
    %490 = vmatpush.msra.mxu0 %v248
    %491 = vmatpush.msra.mxu0 %v245
    %492 = vmatpush.msra.mxu0 %v242
    %493 = vmatpush.msra.mxu0 %v239
    %494 = vmatpush.msra.mxu0 %v236
    %495 = vmatpush.msra.mxu0 %v233
    %496 = vmatpush.msra.mxu0 %v230
    %497 = vmatpush.msra.mxu0 %v227
    %498 = vmatpush.msra.mxu0 %v224
    %499 = vmatpush.msra.mxu0 %v221
    %500 = vmatpush.msra.mxu0 %v218
    %501 = vmatpush.msra.mxu0 %v215
    %502 = vmatpush.msra.mxu0 %v212
    %503 = vmatpush.msra.mxu0 %v209
    %504 = vmatpush.msra.mxu0 %v206
    %505 = vmatpush.msra.mxu0 %v203
    %506 = vmatmul.f32.gmra.mxu0 %v105
    %v507 = vpop.f32.mrf.mxu0
    %v508 = vadd.f32 0.0, %v507
    %509 = vdwg.mxu0
    %510 = vmatpush.msra.mxu0 %v249
    %511 = vmatpush.msra.mxu0 %v246
    %512 = vmatpush.msra.mxu0 %v243
    %513 = vmatpush.msra.mxu0 %v240
    %514 = vmatpush.msra.mxu0 %v237
    %515 = vmatpush.msra.mxu0 %v234
    %516 = vmatpush.msra.mxu0 %v231
    %517 = vmatpush.msra.mxu0 %v228
    %518 = vmatpush.msra.mxu0 %v225
    %519 = vmatpush.msra.mxu0 %v222
    %520 = vmatpush.msra.mxu0 %v219
    %521 = vmatpush.msra.mxu0 %v216
    %522 = vmatpush.msra.mxu0 %v213
    %523 = vmatpush.msra.mxu0 %v210
    %524 = vmatpush.msra.mxu0 %v207
    %525 = vmatpush.msra.mxu0 %v204
    %526 = vmatmul.f32.gmra.mxu0 %v105
    %v527 = vpop.f32.mrf.mxu0
    %v528 = vadd.f32 0.0, %v527
    %529 = vdwg.mxu0
    %530 = vmatpush.msra.mxu0 %v250
    %531 = vmatpush.msra.mxu0 %v247
    %532 = vmatpush.msra.mxu0 %v244
    %533 = vmatpush.msra.mxu0 %v241
    %534 = vmatpush.msra.mxu0 %v238
    %535 = vmatpush.msra.mxu0 %v235
    %536 = vmatpush.msra.mxu0 %v232
    %537 = vmatpush.msra.mxu0 %v229
    %538 = vmatpush.msra.mxu0 %v226
    %539 = vmatpush.msra.mxu0 %v223
    %540 = vmatpush.msra.mxu0 %v220
    %541 = vmatpush.msra.mxu0 %v217
    %542 = vmatpush.msra.mxu0 %v214
    %543 = vmatpush.msra.mxu0 %v211
    %544 = vmatpush.msra.mxu0 %v208
    %545 = vmatpush.msra.mxu0 %v205
    %546 = vmatmul.f32.gmra.mxu0 %v105
    %v547 = vpop.f32.mrf.mxu0
    %v548 = vadd.f32 0.0, %v547
    %549 = vdwg.mxu0
    %v550 = vadd.f32 %v388, %v508
    %v551 = vadd.f32 %v408, %v528
    %553 = vst [vmem:[#allocation1] ss:$2 sm:$0xff] %v254
    %v554 = vld.sshfl [vmem:[#allocation1] sm:$0xff pattern:$0x75316420]
    %v555 = vld.sshfl [vmem:[#allocation1 + $0x8] sm:$0xff pattern:$0x75316420]
    %v558 = vadd.f32 %v550, %v554
    %v559 = vadd.f32 %v551, %v555
    %v560 = vxor.u32 %v558, 2147483648
    %v561 = vxor.u32 %v559, 2147483648
    %v562 = vmul.f32 %v560, 1.442695
    %v563 = vpow.pop %v562
    %v564 = vmul.f32 %v561, 1.442695
    %v565 = vpow.pop %v564
    %v566 = vadd.f32 %v563, 1.0
    %v567 = vadd.f32 %v565, 1.0
    %v568 = vrcp.pop %v566
    %v569 = vmul.f32 %v566, %v568
    %v570 = vsub.f32 1.0, %v569
    %v571 = vmul.f32 %v568, %v570
    %v572 = vadd.f32 %v568, %v571
    %vm573 = vweird.f32 %v566
    %vm574 = vweird.f32 %v568
    %vm575 = vmor %vm573, %vm574
    %v576 = vsel %vm575, %v568, %v572
    %v577 = vand.u32 2147483647, %v566
    %vm578 = vcmp.eq.f32.partialorder %v577, 8.507059e+37
    %v579 = vand.u32 %v566, 2147483648
    %v580 = vor.u32 1.1754944e-38, %v579
    %v581 = vsel %vm578, %v580, %v576
    %v582 = vmul.f32 1.0, %v581
    %v583 = vrcp.pop %v567
    %v584 = vmul.f32 %v567, %v583
    %v585 = vsub.f32 1.0, %v584
    %v586 = vmul.f32 %v583, %v585
    %v587 = vadd.f32 %v583, %v586
    %vm588 = vweird.f32 %v567
    %vm589 = vweird.f32 %v583
    %vm590 = vmor %vm588, %vm589
    %v591 = vsel %vm590, %v583, %v587
    %v592 = vand.u32 2147483647, %v567
    %vm593 = vcmp.eq.f32.partialorder %v592, 8.507059e+37
    %v594 = vand.u32 %v567, 2147483648
    %v595 = vor.u32 1.1754944e-38, %v594
    %v596 = vsel %vm593, %v595, %v591
    %v597 = vmul.f32 1.0, %v596
    %v598 = vadd.f32 %v428, %v255
    %v599 = vadd.f32 %v548, %v256
    %v600 = vmul.f32 %v582, %v599
    %v601 = vadd.f32 %v598, %v600
    %v602 = vtanh.pop %v601
    %v603 = vsub.f32 %v105, %v602
    %v604 = vmul.f32 %v597, %v603
    %v605 = vadd.f32 %v602, %v604
    %606 = vst [vmem:[#allocation1] ss:$2 sm:$0xff] %v251
    %v607 = vld.sshfl [vmem:[#allocation1] sm:$0xff pattern:$0x75316420]
    %v608 = vld.sshfl [vmem:[#allocation1 + $0x8] sm:$0xff pattern:$0x75316420]
    %v611 = vadd.f32 %v448, %v607
    %v612 = vadd.f32 %v468, %v608
    %v613 = vxor.u32 %v611, 2147483648
    %v614 = vxor.u32 %v612, 2147483648
    %v615 = vmul.f32 %v613, 1.442695
    %v616 = vpow.pop %v615
    %v617 = vmul.f32 %v614, 1.442695
    %v618 = vpow.pop %v617
    %v619 = vadd.f32 %v616, 1.0
    %v620 = vadd.f32 %v618, 1.0
    %v621 = vrcp.pop %v619
    %v622 = vmul.f32 %v619, %v621
    %v623 = vsub.f32 1.0, %v622
    %v624 = vmul.f32 %v621, %v623
    %v625 = vadd.f32 %v621, %v624
    %vm626 = vweird.f32 %v619
    %vm627 = vweird.f32 %v621
    %vm628 = vmor %vm626, %vm627
    %v629 = vsel %vm628, %v621, %v625
    %v630 = vand.u32 2147483647, %v619
    %vm631 = vcmp.eq.f32.partialorder %v630, 8.507059e+37
    %v632 = vand.u32 %v619, 2147483648
    %v633 = vor.u32 1.1754944e-38, %v632
    %v634 = vsel %vm631, %v633, %v629
    %v635 = vmul.f32 1.0, %v634
    %v636 = vrcp.pop %v620
    %v637 = vmul.f32 %v620, %v636
    %v638 = vsub.f32 1.0, %v637
    %v639 = vmul.f32 %v636, %v638
    %v640 = vadd.f32 %v636, %v639
    %vm641 = vweird.f32 %v620
    %vm642 = vweird.f32 %v636
    %vm643 = vmor %vm641, %vm642
    %v644 = vsel %vm643, %v636, %v640
    %v645 = vand.u32 2147483647, %v620
    %vm646 = vcmp.eq.f32.partialorder %v645, 8.507059e+37
    %v647 = vand.u32 %v620, 2147483648
    %v648 = vor.u32 1.1754944e-38, %v647
    %v649 = vsel %vm646, %v648, %v644
    %v650 = vmul.f32 1.0, %v649
    %v651 = vadd.f32 %v488, %v253
    %v652 = vmul.f32 %v635, %v651
    %v653 = vadd.f32 %v252, %v652
    %v654 = vtanh.pop %v653
    %v655 = vsub.f32 %v369, %v654
    %v656 = vmul.f32 %v650, %v655
    %v657 = vadd.f32 %v654, %v656
    %658 = vmatpush.msra.mxu0 %v197
    %659 = vmatpush.msra.mxu0 %v191
    %660 = vmatpush.msra.mxu0 %v185
    %661 = vmatpush.msra.mxu0 %v179
    %662 = vmatpush.msra.mxu0 %v173
    %663 = vmatpush.msra.mxu0 %v167
    %664 = vmatpush.msra.mxu0 %v161
    %665 = vmatpush.msra.mxu0 %v155
    %666 = vmatpush.msra.mxu0 %v149
    %667 = vmatpush.msra.mxu0 %v143
    %668 = vmatpush.msra.mxu0 %v137
    %669 = vmatpush.msra.mxu0 %v131
    %670 = vmatpush.msra.mxu0 %v125
    %671 = vmatpush.msra.mxu0 %v119
    %672 = vmatpush.msra.mxu0 %v113
    %673 = vmatpush.msra.mxu0 %v107
    %674 = vmatmul.f32.gmra.mxu0 %v657
    %v675 = vpop.f32.mrf.mxu0
    %v676 = vadd.f32 0.0, %v675
    %677 = vdwg.mxu0
    %678 = vmatpush.msra.mxu0 %v198
    %679 = vmatpush.msra.mxu0 %v192
    %680 = vmatpush.msra.mxu0 %v186
    %681 = vmatpush.msra.mxu0 %v180
    %682 = vmatpush.msra.mxu0 %v174
    %683 = vmatpush.msra.mxu0 %v168
    %684 = vmatpush.msra.mxu0 %v162
    %685 = vmatpush.msra.mxu0 %v156
    %686 = vmatpush.msra.mxu0 %v150
    %687 = vmatpush.msra.mxu0 %v144
    %688 = vmatpush.msra.mxu0 %v138
    %689 = vmatpush.msra.mxu0 %v132
    %690 = vmatpush.msra.mxu0 %v126
    %691 = vmatpush.msra.mxu0 %v120
    %692 = vmatpush.msra.mxu0 %v114
    %693 = vmatpush.msra.mxu0 %v108
    %694 = vmatmul.f32.gmra.mxu0 %v657
    %v695 = vpop.f32.mrf.mxu0
    %v696 = vadd.f32 0.0, %v695
    %697 = vdwg.mxu0
    %698 = vmatpush.msra.mxu0 %v199
    %699 = vmatpush.msra.mxu0 %v193
    %700 = vmatpush.msra.mxu0 %v187
    %701 = vmatpush.msra.mxu0 %v181
    %702 = vmatpush.msra.mxu0 %v175
    %703 = vmatpush.msra.mxu0 %v169
    %704 = vmatpush.msra.mxu0 %v163
    %705 = vmatpush.msra.mxu0 %v157
    %706 = vmatpush.msra.mxu0 %v151
    %707 = vmatpush.msra.mxu0 %v145
    %708 = vmatpush.msra.mxu0 %v139
    %709 = vmatpush.msra.mxu0 %v133
    %710 = vmatpush.msra.mxu0 %v127
    %711 = vmatpush.msra.mxu0 %v121
    %712 = vmatpush.msra.mxu0 %v115
    %713 = vmatpush.msra.mxu0 %v109
    %714 = vmatmul.f32.gmra.mxu0 %v657
    %v715 = vpop.f32.mrf.mxu0
    %v716 = vadd.f32 0.0, %v715
    %717 = vdwg.mxu0
    %718 = vmatpush.msra.mxu0 %v200
    %719 = vmatpush.msra.mxu0 %v194
    %720 = vmatpush.msra.mxu0 %v188
    %721 = vmatpush.msra.mxu0 %v182
    %722 = vmatpush.msra.mxu0 %v176
    %723 = vmatpush.msra.mxu0 %v170
    %724 = vmatpush.msra.mxu0 %v164
    %725 = vmatpush.msra.mxu0 %v158
    %726 = vmatpush.msra.mxu0 %v152
    %727 = vmatpush.msra.mxu0 %v146
    %728 = vmatpush.msra.mxu0 %v140
    %729 = vmatpush.msra.mxu0 %v134
    %730 = vmatpush.msra.mxu0 %v128
    %731 = vmatpush.msra.mxu0 %v122
    %732 = vmatpush.msra.mxu0 %v116
    %733 = vmatpush.msra.mxu0 %v110
    %734 = vmatmul.f32.gmra.mxu0 %v657
    %v735 = vpop.f32.mrf.mxu0
    %v736 = vadd.f32 0.0, %v735
    %737 = vdwg.mxu0
    %738 = vmatpush.msra.mxu0 %v201
    %739 = vmatpush.msra.mxu0 %v195
    %740 = vmatpush.msra.mxu0 %v189
    %741 = vmatpush.msra.mxu0 %v183
    %742 = vmatpush.msra.mxu0 %v177
    %743 = vmatpush.msra.mxu0 %v171
    %744 = vmatpush.msra.mxu0 %v165
    %745 = vmatpush.msra.mxu0 %v159
    %746 = vmatpush.msra.mxu0 %v153
    %747 = vmatpush.msra.mxu0 %v147
    %748 = vmatpush.msra.mxu0 %v141
    %749 = vmatpush.msra.mxu0 %v135
    %750 = vmatpush.msra.mxu0 %v129
    %751 = vmatpush.msra.mxu0 %v123
    %752 = vmatpush.msra.mxu0 %v117
    %753 = vmatpush.msra.mxu0 %v111
    %754 = vmatmul.f32.gmra.mxu0 %v657
    %v755 = vpop.f32.mrf.mxu0
    %v756 = vadd.f32 0.0, %v755
    %757 = vdwg.mxu0
    %758 = vmatpush.msra.mxu0 %v202
    %759 = vmatpush.msra.mxu0 %v196
    %760 = vmatpush.msra.mxu0 %v190
    %761 = vmatpush.msra.mxu0 %v184
    %762 = vmatpush.msra.mxu0 %v178
    %763 = vmatpush.msra.mxu0 %v172
    %764 = vmatpush.msra.mxu0 %v166
    %765 = vmatpush.msra.mxu0 %v160
    %766 = vmatpush.msra.mxu0 %v154
    %767 = vmatpush.msra.mxu0 %v148
    %768 = vmatpush.msra.mxu0 %v142
    %769 = vmatpush.msra.mxu0 %v136
    %770 = vmatpush.msra.mxu0 %v130
    %771 = vmatpush.msra.mxu0 %v124
    %772 = vmatpush.msra.mxu0 %v118
    %773 = vmatpush.msra.mxu0 %v112
    %774 = vmatmul.f32.gmra.mxu0 %v657
    %v775 = vpop.f32.mrf.mxu0
    %v776 = vadd.f32 0.0, %v775
    %777 = vdwg.mxu0
    %778 = vmatpush.msra.mxu0 %v248
    %779 = vmatpush.msra.mxu0 %v245
    %780 = vmatpush.msra.mxu0 %v242
    %781 = vmatpush.msra.mxu0 %v239
    %782 = vmatpush.msra.mxu0 %v236
    %783 = vmatpush.msra.mxu0 %v233
    %784 = vmatpush.msra.mxu0 %v230
    %785 = vmatpush.msra.mxu0 %v227
    %786 = vmatpush.msra.mxu0 %v224
    %787 = vmatpush.msra.mxu0 %v221
    %788 = vmatpush.msra.mxu0 %v218
    %789 = vmatpush.msra.mxu0 %v215
    %790 = vmatpush.msra.mxu0 %v212
    %791 = vmatpush.msra.mxu0 %v209
    %792 = vmatpush.msra.mxu0 %v206
    %793 = vmatpush.msra.mxu0 %v203
    %794 = vmatmul.f32.gmra.mxu0 %v605
    %v795 = vpop.f32.mrf.mxu0
    %v796 = vadd.f32 0.0, %v795
    %797 = vdwg.mxu0
    %798 = vmatpush.msra.mxu0 %v249
    %799 = vmatpush.msra.mxu0 %v246
    %800 = vmatpush.msra.mxu0 %v243
    %801 = vmatpush.msra.mxu0 %v240
    %802 = vmatpush.msra.mxu0 %v237
    %803 = vmatpush.msra.mxu0 %v234
    %804 = vmatpush.msra.mxu0 %v231
    %805 = vmatpush.msra.mxu0 %v228
    %806 = vmatpush.msra.mxu0 %v225
    %807 = vmatpush.msra.mxu0 %v222
    %808 = vmatpush.msra.mxu0 %v219
    %809 = vmatpush.msra.mxu0 %v216
    %810 = vmatpush.msra.mxu0 %v213
    %811 = vmatpush.msra.mxu0 %v210
    %812 = vmatpush.msra.mxu0 %v207
    %813 = vmatpush.msra.mxu0 %v204
    %814 = vmatmul.f32.gmra.mxu0 %v605
    %v815 = vpop.f32.mrf.mxu0
    %v816 = vadd.f32 0.0, %v815
    %817 = vdwg.mxu0
    %818 = vmatpush.msra.mxu0 %v250
    %819 = vmatpush.msra.mxu0 %v247
    %820 = vmatpush.msra.mxu0 %v244
    %821 = vmatpush.msra.mxu0 %v241
    %822 = vmatpush.msra.mxu0 %v238
    %823 = vmatpush.msra.mxu0 %v235
    %824 = vmatpush.msra.mxu0 %v232
    %825 = vmatpush.msra.mxu0 %v229
    %826 = vmatpush.msra.mxu0 %v226
    %827 = vmatpush.msra.mxu0 %v223
    %828 = vmatpush.msra.mxu0 %v220
    %829 = vmatpush.msra.mxu0 %v217
    %830 = vmatpush.msra.mxu0 %v214
    %831 = vmatpush.msra.mxu0 %v211
    %832 = vmatpush.msra.mxu0 %v208
    %833 = vmatpush.msra.mxu0 %v205
    %834 = vmatmul.f32.gmra.mxu0 %v605
    %v835 = vpop.f32.mrf.mxu0
    %v836 = vadd.f32 0.0, %v835
    %837 = vdwg.mxu0
    %v838 = vadd.f32 %v676, %v796
    %v839 = vadd.f32 %v696, %v816
    %840 = vst [vmem:[#allocation1] ss:$2 sm:$0xff] %v254
    %v841 = vld.sshfl [vmem:[#allocation1] sm:$0xff pattern:$0x75316420]
    %v842 = vld.sshfl [vmem:[#allocation1 + $0x8] sm:$0xff pattern:$0x75316420]
    %v845 = vadd.f32 %v838, %v841
    %v846 = vadd.f32 %v839, %v842
    %v847 = vxor.u32 %v845, 2147483648
    %v848 = vxor.u32 %v846, 2147483648
    %v849 = vmul.f32 %v847, 1.442695
    %v850 = vpow.pop %v849
    %v851 = vmul.f32 %v848, 1.442695
    %v852 = vpow.pop %v851
    %v853 = vadd.f32 %v850, 1.0
    %v854 = vadd.f32 %v852, 1.0
    %v855 = vrcp.pop %v853
    %v856 = vmul.f32 %v853, %v855
    %v857 = vsub.f32 1.0, %v856
    %v858 = vmul.f32 %v855, %v857
    %v859 = vadd.f32 %v855, %v858
    %vm860 = vweird.f32 %v853
    %vm861 = vweird.f32 %v855
    %vm862 = vmor %vm860, %vm861
    %v863 = vsel %vm862, %v855, %v859
    %v864 = vand.u32 2147483647, %v853
    %vm865 = vcmp.eq.f32.partialorder %v864, 8.507059e+37
    %v866 = vand.u32 %v853, 2147483648
    %v867 = vor.u32 1.1754944e-38, %v866
    %v868 = vsel %vm865, %v867, %v863
    %v869 = vmul.f32 1.0, %v868
    %v870 = vrcp.pop %v854
    %v871 = vmul.f32 %v854, %v870
    %v872 = vsub.f32 1.0, %v871
    %v873 = vmul.f32 %v870, %v872
    %v874 = vadd.f32 %v870, %v873
    %vm875 = vweird.f32 %v854
    %vm876 = vweird.f32 %v870
    %vm877 = vmor %vm875, %vm876
    %v878 = vsel %vm877, %v870, %v874
    %v879 = vand.u32 2147483647, %v854
    %vm880 = vcmp.eq.f32.partialorder %v879, 8.507059e+37
    %v881 = vand.u32 %v854, 2147483648
    %v882 = vor.u32 1.1754944e-38, %v881
    %v883 = vsel %vm880, %v882, %v878
    %v884 = vmul.f32 1.0, %v883
    %v885 = vadd.f32 %v716, %v255
    %v886 = vadd.f32 %v836, %v256
    %v887 = vmul.f32 %v869, %v886
    %v888 = vadd.f32 %v885, %v887
    %v889 = vtanh.pop %v888
    %v890 = vsub.f32 %v605, %v889
    %v891 = vmul.f32 %v884, %v890
    %v892 = vadd.f32 %v889, %v891
    %893 = vst [vmem:[#allocation1] ss:$2 sm:$0xff] %v251
    %v894 = vld.sshfl [vmem:[#allocation1] sm:$0xff pattern:$0x75316420]
    %v895 = vld.sshfl [vmem:[#allocation1 + $0x8] sm:$0xff pattern:$0x75316420]
    %v898 = vadd.f32 %v736, %v894
    %v899 = vadd.f32 %v756, %v895
    %v900 = vxor.u32 %v898, 2147483648
    %v901 = vxor.u32 %v899, 2147483648
    %v902 = vmul.f32 %v900, 1.442695
    %v903 = vpow.pop %v902
    %v904 = vmul.f32 %v901, 1.442695
    %v905 = vpow.pop %v904
    %v906 = vadd.f32 %v903, 1.0
    %v907 = vadd.f32 %v905, 1.0
    %v908 = vrcp.pop %v906
    %v909 = vmul.f32 %v906, %v908
    %v910 = vsub.f32 1.0, %v909
    %v911 = vmul.f32 %v908, %v910
    %v912 = vadd.f32 %v908, %v911
    %vm913 = vweird.f32 %v906
    %vm914 = vweird.f32 %v908
    %vm915 = vmor %vm913, %vm914
    %v916 = vsel %vm915, %v908, %v912
    %v917 = vand.u32 2147483647, %v906
    %vm918 = vcmp.eq.f32.partialorder %v917, 8.507059e+37
    %v919 = vand.u32 %v906, 2147483648
    %v920 = vor.u32 1.1754944e-38, %v919
    %v921 = vsel %vm918, %v920, %v916
    %v922 = vmul.f32 1.0, %v921
    %v923 = vrcp.pop %v907
    %v924 = vmul.f32 %v907, %v923
    %v925 = vsub.f32 1.0, %v924
    %v926 = vmul.f32 %v923, %v925
    %v927 = vadd.f32 %v923, %v926
    %vm928 = vweird.f32 %v907
    %vm929 = vweird.f32 %v923
    %vm930 = vmor %vm928, %vm929
    %v931 = vsel %vm930, %v923, %v927
    %v932 = vand.u32 2147483647, %v907
    %vm933 = vcmp.eq.f32.partialorder %v932, 8.507059e+37
    %v934 = vand.u32 %v907, 2147483648
    %v935 = vor.u32 1.1754944e-38, %v934
    %v936 = vsel %vm933, %v935, %v931
    %v937 = vmul.f32 1.0, %v936
    %v938 = vadd.f32 %v776, %v253
    %v939 = vmul.f32 %v922, %v938
    %v940 = vadd.f32 %v252, %v939
    %v941 = vtanh.pop %v940
    %v942 = vsub.f32 %v657, %v941
    %v943 = vmul.f32 %v937, %v942
    %v944 = vadd.f32 %v941, %v943
    %945 = vmatpush.msra.mxu0 %v197
    %946 = vmatpush.msra.mxu0 %v191
    %947 = vmatpush.msra.mxu0 %v185
    %948 = vmatpush.msra.mxu0 %v179
    %949 = vmatpush.msra.mxu0 %v173
    %950 = vmatpush.msra.mxu0 %v167
    %951 = vmatpush.msra.mxu0 %v161
    %952 = vmatpush.msra.mxu0 %v155
    %953 = vmatpush.msra.mxu0 %v149
    %954 = vmatpush.msra.mxu0 %v143
    %955 = vmatpush.msra.mxu0 %v137
    %956 = vmatpush.msra.mxu0 %v131
    %957 = vmatpush.msra.mxu0 %v125
    %958 = vmatpush.msra.mxu0 %v119
    %959 = vmatpush.msra.mxu0 %v113
    %960 = vmatpush.msra.mxu0 %v107
    %961 = vmatmul.f32.gmra.mxu0 %v944
    %v962 = vpop.f32.mrf.mxu0
    %v963 = vadd.f32 0.0, %v962
    %964 = vdwg.mxu0
    %965 = vmatpush.msra.mxu0 %v198
    %966 = vmatpush.msra.mxu0 %v192
    %967 = vmatpush.msra.mxu0 %v186
    %968 = vmatpush.msra.mxu0 %v180
    %969 = vmatpush.msra.mxu0 %v174
    %970 = vmatpush.msra.mxu0 %v168
    %971 = vmatpush.msra.mxu0 %v162
    %972 = vmatpush.msra.mxu0 %v156
    %973 = vmatpush.msra.mxu0 %v150
    %974 = vmatpush.msra.mxu0 %v144
    %975 = vmatpush.msra.mxu0 %v138
    %976 = vmatpush.msra.mxu0 %v132
    %977 = vmatpush.msra.mxu0 %v126
    %978 = vmatpush.msra.mxu0 %v120
    %979 = vmatpush.msra.mxu0 %v114
    %980 = vmatpush.msra.mxu0 %v108
    %981 = vmatmul.f32.gmra.mxu0 %v944
    %v982 = vpop.f32.mrf.mxu0
    %v983 = vadd.f32 0.0, %v982
    %984 = vdwg.mxu0
    %985 = vmatpush.msra.mxu0 %v199
    %986 = vmatpush.msra.mxu0 %v193
    %987 = vmatpush.msra.mxu0 %v187
    %988 = vmatpush.msra.mxu0 %v181
    %989 = vmatpush.msra.mxu0 %v175
    %990 = vmatpush.msra.mxu0 %v169
    %991 = vmatpush.msra.mxu0 %v163
    %992 = vmatpush.msra.mxu0 %v157
    %993 = vmatpush.msra.mxu0 %v151
    %994 = vmatpush.msra.mxu0 %v145
    %995 = vmatpush.msra.mxu0 %v139
    %996 = vmatpush.msra.mxu0 %v133
    %997 = vmatpush.msra.mxu0 %v127
    %998 = vmatpush.msra.mxu0 %v121
    %999 = vmatpush.msra.mxu0 %v115
    %1000 = vmatpush.msra.mxu0 %v109
    %1001 = vmatmul.f32.gmra.mxu0 %v944
    %v1002 = vpop.f32.mrf.mxu0
    %v1003 = vadd.f32 0.0, %v1002
    %1004 = vdwg.mxu0
    %1005 = vmatpush.msra.mxu0 %v200
    %1006 = vmatpush.msra.mxu0 %v194
    %1007 = vmatpush.msra.mxu0 %v188
    %1008 = vmatpush.msra.mxu0 %v182
    %1009 = vmatpush.msra.mxu0 %v176
    %1010 = vmatpush.msra.mxu0 %v170
    %1011 = vmatpush.msra.mxu0 %v164
    %1012 = vmatpush.msra.mxu0 %v158
    %1013 = vmatpush.msra.mxu0 %v152
    %1014 = vmatpush.msra.mxu0 %v146
    %1015 = vmatpush.msra.mxu0 %v140
    %1016 = vmatpush.msra.mxu0 %v134
    %1017 = vmatpush.msra.mxu0 %v128
    %1018 = vmatpush.msra.mxu0 %v122
    %1019 = vmatpush.msra.mxu0 %v116
    %1020 = vmatpush.msra.mxu0 %v110
    %1021 = vmatmul.f32.gmra.mxu0 %v944
    %v1022 = vpop.f32.mrf.mxu0
    %v1023 = vadd.f32 0.0, %v1022
    %1024 = vdwg.mxu0
    %1025 = vmatpush.msra.mxu0 %v201
    %1026 = vmatpush.msra.mxu0 %v195
    %1027 = vmatpush.msra.mxu0 %v189
    %1028 = vmatpush.msra.mxu0 %v183
    %1029 = vmatpush.msra.mxu0 %v177
    %1030 = vmatpush.msra.mxu0 %v171
    %1031 = vmatpush.msra.mxu0 %v165
    %1032 = vmatpush.msra.mxu0 %v159
    %1033 = vmatpush.msra.mxu0 %v153
    %1034 = vmatpush.msra.mxu0 %v147
    %1035 = vmatpush.msra.mxu0 %v141
    %1036 = vmatpush.msra.mxu0 %v135
    %1037 = vmatpush.msra.mxu0 %v129
    %1038 = vmatpush.msra.mxu0 %v123
    %1039 = vmatpush.msra.mxu0 %v117
    %1040 = vmatpush.msra.mxu0 %v111
    %1041 = vmatmul.f32.gmra.mxu0 %v944
    %v1042 = vpop.f32.mrf.mxu0
    %v1043 = vadd.f32 0.0, %v1042
    %1044 = vdwg.mxu0
    %1045 = vmatpush.msra.mxu0 %v202
    %1046 = vmatpush.msra.mxu0 %v196
    %1047 = vmatpush.msra.mxu0 %v190
    %1048 = vmatpush.msra.mxu0 %v184
    %1049 = vmatpush.msra.mxu0 %v178
    %1050 = vmatpush.msra.mxu0 %v172
    %1051 = vmatpush.msra.mxu0 %v166
    %1052 = vmatpush.msra.mxu0 %v160
    %1053 = vmatpush.msra.mxu0 %v154
    %1054 = vmatpush.msra.mxu0 %v148
    %1055 = vmatpush.msra.mxu0 %v142
    %1056 = vmatpush.msra.mxu0 %v136
    %1057 = vmatpush.msra.mxu0 %v130
    %1058 = vmatpush.msra.mxu0 %v124
    %1059 = vmatpush.msra.mxu0 %v118
    %1060 = vmatpush.msra.mxu0 %v112
    %1061 = vmatmul.f32.gmra.mxu0 %v944
    %v1062 = vpop.f32.mrf.mxu0
    %v1063 = vadd.f32 0.0, %v1062
    %1064 = vdwg.mxu0
    %1065 = vmatpush.msra.mxu0 %v248
    %1066 = vmatpush.msra.mxu0 %v245
    %1067 = vmatpush.msra.mxu0 %v242
    %1068 = vmatpush.msra.mxu0 %v239
    %1069 = vmatpush.msra.mxu0 %v236
    %1070 = vmatpush.msra.mxu0 %v233
    %1071 = vmatpush.msra.mxu0 %v230
    %1072 = vmatpush.msra.mxu0 %v227
    %1073 = vmatpush.msra.mxu0 %v224
    %1074 = vmatpush.msra.mxu0 %v221
    %1075 = vmatpush.msra.mxu0 %v218
    %1076 = vmatpush.msra.mxu0 %v215
    %1077 = vmatpush.msra.mxu0 %v212
    %1078 = vmatpush.msra.mxu0 %v209
    %1079 = vmatpush.msra.mxu0 %v206
    %1080 = vmatpush.msra.mxu0 %v203
    %1081 = vmatmul.f32.gmra.mxu0 %v892
    %v1082 = vpop.f32.mrf.mxu0
    %v1083 = vadd.f32 0.0, %v1082
    %1084 = vdwg.mxu0
    %1085 = vmatpush.msra.mxu0 %v249
    %1086 = vmatpush.msra.mxu0 %v246
    %1087 = vmatpush.msra.mxu0 %v243
    %1088 = vmatpush.msra.mxu0 %v240
    %1089 = vmatpush.msra.mxu0 %v237
    %1090 = vmatpush.msra.mxu0 %v234
    %1091 = vmatpush.msra.mxu0 %v231
    %1092 = vmatpush.msra.mxu0 %v228
    %1093 = vmatpush.msra.mxu0 %v225
    %1094 = vmatpush.msra.mxu0 %v222
    %1095 = vmatpush.msra.mxu0 %v219
    %1096 = vmatpush.msra.mxu0 %v216
    %1097 = vmatpush.msra.mxu0 %v213
    %1098 = vmatpush.msra.mxu0 %v210
    %1099 = vmatpush.msra.mxu0 %v207
    %1100 = vmatpush.msra.mxu0 %v204
    %1101 = vmatmul.f32.gmra.mxu0 %v892
    %v1102 = vpop.f32.mrf.mxu0
    %v1103 = vadd.f32 0.0, %v1102
    %1104 = vdwg.mxu0
    %1105 = vmatpush.msra.mxu0 %v250
    %1106 = vmatpush.msra.mxu0 %v247
    %1107 = vmatpush.msra.mxu0 %v244
    %1108 = vmatpush.msra.mxu0 %v241
    %1109 = vmatpush.msra.mxu0 %v238
    %1110 = vmatpush.msra.mxu0 %v235
    %1111 = vmatpush.msra.mxu0 %v232
    %1112 = vmatpush.msra.mxu0 %v229
    %1113 = vmatpush.msra.mxu0 %v226
    %1114 = vmatpush.msra.mxu0 %v223
    %1115 = vmatpush.msra.mxu0 %v220
    %1116 = vmatpush.msra.mxu0 %v217
    %1117 = vmatpush.msra.mxu0 %v214
    %1118 = vmatpush.msra.mxu0 %v211
    %1119 = vmatpush.msra.mxu0 %v208
    %1120 = vmatpush.msra.mxu0 %v205
    %1121 = vmatmul.f32.gmra.mxu0 %v892
    %v1122 = vpop.f32.mrf.mxu0
    %v1123 = vadd.f32 0.0, %v1122
    %1124 = vdwg.mxu0
    %v1125 = vadd.f32 %v963, %v1083
    %v1126 = vadd.f32 %v983, %v1103
    %1127 = vst [vmem:[#allocation1] ss:$2 sm:$0xff] %v254
    %v1128 = vld.sshfl [vmem:[#allocation1] sm:$0xff pattern:$0x75316420]
    %v1129 = vld.sshfl [vmem:[#allocation1 + $0x8] sm:$0xff pattern:$0x75316420]
    %v1132 = vadd.f32 %v1125, %v1128
    %v1133 = vadd.f32 %v1126, %v1129
    %v1134 = vxor.u32 %v1132, 2147483648
    %v1135 = vxor.u32 %v1133, 2147483648
    %v1136 = vmul.f32 %v1134, 1.442695
    %v1137 = vpow.pop %v1136
    %v1138 = vmul.f32 %v1135, 1.442695
    %v1139 = vpow.pop %v1138
    %v1140 = vadd.f32 %v1137, 1.0
    %v1141 = vadd.f32 %v1139, 1.0
    %v1142 = vrcp.pop %v1140
    %v1143 = vmul.f32 %v1140, %v1142
    %v1144 = vsub.f32 1.0, %v1143
    %v1145 = vmul.f32 %v1142, %v1144
    %v1146 = vadd.f32 %v1142, %v1145
    %vm1147 = vweird.f32 %v1140
    %vm1148 = vweird.f32 %v1142
    %vm1149 = vmor %vm1147, %vm1148
    %v1150 = vsel %vm1149, %v1142, %v1146
    %v1151 = vand.u32 2147483647, %v1140
    %vm1152 = vcmp.eq.f32.partialorder %v1151, 8.507059e+37
    %v1153 = vand.u32 %v1140, 2147483648
    %v1154 = vor.u32 1.1754944e-38, %v1153
    %v1155 = vsel %vm1152, %v1154, %v1150
    %v1156 = vmul.f32 1.0, %v1155
    %v1157 = vrcp.pop %v1141
    %v1158 = vmul.f32 %v1141, %v1157
    %v1159 = vsub.f32 1.0, %v1158
    %v1160 = vmul.f32 %v1157, %v1159
    %v1161 = vadd.f32 %v1157, %v1160
    %vm1162 = vweird.f32 %v1141
    %vm1163 = vweird.f32 %v1157
    %vm1164 = vmor %vm1162, %vm1163
    %v1165 = vsel %vm1164, %v1157, %v1161
    %v1166 = vand.u32 2147483647, %v1141
    %vm1167 = vcmp.eq.f32.partialorder %v1166, 8.507059e+37
    %v1168 = vand.u32 %v1141, 2147483648
    %v1169 = vor.u32 1.1754944e-38, %v1168
    %v1170 = vsel %vm1167, %v1169, %v1165
    %v1171 = vmul.f32 1.0, %v1170
    %v1172 = vadd.f32 %v1003, %v255
    %v1173 = vadd.f32 %v1123, %v256
    %v1174 = vmul.f32 %v1156, %v1173
    %v1175 = vadd.f32 %v1172, %v1174
    %v1176 = vtanh.pop %v1175
    %v1177 = vsub.f32 %v892, %v1176
    %v1178 = vmul.f32 %v1171, %v1177
    %v1179 = vadd.f32 %v1176, %v1178
    %1180 = vst [vmem:[#allocation1] ss:$2 sm:$0xff] %v251
    %v1181 = vld.sshfl [vmem:[#allocation1] sm:$0xff pattern:$0x75316420]
    %v1182 = vld.sshfl [vmem:[#allocation1 + $0x8] sm:$0xff pattern:$0x75316420]
    %v1185 = vadd.f32 %v1023, %v1181
    %v1186 = vadd.f32 %v1043, %v1182
    %v1187 = vxor.u32 %v1185, 2147483648
    %v1188 = vxor.u32 %v1186, 2147483648
    %v1189 = vmul.f32 %v1187, 1.442695
    %v1190 = vpow.pop %v1189
    %v1191 = vmul.f32 %v1188, 1.442695
    %v1192 = vpow.pop %v1191
    %v1193 = vadd.f32 %v1190, 1.0
    %v1194 = vadd.f32 %v1192, 1.0
    %v1195 = vrcp.pop %v1193
    %v1196 = vmul.f32 %v1193, %v1195
    %v1197 = vsub.f32 1.0, %v1196
    %v1198 = vmul.f32 %v1195, %v1197
    %v1199 = vadd.f32 %v1195, %v1198
    %vm1200 = vweird.f32 %v1193
    %vm1201 = vweird.f32 %v1195
    %vm1202 = vmor %vm1200, %vm1201
    %v1203 = vsel %vm1202, %v1195, %v1199
    %v1204 = vand.u32 2147483647, %v1193
    %vm1205 = vcmp.eq.f32.partialorder %v1204, 8.507059e+37
    %v1206 = vand.u32 %v1193, 2147483648
    %v1207 = vor.u32 1.1754944e-38, %v1206
    %v1208 = vsel %vm1205, %v1207, %v1203
    %v1209 = vmul.f32 1.0, %v1208
    %v1210 = vrcp.pop %v1194
    %v1211 = vmul.f32 %v1194, %v1210
    %v1212 = vsub.f32 1.0, %v1211
    %v1213 = vmul.f32 %v1210, %v1212
    %v1214 = vadd.f32 %v1210, %v1213
    %vm1215 = vweird.f32 %v1194
    %vm1216 = vweird.f32 %v1210
    %vm1217 = vmor %vm1215, %vm1216
    %v1218 = vsel %vm1217, %v1210, %v1214
    %v1219 = vand.u32 2147483647, %v1194
    %vm1220 = vcmp.eq.f32.partialorder %v1219, 8.507059e+37
    %v1221 = vand.u32 %v1194, 2147483648
    %v1222 = vor.u32 1.1754944e-38, %v1221
    %v1223 = vsel %vm1220, %v1222, %v1218
    %v1224 = vmul.f32 1.0, %v1223
    %v1225 = vadd.f32 %v1063, %v253
    %v1226 = vmul.f32 %v1209, %v1225
    %v1227 = vadd.f32 %v252, %v1226
    %v1228 = vtanh.pop %v1227
    %v1229 = vsub.f32 %v944, %v1228
    %v1230 = vmul.f32 %v1224, %v1229
    %v1231 = vadd.f32 %v1228, %v1230
    %1232 = vmatpush.msra.mxu0 %v197
    %1233 = vmatpush.msra.mxu0 %v191
    %1234 = vmatpush.msra.mxu0 %v185
    %1235 = vmatpush.msra.mxu0 %v179
    %1236 = vmatpush.msra.mxu0 %v173
    %1237 = vmatpush.msra.mxu0 %v167
    %1238 = vmatpush.msra.mxu0 %v161
    %1239 = vmatpush.msra.mxu0 %v155
    %1240 = vmatpush.msra.mxu0 %v149
    %1241 = vmatpush.msra.mxu0 %v143
    %1242 = vmatpush.msra.mxu0 %v137
    %1243 = vmatpush.msra.mxu0 %v131
    %1244 = vmatpush.msra.mxu0 %v125
    %1245 = vmatpush.msra.mxu0 %v119
    %1246 = vmatpush.msra.mxu0 %v113
    %1247 = vmatpush.msra.mxu0 %v107
    %1248 = vmatmul.f32.gmra.mxu0 %v1231
    %v1249 = vpop.f32.mrf.mxu0
    %v1250 = vadd.f32 0.0, %v1249
    %1251 = vdwg.mxu0
    %1252 = vmatpush.msra.mxu0 %v198
    %1253 = vmatpush.msra.mxu0 %v192
    %1254 = vmatpush.msra.mxu0 %v186
    %1255 = vmatpush.msra.mxu0 %v180
    %1256 = vmatpush.msra.mxu0 %v174
    %1257 = vmatpush.msra.mxu0 %v168
    %1258 = vmatpush.msra.mxu0 %v162
    %1259 = vmatpush.msra.mxu0 %v156
    %1260 = vmatpush.msra.mxu0 %v150
    %1261 = vmatpush.msra.mxu0 %v144
    %1262 = vmatpush.msra.mxu0 %v138
    %1263 = vmatpush.msra.mxu0 %v132
    %1264 = vmatpush.msra.mxu0 %v126
    %1265 = vmatpush.msra.mxu0 %v120
    %1266 = vmatpush.msra.mxu0 %v114
    %1267 = vmatpush.msra.mxu0 %v108
    %1268 = vmatmul.f32.gmra.mxu0 %v1231
    %v1269 = vpop.f32.mrf.mxu0
    %v1270 = vadd.f32 0.0, %v1269
    %1271 = vdwg.mxu0
    %1272 = vmatpush.msra.mxu0 %v199
    %1273 = vmatpush.msra.mxu0 %v193
    %1274 = vmatpush.msra.mxu0 %v187
    %1275 = vmatpush.msra.mxu0 %v181
    %1276 = vmatpush.msra.mxu0 %v175
    %1277 = vmatpush.msra.mxu0 %v169
    %1278 = vmatpush.msra.mxu0 %v163
    %1279 = vmatpush.msra.mxu0 %v157
    %1280 = vmatpush.msra.mxu0 %v151
    %1281 = vmatpush.msra.mxu0 %v145
    %1282 = vmatpush.msra.mxu0 %v139
    %1283 = vmatpush.msra.mxu0 %v133
    %1284 = vmatpush.msra.mxu0 %v127
    %1285 = vmatpush.msra.mxu0 %v121
    %1286 = vmatpush.msra.mxu0 %v115
    %1287 = vmatpush.msra.mxu0 %v109
    %1288 = vmatmul.f32.gmra.mxu0 %v1231
    %v1289 = vpop.f32.mrf.mxu0
    %v1290 = vadd.f32 0.0, %v1289
    %1291 = vdwg.mxu0
    %1292 = vmatpush.msra.mxu0 %v200
    %1293 = vmatpush.msra.mxu0 %v194
    %1294 = vmatpush.msra.mxu0 %v188
    %1295 = vmatpush.msra.mxu0 %v182
    %1296 = vmatpush.msra.mxu0 %v176
    %1297 = vmatpush.msra.mxu0 %v170
    %1298 = vmatpush.msra.mxu0 %v164
    %1299 = vmatpush.msra.mxu0 %v158
    %1300 = vmatpush.msra.mxu0 %v152
    %1301 = vmatpush.msra.mxu0 %v146
    %1302 = vmatpush.msra.mxu0 %v140
    %1303 = vmatpush.msra.mxu0 %v134
    %1304 = vmatpush.msra.mxu0 %v128
    %1305 = vmatpush.msra.mxu0 %v122
    %1306 = vmatpush.msra.mxu0 %v116
    %1307 = vmatpush.msra.mxu0 %v110
    %1308 = vmatmul.f32.gmra.mxu0 %v1231
    %v1309 = vpop.f32.mrf.mxu0
    %v1310 = vadd.f32 0.0, %v1309
    %1311 = vdwg.mxu0
    %1312 = vmatpush.msra.mxu0 %v201
    %1313 = vmatpush.msra.mxu0 %v195
    %1314 = vmatpush.msra.mxu0 %v189
    %1315 = vmatpush.msra.mxu0 %v183
    %1316 = vmatpush.msra.mxu0 %v177
    %1317 = vmatpush.msra.mxu0 %v171
    %1318 = vmatpush.msra.mxu0 %v165
    %1319 = vmatpush.msra.mxu0 %v159
    %1320 = vmatpush.msra.mxu0 %v153
    %1321 = vmatpush.msra.mxu0 %v147
    %1322 = vmatpush.msra.mxu0 %v141
    %1323 = vmatpush.msra.mxu0 %v135
    %1324 = vmatpush.msra.mxu0 %v129
    %1325 = vmatpush.msra.mxu0 %v123
    %1326 = vmatpush.msra.mxu0 %v117
    %1327 = vmatpush.msra.mxu0 %v111
    %1328 = vmatmul.f32.gmra.mxu0 %v1231
    %v1329 = vpop.f32.mrf.mxu0
    %v1330 = vadd.f32 0.0, %v1329
    %1331 = vdwg.mxu0
    %1332 = vmatpush.msra.mxu0 %v202
    %1333 = vmatpush.msra.mxu0 %v196
    %1334 = vmatpush.msra.mxu0 %v190
    %1335 = vmatpush.msra.mxu0 %v184
    %1336 = vmatpush.msra.mxu0 %v178
    %1337 = vmatpush.msra.mxu0 %v172
    %1338 = vmatpush.msra.mxu0 %v166
    %1339 = vmatpush.msra.mxu0 %v160
    %1340 = vmatpush.msra.mxu0 %v154
    %1341 = vmatpush.msra.mxu0 %v148
    %1342 = vmatpush.msra.mxu0 %v142
    %1343 = vmatpush.msra.mxu0 %v136
    %1344 = vmatpush.msra.mxu0 %v130
    %1345 = vmatpush.msra.mxu0 %v124
    %1346 = vmatpush.msra.mxu0 %v118
    %1347 = vmatpush.msra.mxu0 %v112
    %1348 = vmatmul.f32.gmra.mxu0 %v1231
    %v1349 = vpop.f32.mrf.mxu0
    %v1350 = vadd.f32 0.0, %v1349
    %1351 = vdwg.mxu0
    %1352 = vmatpush.msra.mxu0 %v248
    %1353 = vmatpush.msra.mxu0 %v245
    %1354 = vmatpush.msra.mxu0 %v242
    %1355 = vmatpush.msra.mxu0 %v239
    %1356 = vmatpush.msra.mxu0 %v236
    %1357 = vmatpush.msra.mxu0 %v233
    %1358 = vmatpush.msra.mxu0 %v230
    %1359 = vmatpush.msra.mxu0 %v227
    %1360 = vmatpush.msra.mxu0 %v224
    %1361 = vmatpush.msra.mxu0 %v221
    %1362 = vmatpush.msra.mxu0 %v218
    %1363 = vmatpush.msra.mxu0 %v215
    %1364 = vmatpush.msra.mxu0 %v212
    %1365 = vmatpush.msra.mxu0 %v209
    %1366 = vmatpush.msra.mxu0 %v206
    %1367 = vmatpush.msra.mxu0 %v203
    %1368 = vmatmul.f32.gmra.mxu0 %v1179
    %v1369 = vpop.f32.mrf.mxu0
    %v1370 = vadd.f32 0.0, %v1369
    %1371 = vdwg.mxu0
    %1372 = vmatpush.msra.mxu0 %v249
    %1373 = vmatpush.msra.mxu0 %v246
    %1374 = vmatpush.msra.mxu0 %v243
    %1375 = vmatpush.msra.mxu0 %v240
    %1376 = vmatpush.msra.mxu0 %v237
    %1377 = vmatpush.msra.mxu0 %v234
    %1378 = vmatpush.msra.mxu0 %v231
    %1379 = vmatpush.msra.mxu0 %v228
    %1380 = vmatpush.msra.mxu0 %v225
    %1381 = vmatpush.msra.mxu0 %v222
    %1382 = vmatpush.msra.mxu0 %v219
    %1383 = vmatpush.msra.mxu0 %v216
    %1384 = vmatpush.msra.mxu0 %v213
    %1385 = vmatpush.msra.mxu0 %v210
    %1386 = vmatpush.msra.mxu0 %v207
    %1387 = vmatpush.msra.mxu0 %v204
    %1388 = vmatmul.f32.gmra.mxu0 %v1179
    %v1389 = vpop.f32.mrf.mxu0
    %v1390 = vadd.f32 0.0, %v1389
    %1391 = vdwg.mxu0
    %1392 = vmatpush.msra.mxu0 %v250
    %1393 = vmatpush.msra.mxu0 %v247
    %1394 = vmatpush.msra.mxu0 %v244
    %1395 = vmatpush.msra.mxu0 %v241
    %1396 = vmatpush.msra.mxu0 %v238
    %1397 = vmatpush.msra.mxu0 %v235
    %1398 = vmatpush.msra.mxu0 %v232
    %1399 = vmatpush.msra.mxu0 %v229
    %1400 = vmatpush.msra.mxu0 %v226
    %1401 = vmatpush.msra.mxu0 %v223
    %1402 = vmatpush.msra.mxu0 %v220
    %1403 = vmatpush.msra.mxu0 %v217
    %1404 = vmatpush.msra.mxu0 %v214
    %1405 = vmatpush.msra.mxu0 %v211
    %1406 = vmatpush.msra.mxu0 %v208
    %1407 = vmatpush.msra.mxu0 %v205
    %1408 = vmatmul.f32.gmra.mxu0 %v1179
    %v1409 = vpop.f32.mrf.mxu0
    %v1410 = vadd.f32 0.0, %v1409
    %1411 = vdwg.mxu0
    %v1412 = vadd.f32 %v1250, %v1370
    %v1413 = vadd.f32 %v1270, %v1390
    %1414 = vst [vmem:[#allocation1] ss:$2 sm:$0xff] %v254
    %v1415 = vld.sshfl [vmem:[#allocation1] sm:$0xff pattern:$0x75316420]
    %v1416 = vld.sshfl [vmem:[#allocation1 + $0x8] sm:$0xff pattern:$0x75316420]
    %v1419 = vadd.f32 %v1412, %v1415
    %v1420 = vadd.f32 %v1413, %v1416
    %v1421 = vxor.u32 %v1419, 2147483648
    %v1422 = vxor.u32 %v1420, 2147483648
    %v1423 = vmul.f32 %v1421, 1.442695
    %v1424 = vpow.pop %v1423
    %v1425 = vmul.f32 %v1422, 1.442695
    %v1426 = vpow.pop %v1425
    %v1427 = vadd.f32 %v1424, 1.0
    %v1428 = vadd.f32 %v1426, 1.0
    %v1429 = vrcp.pop %v1427
    %v1430 = vmul.f32 %v1427, %v1429
    %v1431 = vsub.f32 1.0, %v1430
    %v1432 = vmul.f32 %v1429, %v1431
    %v1433 = vadd.f32 %v1429, %v1432
    %vm1434 = vweird.f32 %v1427
    %vm1435 = vweird.f32 %v1429
    %vm1436 = vmor %vm1434, %vm1435
    %v1437 = vsel %vm1436, %v1429, %v1433
    %v1438 = vand.u32 2147483647, %v1427
    %vm1439 = vcmp.eq.f32.partialorder %v1438, 8.507059e+37
    %v1440 = vand.u32 %v1427, 2147483648
    %v1441 = vor.u32 1.1754944e-38, %v1440
    %v1442 = vsel %vm1439, %v1441, %v1437
    %v1443 = vmul.f32 1.0, %v1442
    %v1444 = vrcp.pop %v1428
    %v1445 = vmul.f32 %v1428, %v1444
    %v1446 = vsub.f32 1.0, %v1445
    %v1447 = vmul.f32 %v1444, %v1446
    %v1448 = vadd.f32 %v1444, %v1447
    %vm1449 = vweird.f32 %v1428
    %vm1450 = vweird.f32 %v1444
    %vm1451 = vmor %vm1449, %vm1450
    %v1452 = vsel %vm1451, %v1444, %v1448
    %v1453 = vand.u32 2147483647, %v1428
    %vm1454 = vcmp.eq.f32.partialorder %v1453, 8.507059e+37
    %v1455 = vand.u32 %v1428, 2147483648
    %v1456 = vor.u32 1.1754944e-38, %v1455
    %v1457 = vsel %vm1454, %v1456, %v1452
    %v1458 = vmul.f32 1.0, %v1457
    %v1459 = vadd.f32 %v1290, %v255
    %v1460 = vadd.f32 %v1410, %v256
    %v1461 = vmul.f32 %v1443, %v1460
    %v1462 = vadd.f32 %v1459, %v1461
    %v1463 = vtanh.pop %v1462
    %v1464 = vsub.f32 %v1179, %v1463
    %v1465 = vmul.f32 %v1458, %v1464
    %v1466 = vadd.f32 %v1463, %v1465
    %1467 = vst [vmem:[#allocation1] ss:$2 sm:$0xff] %v251
    %v1468 = vld.sshfl [vmem:[#allocation1] sm:$0xff pattern:$0x75316420]
    %v1469 = vld.sshfl [vmem:[#allocation1 + $0x8] sm:$0xff pattern:$0x75316420]
    %v1472 = vadd.f32 %v1310, %v1468
    %v1473 = vadd.f32 %v1330, %v1469
    %v1474 = vxor.u32 %v1472, 2147483648
    %v1475 = vxor.u32 %v1473, 2147483648
    %v1476 = vmul.f32 %v1474, 1.442695
    %v1477 = vpow.pop %v1476
    %v1478 = vmul.f32 %v1475, 1.442695
    %v1479 = vpow.pop %v1478
    %v1480 = vadd.f32 %v1477, 1.0
    %v1481 = vadd.f32 %v1479, 1.0
    %v1482 = vrcp.pop %v1480
    %v1483 = vmul.f32 %v1480, %v1482
    %v1484 = vsub.f32 1.0, %v1483
    %v1485 = vmul.f32 %v1482, %v1484
    %v1486 = vadd.f32 %v1482, %v1485
    %vm1487 = vweird.f32 %v1480
    %vm1488 = vweird.f32 %v1482
    %vm1489 = vmor %vm1487, %vm1488
    %v1490 = vsel %vm1489, %v1482, %v1486
    %v1491 = vand.u32 2147483647, %v1480
    %vm1492 = vcmp.eq.f32.partialorder %v1491, 8.507059e+37
    %v1493 = vand.u32 %v1480, 2147483648
    %v1494 = vor.u32 1.1754944e-38, %v1493
    %v1495 = vsel %vm1492, %v1494, %v1490
    %v1496 = vmul.f32 1.0, %v1495
    %v1497 = vrcp.pop %v1481
    %v1498 = vmul.f32 %v1481, %v1497
    %v1499 = vsub.f32 1.0, %v1498
    %v1500 = vmul.f32 %v1497, %v1499
    %v1501 = vadd.f32 %v1497, %v1500
    %vm1502 = vweird.f32 %v1481
    %vm1503 = vweird.f32 %v1497
    %vm1504 = vmor %vm1502, %vm1503
    %v1505 = vsel %vm1504, %v1497, %v1501
    %v1506 = vand.u32 2147483647, %v1481
    %vm1507 = vcmp.eq.f32.partialorder %v1506, 8.507059e+37
    %v1508 = vand.u32 %v1481, 2147483648
    %v1509 = vor.u32 1.1754944e-38, %v1508
    %v1510 = vsel %vm1507, %v1509, %v1505
    %v1511 = vmul.f32 1.0, %v1510
    %v1512 = vadd.f32 %v1350, %v253
    %v1513 = vmul.f32 %v1496, %v1512
    %v1514 = vadd.f32 %v252, %v1513
    %v1515 = vtanh.pop %v1514
    %v1516 = vsub.f32 %v1231, %v1515
    %v1517 = vmul.f32 %v1511, %v1516
    %v1518 = vadd.f32 %v1515, %v1517
    %1519 = vmatpush.msra.mxu0 %v197
    %1520 = vmatpush.msra.mxu0 %v191
    %1521 = vmatpush.msra.mxu0 %v185
    %1522 = vmatpush.msra.mxu0 %v179
    %1523 = vmatpush.msra.mxu0 %v173
    %1524 = vmatpush.msra.mxu0 %v167
    %1525 = vmatpush.msra.mxu0 %v161
    %1526 = vmatpush.msra.mxu0 %v155
    %1527 = vmatpush.msra.mxu0 %v149
    %1528 = vmatpush.msra.mxu0 %v143
    %1529 = vmatpush.msra.mxu0 %v137
    %1530 = vmatpush.msra.mxu0 %v131
    %1531 = vmatpush.msra.mxu0 %v125
    %1532 = vmatpush.msra.mxu0 %v119
    %1533 = vmatpush.msra.mxu0 %v113
    %1534 = vmatpush.msra.mxu0 %v107
    %1535 = vmatmul.f32.gmra.mxu0 %v1518
    %v1536 = vpop.f32.mrf.mxu0
    %v1537 = vadd.f32 0.0, %v1536
    %1538 = vdwg.mxu0
    %1539 = vmatpush.msra.mxu0 %v198
    %1540 = vmatpush.msra.mxu0 %v192
    %1541 = vmatpush.msra.mxu0 %v186
    %1542 = vmatpush.msra.mxu0 %v180
    %1543 = vmatpush.msra.mxu0 %v174
    %1544 = vmatpush.msra.mxu0 %v168
    %1545 = vmatpush.msra.mxu0 %v162
    %1546 = vmatpush.msra.mxu0 %v156
    %1547 = vmatpush.msra.mxu0 %v150
    %1548 = vmatpush.msra.mxu0 %v144
    %1549 = vmatpush.msra.mxu0 %v138
    %1550 = vmatpush.msra.mxu0 %v132
    %1551 = vmatpush.msra.mxu0 %v126
    %1552 = vmatpush.msra.mxu0 %v120
    %1553 = vmatpush.msra.mxu0 %v114
    %1554 = vmatpush.msra.mxu0 %v108
    %1555 = vmatmul.f32.gmra.mxu0 %v1518
    %v1556 = vpop.f32.mrf.mxu0
    %v1557 = vadd.f32 0.0, %v1556
    %1558 = vdwg.mxu0
    %1559 = vmatpush.msra.mxu0 %v199
    %1560 = vmatpush.msra.mxu0 %v193
    %1561 = vmatpush.msra.mxu0 %v187
    %1562 = vmatpush.msra.mxu0 %v181
    %1563 = vmatpush.msra.mxu0 %v175
    %1564 = vmatpush.msra.mxu0 %v169
    %1565 = vmatpush.msra.mxu0 %v163
    %1566 = vmatpush.msra.mxu0 %v157
    %1567 = vmatpush.msra.mxu0 %v151
    %1568 = vmatpush.msra.mxu0 %v145
    %1569 = vmatpush.msra.mxu0 %v139
    %1570 = vmatpush.msra.mxu0 %v133
    %1571 = vmatpush.msra.mxu0 %v127
    %1572 = vmatpush.msra.mxu0 %v121
    %1573 = vmatpush.msra.mxu0 %v115
    %1574 = vmatpush.msra.mxu0 %v109
    %1575 = vmatmul.f32.gmra.mxu0 %v1518
    %v1576 = vpop.f32.mrf.mxu0
    %v1577 = vadd.f32 0.0, %v1576
    %1578 = vdwg.mxu0
    %1579 = vmatpush.msra.mxu0 %v200
    %1580 = vmatpush.msra.mxu0 %v194
    %1581 = vmatpush.msra.mxu0 %v188
    %1582 = vmatpush.msra.mxu0 %v182
    %1583 = vmatpush.msra.mxu0 %v176
    %1584 = vmatpush.msra.mxu0 %v170
    %1585 = vmatpush.msra.mxu0 %v164
    %1586 = vmatpush.msra.mxu0 %v158
    %1587 = vmatpush.msra.mxu0 %v152
    %1588 = vmatpush.msra.mxu0 %v146
    %1589 = vmatpush.msra.mxu0 %v140
    %1590 = vmatpush.msra.mxu0 %v134
    %1591 = vmatpush.msra.mxu0 %v128
    %1592 = vmatpush.msra.mxu0 %v122
    %1593 = vmatpush.msra.mxu0 %v116
    %1594 = vmatpush.msra.mxu0 %v110
    %1595 = vmatmul.f32.gmra.mxu0 %v1518
    %v1596 = vpop.f32.mrf.mxu0
    %v1597 = vadd.f32 0.0, %v1596
    %1598 = vdwg.mxu0
    %1599 = vmatpush.msra.mxu0 %v201
    %1600 = vmatpush.msra.mxu0 %v195
    %1601 = vmatpush.msra.mxu0 %v189
    %1602 = vmatpush.msra.mxu0 %v183
    %1603 = vmatpush.msra.mxu0 %v177
    %1604 = vmatpush.msra.mxu0 %v171
    %1605 = vmatpush.msra.mxu0 %v165
    %1606 = vmatpush.msra.mxu0 %v159
    %1607 = vmatpush.msra.mxu0 %v153
    %1608 = vmatpush.msra.mxu0 %v147
    %1609 = vmatpush.msra.mxu0 %v141
    %1610 = vmatpush.msra.mxu0 %v135
    %1611 = vmatpush.msra.mxu0 %v129
    %1612 = vmatpush.msra.mxu0 %v123
    %1613 = vmatpush.msra.mxu0 %v117
    %1614 = vmatpush.msra.mxu0 %v111
    %1615 = vmatmul.f32.gmra.mxu0 %v1518
    %v1616 = vpop.f32.mrf.mxu0
    %v1617 = vadd.f32 0.0, %v1616
    %1618 = vdwg.mxu0
    %1619 = vmatpush.msra.mxu0 %v202
    %1620 = vmatpush.msra.mxu0 %v196
    %1621 = vmatpush.msra.mxu0 %v190
    %1622 = vmatpush.msra.mxu0 %v184
    %1623 = vmatpush.msra.mxu0 %v178
    %1624 = vmatpush.msra.mxu0 %v172
    %1625 = vmatpush.msra.mxu0 %v166
    %1626 = vmatpush.msra.mxu0 %v160
    %1627 = vmatpush.msra.mxu0 %v154
    %1628 = vmatpush.msra.mxu0 %v148
    %1629 = vmatpush.msra.mxu0 %v142
    %1630 = vmatpush.msra.mxu0 %v136
    %1631 = vmatpush.msra.mxu0 %v130
    %1632 = vmatpush.msra.mxu0 %v124
    %1633 = vmatpush.msra.mxu0 %v118
    %1634 = vmatpush.msra.mxu0 %v112
    %1635 = vmatmul.f32.gmra.mxu0 %v1518
    %v1636 = vpop.f32.mrf.mxu0
    %v1637 = vadd.f32 0.0, %v1636
    %1638 = vdwg.mxu0
    %1639 = vmatpush.msra.mxu0 %v248
    %1640 = vmatpush.msra.mxu0 %v245
    %1641 = vmatpush.msra.mxu0 %v242
    %1642 = vmatpush.msra.mxu0 %v239
    %1643 = vmatpush.msra.mxu0 %v236
    %1644 = vmatpush.msra.mxu0 %v233
    %1645 = vmatpush.msra.mxu0 %v230
    %1646 = vmatpush.msra.mxu0 %v227
    %1647 = vmatpush.msra.mxu0 %v224
    %1648 = vmatpush.msra.mxu0 %v221
    %1649 = vmatpush.msra.mxu0 %v218
    %1650 = vmatpush.msra.mxu0 %v215
    %1651 = vmatpush.msra.mxu0 %v212
    %1652 = vmatpush.msra.mxu0 %v209
    %1653 = vmatpush.msra.mxu0 %v206
    %1654 = vmatpush.msra.mxu0 %v203
    %1655 = vmatmul.f32.gmra.mxu0 %v1466
    %v1656 = vpop.f32.mrf.mxu0
    %v1657 = vadd.f32 0.0, %v1656
    %1658 = vdwg.mxu0
    %1659 = vmatpush.msra.mxu0 %v249
    %1660 = vmatpush.msra.mxu0 %v246
    %1661 = vmatpush.msra.mxu0 %v243
    %1662 = vmatpush.msra.mxu0 %v240
    %1663 = vmatpush.msra.mxu0 %v237
    %1664 = vmatpush.msra.mxu0 %v234
    %1665 = vmatpush.msra.mxu0 %v231
    %1666 = vmatpush.msra.mxu0 %v228
    %1667 = vmatpush.msra.mxu0 %v225
    %1668 = vmatpush.msra.mxu0 %v222
    %1669 = vmatpush.msra.mxu0 %v219
    %1670 = vmatpush.msra.mxu0 %v216
    %1671 = vmatpush.msra.mxu0 %v213
    %1672 = vmatpush.msra.mxu0 %v210
    %1673 = vmatpush.msra.mxu0 %v207
    %1674 = vmatpush.msra.mxu0 %v204
    %1675 = vmatmul.f32.gmra.mxu0 %v1466
    %v1676 = vpop.f32.mrf.mxu0
    %v1677 = vadd.f32 0.0, %v1676
    %1678 = vdwg.mxu0
    %1679 = vmatpush.msra.mxu0 %v250
    %1680 = vmatpush.msra.mxu0 %v247
    %1681 = vmatpush.msra.mxu0 %v244
    %1682 = vmatpush.msra.mxu0 %v241
    %1683 = vmatpush.msra.mxu0 %v238
    %1684 = vmatpush.msra.mxu0 %v235
    %1685 = vmatpush.msra.mxu0 %v232
    %1686 = vmatpush.msra.mxu0 %v229
    %1687 = vmatpush.msra.mxu0 %v226
    %1688 = vmatpush.msra.mxu0 %v223
    %1689 = vmatpush.msra.mxu0 %v220
    %1690 = vmatpush.msra.mxu0 %v217
    %1691 = vmatpush.msra.mxu0 %v214
    %1692 = vmatpush.msra.mxu0 %v211
    %1693 = vmatpush.msra.mxu0 %v208
    %1694 = vmatpush.msra.mxu0 %v205
    %1695 = vmatmul.f32.gmra.mxu0 %v1466
    %v1696 = vpop.f32.mrf.mxu0
    %v1697 = vadd.f32 0.0, %v1696
    %1698 = vdwg.mxu0
    %v1699 = vadd.f32 %v1537, %v1657
    %v1700 = vadd.f32 %v1557, %v1677
    %1701 = vst [vmem:[#allocation1] ss:$2 sm:$0xff] %v254
    %v1702 = vld.sshfl [vmem:[#allocation1] sm:$0xff pattern:$0x75316420]
    %v1703 = vld.sshfl [vmem:[#allocation1 + $0x8] sm:$0xff pattern:$0x75316420]
    %v1706 = vadd.f32 %v1699, %v1702
    %v1707 = vadd.f32 %v1700, %v1703
    %v1708 = vxor.u32 %v1706, 2147483648
    %v1709 = vxor.u32 %v1707, 2147483648
    %v1710 = vmul.f32 %v1708, 1.442695
    %v1711 = vpow.pop %v1710
    %v1712 = vmul.f32 %v1709, 1.442695
    %v1713 = vpow.pop %v1712
    %v1714 = vadd.f32 %v1711, 1.0
    %v1715 = vadd.f32 %v1713, 1.0
    %v1716 = vrcp.pop %v1714
    %v1717 = vmul.f32 %v1714, %v1716
    %v1718 = vsub.f32 1.0, %v1717
    %v1719 = vmul.f32 %v1716, %v1718
    %v1720 = vadd.f32 %v1716, %v1719
    %vm1721 = vweird.f32 %v1714
    %vm1722 = vweird.f32 %v1716
    %vm1723 = vmor %vm1721, %vm1722
    %v1724 = vsel %vm1723, %v1716, %v1720
    %v1725 = vand.u32 2147483647, %v1714
    %vm1726 = vcmp.eq.f32.partialorder %v1725, 8.507059e+37
    %v1727 = vand.u32 %v1714, 2147483648
    %v1728 = vor.u32 1.1754944e-38, %v1727
    %v1729 = vsel %vm1726, %v1728, %v1724
    %v1730 = vmul.f32 1.0, %v1729
    %v1731 = vrcp.pop %v1715
    %v1732 = vmul.f32 %v1715, %v1731
    %v1733 = vsub.f32 1.0, %v1732
    %v1734 = vmul.f32 %v1731, %v1733
    %v1735 = vadd.f32 %v1731, %v1734
    %vm1736 = vweird.f32 %v1715
    %vm1737 = vweird.f32 %v1731
    %vm1738 = vmor %vm1736, %vm1737
    %v1739 = vsel %vm1738, %v1731, %v1735
    %v1740 = vand.u32 2147483647, %v1715
    %vm1741 = vcmp.eq.f32.partialorder %v1740, 8.507059e+37
    %v1742 = vand.u32 %v1715, 2147483648
    %v1743 = vor.u32 1.1754944e-38, %v1742
    %v1744 = vsel %vm1741, %v1743, %v1739
    %v1745 = vmul.f32 1.0, %v1744
    %v1746 = vadd.f32 %v1577, %v255
    %v1747 = vadd.f32 %v1697, %v256
    %v1748 = vmul.f32 %v1730, %v1747
    %v1749 = vadd.f32 %v1746, %v1748
    %v1750 = vtanh.pop %v1749
    %v1751 = vsub.f32 %v1466, %v1750
    %v1752 = vmul.f32 %v1745, %v1751
    %v1753 = vadd.f32 %v1750, %v1752
    %1754 = vst [vmem:[#allocation1] ss:$2 sm:$0xff] %v251
    %v1755 = vld.sshfl [vmem:[#allocation1] sm:$0xff pattern:$0x75316420]
    %v1756 = vld.sshfl [vmem:[#allocation1 + $0x8] sm:$0xff pattern:$0x75316420]
    %v1759 = vadd.f32 %v1597, %v1755
    %v1760 = vadd.f32 %v1617, %v1756
    %v1761 = vxor.u32 %v1759, 2147483648
    %v1762 = vxor.u32 %v1760, 2147483648
    %v1763 = vmul.f32 %v1761, 1.442695
    %v1764 = vpow.pop %v1763
    %v1765 = vmul.f32 %v1762, 1.442695
    %v1766 = vpow.pop %v1765
    %v1767 = vadd.f32 %v1764, 1.0
    %v1768 = vadd.f32 %v1766, 1.0
    %v1769 = vrcp.pop %v1767
    %v1770 = vmul.f32 %v1767, %v1769
    %v1771 = vsub.f32 1.0, %v1770
    %v1772 = vmul.f32 %v1769, %v1771
    %v1773 = vadd.f32 %v1769, %v1772
    %vm1774 = vweird.f32 %v1767
    %vm1775 = vweird.f32 %v1769
    %vm1776 = vmor %vm1774, %vm1775
    %v1777 = vsel %vm1776, %v1769, %v1773
    %v1778 = vand.u32 2147483647, %v1767
    %vm1779 = vcmp.eq.f32.partialorder %v1778, 8.507059e+37
    %v1780 = vand.u32 %v1767, 2147483648
    %v1781 = vor.u32 1.1754944e-38, %v1780
    %v1782 = vsel %vm1779, %v1781, %v1777
    %v1783 = vmul.f32 1.0, %v1782
    %v1784 = vrcp.pop %v1768
    %v1785 = vmul.f32 %v1768, %v1784
    %v1786 = vsub.f32 1.0, %v1785
    %v1787 = vmul.f32 %v1784, %v1786
    %v1788 = vadd.f32 %v1784, %v1787
    %vm1789 = vweird.f32 %v1768
    %vm1790 = vweird.f32 %v1784
    %vm1791 = vmor %vm1789, %vm1790
    %v1792 = vsel %vm1791, %v1784, %v1788
    %v1793 = vand.u32 2147483647, %v1768
    %vm1794 = vcmp.eq.f32.partialorder %v1793, 8.507059e+37
    %v1795 = vand.u32 %v1768, 2147483648
    %v1796 = vor.u32 1.1754944e-38, %v1795
    %v1797 = vsel %vm1794, %v1796, %v1792
    %v1798 = vmul.f32 1.0, %v1797
    %v1799 = vadd.f32 %v1637, %v253
    %v1800 = vmul.f32 %v1783, %v1799
    %v1801 = vadd.f32 %v252, %v1800
    %v1802 = vtanh.pop %v1801
    %v1803 = vsub.f32 %v1518, %v1802
    %v1804 = vmul.f32 %v1798, %v1803
    %v1805 = vadd.f32 %v1802, %v1804
    %1806 = vmatpush.msra.mxu0 %v197
    %1807 = vmatpush.msra.mxu0 %v191
    %1808 = vmatpush.msra.mxu0 %v185
    %1809 = vmatpush.msra.mxu0 %v179
    %1810 = vmatpush.msra.mxu0 %v173
    %1811 = vmatpush.msra.mxu0 %v167
    %1812 = vmatpush.msra.mxu0 %v161
    %1813 = vmatpush.msra.mxu0 %v155
    %1814 = vmatpush.msra.mxu0 %v149
    %1815 = vmatpush.msra.mxu0 %v143
    %1816 = vmatpush.msra.mxu0 %v137
    %1817 = vmatpush.msra.mxu0 %v131
    %1818 = vmatpush.msra.mxu0 %v125
    %1819 = vmatpush.msra.mxu0 %v119
    %1820 = vmatpush.msra.mxu0 %v113
    %1821 = vmatpush.msra.mxu0 %v107
    %1822 = vmatmul.f32.gmra.mxu0 %v1805
    %v1823 = vpop.f32.mrf.mxu0
    %v1824 = vadd.f32 0.0, %v1823
    %1825 = vdwg.mxu0
    %1826 = vmatpush.msra.mxu0 %v198
    %1827 = vmatpush.msra.mxu0 %v192
    %1828 = vmatpush.msra.mxu0 %v186
    %1829 = vmatpush.msra.mxu0 %v180
    %1830 = vmatpush.msra.mxu0 %v174
    %1831 = vmatpush.msra.mxu0 %v168
    %1832 = vmatpush.msra.mxu0 %v162
    %1833 = vmatpush.msra.mxu0 %v156
    %1834 = vmatpush.msra.mxu0 %v150
    %1835 = vmatpush.msra.mxu0 %v144
    %1836 = vmatpush.msra.mxu0 %v138
    %1837 = vmatpush.msra.mxu0 %v132
    %1838 = vmatpush.msra.mxu0 %v126
    %1839 = vmatpush.msra.mxu0 %v120
    %1840 = vmatpush.msra.mxu0 %v114
    %1841 = vmatpush.msra.mxu0 %v108
    %1842 = vmatmul.f32.gmra.mxu0 %v1805
    %v1843 = vpop.f32.mrf.mxu0
    %v1844 = vadd.f32 0.0, %v1843
    %1845 = vdwg.mxu0
    %1846 = vmatpush.msra.mxu0 %v199
    %1847 = vmatpush.msra.mxu0 %v193
    %1848 = vmatpush.msra.mxu0 %v187
    %1849 = vmatpush.msra.mxu0 %v181
    %1850 = vmatpush.msra.mxu0 %v175
    %1851 = vmatpush.msra.mxu0 %v169
    %1852 = vmatpush.msra.mxu0 %v163
    %1853 = vmatpush.msra.mxu0 %v157
    %1854 = vmatpush.msra.mxu0 %v151
    %1855 = vmatpush.msra.mxu0 %v145
    %1856 = vmatpush.msra.mxu0 %v139
    %1857 = vmatpush.msra.mxu0 %v133
    %1858 = vmatpush.msra.mxu0 %v127
    %1859 = vmatpush.msra.mxu0 %v121
    %1860 = vmatpush.msra.mxu0 %v115
    %1861 = vmatpush.msra.mxu0 %v109
    %1862 = vmatmul.f32.gmra.mxu0 %v1805
    %v1863 = vpop.f32.mrf.mxu0
    %v1864 = vadd.f32 0.0, %v1863
    %1865 = vdwg.mxu0
    %1866 = vmatpush.msra.mxu0 %v200
    %1867 = vmatpush.msra.mxu0 %v194
    %1868 = vmatpush.msra.mxu0 %v188
    %1869 = vmatpush.msra.mxu0 %v182
    %1870 = vmatpush.msra.mxu0 %v176
    %1871 = vmatpush.msra.mxu0 %v170
    %1872 = vmatpush.msra.mxu0 %v164
    %1873 = vmatpush.msra.mxu0 %v158
    %1874 = vmatpush.msra.mxu0 %v152
    %1875 = vmatpush.msra.mxu0 %v146
    %1876 = vmatpush.msra.mxu0 %v140
    %1877 = vmatpush.msra.mxu0 %v134
    %1878 = vmatpush.msra.mxu0 %v128
    %1879 = vmatpush.msra.mxu0 %v122
    %1880 = vmatpush.msra.mxu0 %v116
    %1881 = vmatpush.msra.mxu0 %v110
    %1882 = vmatmul.f32.gmra.mxu0 %v1805
    %v1883 = vpop.f32.mrf.mxu0
    %v1884 = vadd.f32 0.0, %v1883
    %1885 = vdwg.mxu0
    %1886 = vmatpush.msra.mxu0 %v201
    %1887 = vmatpush.msra.mxu0 %v195
    %1888 = vmatpush.msra.mxu0 %v189
    %1889 = vmatpush.msra.mxu0 %v183
    %1890 = vmatpush.msra.mxu0 %v177
    %1891 = vmatpush.msra.mxu0 %v171
    %1892 = vmatpush.msra.mxu0 %v165
    %1893 = vmatpush.msra.mxu0 %v159
    %1894 = vmatpush.msra.mxu0 %v153
    %1895 = vmatpush.msra.mxu0 %v147
    %1896 = vmatpush.msra.mxu0 %v141
    %1897 = vmatpush.msra.mxu0 %v135
    %1898 = vmatpush.msra.mxu0 %v129
    %1899 = vmatpush.msra.mxu0 %v123
    %1900 = vmatpush.msra.mxu0 %v117
    %1901 = vmatpush.msra.mxu0 %v111
    %1902 = vmatmul.f32.gmra.mxu0 %v1805
    %v1903 = vpop.f32.mrf.mxu0
    %v1904 = vadd.f32 0.0, %v1903
    %1905 = vdwg.mxu0
    %1906 = vmatpush.msra.mxu0 %v202
    %1907 = vmatpush.msra.mxu0 %v196
    %1908 = vmatpush.msra.mxu0 %v190
    %1909 = vmatpush.msra.mxu0 %v184
    %1910 = vmatpush.msra.mxu0 %v178
    %1911 = vmatpush.msra.mxu0 %v172
    %1912 = vmatpush.msra.mxu0 %v166
    %1913 = vmatpush.msra.mxu0 %v160
    %1914 = vmatpush.msra.mxu0 %v154
    %1915 = vmatpush.msra.mxu0 %v148
    %1916 = vmatpush.msra.mxu0 %v142
    %1917 = vmatpush.msra.mxu0 %v136
    %1918 = vmatpush.msra.mxu0 %v130
    %1919 = vmatpush.msra.mxu0 %v124
    %1920 = vmatpush.msra.mxu0 %v118
    %1921 = vmatpush.msra.mxu0 %v112
    %1922 = vmatmul.f32.gmra.mxu0 %v1805
    %v1923 = vpop.f32.mrf.mxu0
    %v1924 = vadd.f32 0.0, %v1923
    %1925 = vdwg.mxu0
    %1926 = vmatpush.msra.mxu0 %v248
    %1927 = vmatpush.msra.mxu0 %v245
    %1928 = vmatpush.msra.mxu0 %v242
    %1929 = vmatpush.msra.mxu0 %v239
    %1930 = vmatpush.msra.mxu0 %v236
    %1931 = vmatpush.msra.mxu0 %v233
    %1932 = vmatpush.msra.mxu0 %v230
    %1933 = vmatpush.msra.mxu0 %v227
    %1934 = vmatpush.msra.mxu0 %v224
    %1935 = vmatpush.msra.mxu0 %v221
    %1936 = vmatpush.msra.mxu0 %v218
    %1937 = vmatpush.msra.mxu0 %v215
    %1938 = vmatpush.msra.mxu0 %v212
    %1939 = vmatpush.msra.mxu0 %v209
    %1940 = vmatpush.msra.mxu0 %v206
    %1941 = vmatpush.msra.mxu0 %v203
    %1942 = vmatmul.f32.gmra.mxu0 %v1753
    %v1943 = vpop.f32.mrf.mxu0
    %v1944 = vadd.f32 0.0, %v1943
    %1945 = vdwg.mxu0
    %1946 = vmatpush.msra.mxu0 %v249
    %1947 = vmatpush.msra.mxu0 %v246
    %1948 = vmatpush.msra.mxu0 %v243
    %1949 = vmatpush.msra.mxu0 %v240
    %1950 = vmatpush.msra.mxu0 %v237
    %1951 = vmatpush.msra.mxu0 %v234
    %1952 = vmatpush.msra.mxu0 %v231
    %1953 = vmatpush.msra.mxu0 %v228
    %1954 = vmatpush.msra.mxu0 %v225
    %1955 = vmatpush.msra.mxu0 %v222
    %1956 = vmatpush.msra.mxu0 %v219
    %1957 = vmatpush.msra.mxu0 %v216
    %1958 = vmatpush.msra.mxu0 %v213
    %1959 = vmatpush.msra.mxu0 %v210
    %1960 = vmatpush.msra.mxu0 %v207
    %1961 = vmatpush.msra.mxu0 %v204
    %1962 = vmatmul.f32.gmra.mxu0 %v1753
    %v1963 = vpop.f32.mrf.mxu0
    %v1964 = vadd.f32 0.0, %v1963
    %1965 = vdwg.mxu0
    %1966 = vmatpush.msra.mxu0 %v250
    %1967 = vmatpush.msra.mxu0 %v247
    %1968 = vmatpush.msra.mxu0 %v244
    %1969 = vmatpush.msra.mxu0 %v241
    %1970 = vmatpush.msra.mxu0 %v238
    %1971 = vmatpush.msra.mxu0 %v235
    %1972 = vmatpush.msra.mxu0 %v232
    %1973 = vmatpush.msra.mxu0 %v229
    %1974 = vmatpush.msra.mxu0 %v226
    %1975 = vmatpush.msra.mxu0 %v223
    %1976 = vmatpush.msra.mxu0 %v220
    %1977 = vmatpush.msra.mxu0 %v217
    %1978 = vmatpush.msra.mxu0 %v214
    %1979 = vmatpush.msra.mxu0 %v211
    %1980 = vmatpush.msra.mxu0 %v208
    %1981 = vmatpush.msra.mxu0 %v205
    %1982 = vmatmul.f32.gmra.mxu0 %v1753
    %v1983 = vpop.f32.mrf.mxu0
    %v1984 = vadd.f32 0.0, %v1983
    %1985 = vdwg.mxu0
    %v1986 = vadd.f32 %v1824, %v1944
    %v1987 = vadd.f32 %v1844, %v1964
    %1988 = vst [vmem:[#allocation1] ss:$2 sm:$0xff] %v254
    %v1989 = vld.sshfl [vmem:[#allocation1] sm:$0xff pattern:$0x75316420]
    %v1990 = vld.sshfl [vmem:[#allocation1 + $0x8] sm:$0xff pattern:$0x75316420]
    %v1993 = vadd.f32 %v1986, %v1989
    %v1994 = vadd.f32 %v1987, %v1990
    %v1995 = vxor.u32 %v1993, 2147483648
    %v1996 = vxor.u32 %v1994, 2147483648
    %v1997 = vmul.f32 %v1995, 1.442695
    %v1998 = vpow.pop %v1997
    %v1999 = vmul.f32 %v1996, 1.442695
    %v2000 = vpow.pop %v1999
    %v2001 = vadd.f32 %v1998, 1.0
    %v2002 = vadd.f32 %v2000, 1.0
    %v2003 = vrcp.pop %v2001
    %v2004 = vmul.f32 %v2001, %v2003
    %v2005 = vsub.f32 1.0, %v2004
    %v2006 = vmul.f32 %v2003, %v2005
    %v2007 = vadd.f32 %v2003, %v2006
    %vm2008 = vweird.f32 %v2001
    %vm2009 = vweird.f32 %v2003
    %vm2010 = vmor %vm2008, %vm2009
    %v2011 = vsel %vm2010, %v2003, %v2007
    %v2012 = vand.u32 2147483647, %v2001
    %vm2013 = vcmp.eq.f32.partialorder %v2012, 8.507059e+37
    %v2014 = vand.u32 %v2001, 2147483648
    %v2015 = vor.u32 1.1754944e-38, %v2014
    %v2016 = vsel %vm2013, %v2015, %v2011
    %v2017 = vmul.f32 1.0, %v2016
    %v2018 = vrcp.pop %v2002
    %v2019 = vmul.f32 %v2002, %v2018
    %v2020 = vsub.f32 1.0, %v2019
    %v2021 = vmul.f32 %v2018, %v2020
    %v2022 = vadd.f32 %v2018, %v2021
    %vm2023 = vweird.f32 %v2002
    %vm2024 = vweird.f32 %v2018
    %vm2025 = vmor %vm2023, %vm2024
    %v2026 = vsel %vm2025, %v2018, %v2022
    %v2027 = vand.u32 2147483647, %v2002
    %vm2028 = vcmp.eq.f32.partialorder %v2027, 8.507059e+37
    %v2029 = vand.u32 %v2002, 2147483648
    %v2030 = vor.u32 1.1754944e-38, %v2029
    %v2031 = vsel %vm2028, %v2030, %v2026
    %v2032 = vmul.f32 1.0, %v2031
    %v2033 = vadd.f32 %v1864, %v255
    %v2034 = vadd.f32 %v1984, %v256
    %v2035 = vmul.f32 %v2017, %v2034
    %v2036 = vadd.f32 %v2033, %v2035
    %v2037 = vtanh.pop %v2036
    %v2038 = vsub.f32 %v1753, %v2037
    %v2039 = vmul.f32 %v2032, %v2038
    %v2040 = vadd.f32 %v2037, %v2039
    %2041 = vst [vmem:[#allocation1] ss:$2 sm:$0xff] %v251
    %v2042 = vld.sshfl [vmem:[#allocation1] sm:$0xff pattern:$0x75316420]
    %v2043 = vld.sshfl [vmem:[#allocation1 + $0x8] sm:$0xff pattern:$0x75316420]
    %v2046 = vadd.f32 %v1884, %v2042
    %v2047 = vadd.f32 %v1904, %v2043
    %v2048 = vxor.u32 %v2046, 2147483648
    %v2049 = vxor.u32 %v2047, 2147483648
    %v2050 = vmul.f32 %v2048, 1.442695
    %v2051 = vpow.pop %v2050
    %v2052 = vmul.f32 %v2049, 1.442695
    %v2053 = vpow.pop %v2052
    %v2054 = vadd.f32 %v2051, 1.0
    %v2055 = vadd.f32 %v2053, 1.0
    %v2056 = vrcp.pop %v2054
    %v2057 = vmul.f32 %v2054, %v2056
    %v2058 = vsub.f32 1.0, %v2057
    %v2059 = vmul.f32 %v2056, %v2058
    %v2060 = vadd.f32 %v2056, %v2059
    %vm2061 = vweird.f32 %v2054
    %vm2062 = vweird.f32 %v2056
    %vm2063 = vmor %vm2061, %vm2062
    %v2064 = vsel %vm2063, %v2056, %v2060
    %v2065 = vand.u32 2147483647, %v2054
    %vm2066 = vcmp.eq.f32.partialorder %v2065, 8.507059e+37
    %v2067 = vand.u32 %v2054, 2147483648
    %v2068 = vor.u32 1.1754944e-38, %v2067
    %v2069 = vsel %vm2066, %v2068, %v2064
    %v2070 = vmul.f32 1.0, %v2069
    %v2071 = vrcp.pop %v2055
    %v2072 = vmul.f32 %v2055, %v2071
    %v2073 = vsub.f32 1.0, %v2072
    %v2074 = vmul.f32 %v2071, %v2073
    %v2075 = vadd.f32 %v2071, %v2074
    %vm2076 = vweird.f32 %v2055
    %vm2077 = vweird.f32 %v2071
    %vm2078 = vmor %vm2076, %vm2077
    %v2079 = vsel %vm2078, %v2071, %v2075
    %v2080 = vand.u32 2147483647, %v2055
    %vm2081 = vcmp.eq.f32.partialorder %v2080, 8.507059e+37
    %v2082 = vand.u32 %v2055, 2147483648
    %v2083 = vor.u32 1.1754944e-38, %v2082
    %v2084 = vsel %vm2081, %v2083, %v2079
    %v2085 = vmul.f32 1.0, %v2084
    %v2086 = vadd.f32 %v1924, %v253
    %v2087 = vmul.f32 %v2070, %v2086
    %v2088 = vadd.f32 %v252, %v2087
    %v2089 = vtanh.pop %v2088
    %v2090 = vsub.f32 %v1805, %v2089
    %v2091 = vmul.f32 %v2085, %v2090
    %v2092 = vadd.f32 %v2089, %v2091
    %2093 = vmatpush.msra.mxu0 %v197
    %2094 = vmatpush.msra.mxu0 %v191
    %2095 = vmatpush.msra.mxu0 %v185
    %2096 = vmatpush.msra.mxu0 %v179
    %2097 = vmatpush.msra.mxu0 %v173
    %2098 = vmatpush.msra.mxu0 %v167
    %2099 = vmatpush.msra.mxu0 %v161
    %2100 = vmatpush.msra.mxu0 %v155
    %2101 = vmatpush.msra.mxu0 %v149
    %2102 = vmatpush.msra.mxu0 %v143
    %2103 = vmatpush.msra.mxu0 %v137
    %2104 = vmatpush.msra.mxu0 %v131
    %2105 = vmatpush.msra.mxu0 %v125
    %2106 = vmatpush.msra.mxu0 %v119
    %2107 = vmatpush.msra.mxu0 %v113
    %2108 = vmatpush.msra.mxu0 %v107
    %2109 = vmatmul.f32.gmra.mxu0 %v2092
    %v2110 = vpop.f32.mrf.mxu0
    %v2111 = vadd.f32 0.0, %v2110
    %2112 = vdwg.mxu0
    %2113 = vmatpush.msra.mxu0 %v198
    %2114 = vmatpush.msra.mxu0 %v192
    %2115 = vmatpush.msra.mxu0 %v186
    %2116 = vmatpush.msra.mxu0 %v180
    %2117 = vmatpush.msra.mxu0 %v174
    %2118 = vmatpush.msra.mxu0 %v168
    %2119 = vmatpush.msra.mxu0 %v162
    %2120 = vmatpush.msra.mxu0 %v156
    %2121 = vmatpush.msra.mxu0 %v150
    %2122 = vmatpush.msra.mxu0 %v144
    %2123 = vmatpush.msra.mxu0 %v138
    %2124 = vmatpush.msra.mxu0 %v132
    %2125 = vmatpush.msra.mxu0 %v126
    %2126 = vmatpush.msra.mxu0 %v120
    %2127 = vmatpush.msra.mxu0 %v114
    %2128 = vmatpush.msra.mxu0 %v108
    %2129 = vmatmul.f32.gmra.mxu0 %v2092
    %v2130 = vpop.f32.mrf.mxu0
    %v2131 = vadd.f32 0.0, %v2130
    %2132 = vdwg.mxu0
    %2133 = vmatpush.msra.mxu0 %v199
    %2134 = vmatpush.msra.mxu0 %v193
    %2135 = vmatpush.msra.mxu0 %v187
    %2136 = vmatpush.msra.mxu0 %v181
    %2137 = vmatpush.msra.mxu0 %v175
    %2138 = vmatpush.msra.mxu0 %v169
    %2139 = vmatpush.msra.mxu0 %v163
    %2140 = vmatpush.msra.mxu0 %v157
    %2141 = vmatpush.msra.mxu0 %v151
    %2142 = vmatpush.msra.mxu0 %v145
    %2143 = vmatpush.msra.mxu0 %v139
    %2144 = vmatpush.msra.mxu0 %v133
    %2145 = vmatpush.msra.mxu0 %v127
    %2146 = vmatpush.msra.mxu0 %v121
    %2147 = vmatpush.msra.mxu0 %v115
    %2148 = vmatpush.msra.mxu0 %v109
    %2149 = vmatmul.f32.gmra.mxu0 %v2092
    %v2150 = vpop.f32.mrf.mxu0
    %v2151 = vadd.f32 0.0, %v2150
    %2152 = vdwg.mxu0
    %2153 = vmatpush.msra.mxu0 %v200
    %2154 = vmatpush.msra.mxu0 %v194
    %2155 = vmatpush.msra.mxu0 %v188
    %2156 = vmatpush.msra.mxu0 %v182
    %2157 = vmatpush.msra.mxu0 %v176
    %2158 = vmatpush.msra.mxu0 %v170
    %2159 = vmatpush.msra.mxu0 %v164
    %2160 = vmatpush.msra.mxu0 %v158
    %2161 = vmatpush.msra.mxu0 %v152
    %2162 = vmatpush.msra.mxu0 %v146
    %2163 = vmatpush.msra.mxu0 %v140
    %2164 = vmatpush.msra.mxu0 %v134
    %2165 = vmatpush.msra.mxu0 %v128
    %2166 = vmatpush.msra.mxu0 %v122
    %2167 = vmatpush.msra.mxu0 %v116
    %2168 = vmatpush.msra.mxu0 %v110
    %2169 = vmatmul.f32.gmra.mxu0 %v2092
    %v2170 = vpop.f32.mrf.mxu0
    %v2171 = vadd.f32 0.0, %v2170
    %2172 = vdwg.mxu0
    %2173 = vmatpush.msra.mxu0 %v201
    %2174 = vmatpush.msra.mxu0 %v195
    %2175 = vmatpush.msra.mxu0 %v189
    %2176 = vmatpush.msra.mxu0 %v183
    %2177 = vmatpush.msra.mxu0 %v177
    %2178 = vmatpush.msra.mxu0 %v171
    %2179 = vmatpush.msra.mxu0 %v165
    %2180 = vmatpush.msra.mxu0 %v159
    %2181 = vmatpush.msra.mxu0 %v153
    %2182 = vmatpush.msra.mxu0 %v147
    %2183 = vmatpush.msra.mxu0 %v141
    %2184 = vmatpush.msra.mxu0 %v135
    %2185 = vmatpush.msra.mxu0 %v129
    %2186 = vmatpush.msra.mxu0 %v123
    %2187 = vmatpush.msra.mxu0 %v117
    %2188 = vmatpush.msra.mxu0 %v111
    %2189 = vmatmul.f32.gmra.mxu0 %v2092
    %v2190 = vpop.f32.mrf.mxu0
    %v2191 = vadd.f32 0.0, %v2190
    %2192 = vdwg.mxu0
    %2193 = vmatpush.msra.mxu0 %v202
    %2194 = vmatpush.msra.mxu0 %v196
    %2195 = vmatpush.msra.mxu0 %v190
    %2196 = vmatpush.msra.mxu0 %v184
    %2197 = vmatpush.msra.mxu0 %v178
    %2198 = vmatpush.msra.mxu0 %v172
    %2199 = vmatpush.msra.mxu0 %v166
    %2200 = vmatpush.msra.mxu0 %v160
    %2201 = vmatpush.msra.mxu0 %v154
    %2202 = vmatpush.msra.mxu0 %v148
    %2203 = vmatpush.msra.mxu0 %v142
    %2204 = vmatpush.msra.mxu0 %v136
    %2205 = vmatpush.msra.mxu0 %v130
    %2206 = vmatpush.msra.mxu0 %v124
    %2207 = vmatpush.msra.mxu0 %v118
    %2208 = vmatpush.msra.mxu0 %v112
    %2209 = vmatmul.f32.gmra.mxu0 %v2092
    %v2210 = vpop.f32.mrf.mxu0
    %v2211 = vadd.f32 0.0, %v2210
    %2212 = vdwg.mxu0
    %2213 = vmatpush.msra.mxu0 %v248
    %2214 = vmatpush.msra.mxu0 %v245
    %2215 = vmatpush.msra.mxu0 %v242
    %2216 = vmatpush.msra.mxu0 %v239
    %2217 = vmatpush.msra.mxu0 %v236
    %2218 = vmatpush.msra.mxu0 %v233
    %2219 = vmatpush.msra.mxu0 %v230
    %2220 = vmatpush.msra.mxu0 %v227
    %2221 = vmatpush.msra.mxu0 %v224
    %2222 = vmatpush.msra.mxu0 %v221
    %2223 = vmatpush.msra.mxu0 %v218
    %2224 = vmatpush.msra.mxu0 %v215
    %2225 = vmatpush.msra.mxu0 %v212
    %2226 = vmatpush.msra.mxu0 %v209
    %2227 = vmatpush.msra.mxu0 %v206
    %2228 = vmatpush.msra.mxu0 %v203
    %2229 = vmatmul.f32.gmra.mxu0 %v2040
    %v2230 = vpop.f32.mrf.mxu0
    %v2231 = vadd.f32 0.0, %v2230
    %2232 = vdwg.mxu0
    %2233 = vmatpush.msra.mxu0 %v249
    %2234 = vmatpush.msra.mxu0 %v246
    %2235 = vmatpush.msra.mxu0 %v243
    %2236 = vmatpush.msra.mxu0 %v240
    %2237 = vmatpush.msra.mxu0 %v237
    %2238 = vmatpush.msra.mxu0 %v234
    %2239 = vmatpush.msra.mxu0 %v231
    %2240 = vmatpush.msra.mxu0 %v228
    %2241 = vmatpush.msra.mxu0 %v225
    %2242 = vmatpush.msra.mxu0 %v222
    %2243 = vmatpush.msra.mxu0 %v219
    %2244 = vmatpush.msra.mxu0 %v216
    %2245 = vmatpush.msra.mxu0 %v213
    %2246 = vmatpush.msra.mxu0 %v210
    %2247 = vmatpush.msra.mxu0 %v207
    %2248 = vmatpush.msra.mxu0 %v204
    %2249 = vmatmul.f32.gmra.mxu0 %v2040
    %v2250 = vpop.f32.mrf.mxu0
    %v2251 = vadd.f32 0.0, %v2250
    %2252 = vdwg.mxu0
    %2253 = vmatpush.msra.mxu0 %v250
    %2254 = vmatpush.msra.mxu0 %v247
    %2255 = vmatpush.msra.mxu0 %v244
    %2256 = vmatpush.msra.mxu0 %v241
    %2257 = vmatpush.msra.mxu0 %v238
    %2258 = vmatpush.msra.mxu0 %v235
    %2259 = vmatpush.msra.mxu0 %v232
    %2260 = vmatpush.msra.mxu0 %v229
    %2261 = vmatpush.msra.mxu0 %v226
    %2262 = vmatpush.msra.mxu0 %v223
    %2263 = vmatpush.msra.mxu0 %v220
    %2264 = vmatpush.msra.mxu0 %v217
    %2265 = vmatpush.msra.mxu0 %v214
    %2266 = vmatpush.msra.mxu0 %v211
    %2267 = vmatpush.msra.mxu0 %v208
    %2268 = vmatpush.msra.mxu0 %v205
    %2269 = vmatmul.f32.gmra.mxu0 %v2040
    %v2270 = vpop.f32.mrf.mxu0
    %v2271 = vadd.f32 0.0, %v2270
    %2272 = vdwg.mxu0
    %v2273 = vadd.f32 %v2111, %v2231
    %v2274 = vadd.f32 %v2131, %v2251
    %2275 = vst [vmem:[#allocation1] ss:$2 sm:$0xff] %v254
    %v2276 = vld.sshfl [vmem:[#allocation1] sm:$0xff pattern:$0x75316420]
    %v2277 = vld.sshfl [vmem:[#allocation1 + $0x8] sm:$0xff pattern:$0x75316420]
    %v2280 = vadd.f32 %v2273, %v2276
    %v2281 = vadd.f32 %v2274, %v2277
    %v2282 = vxor.u32 %v2280, 2147483648
    %v2283 = vxor.u32 %v2281, 2147483648
    %v2284 = vmul.f32 %v2282, 1.442695
    %v2285 = vpow.pop %v2284
    %v2286 = vmul.f32 %v2283, 1.442695
    %v2287 = vpow.pop %v2286
    %v2288 = vadd.f32 %v2285, 1.0
    %v2289 = vadd.f32 %v2287, 1.0
    %v2290 = vrcp.pop %v2288
    %v2291 = vmul.f32 %v2288, %v2290
    %v2292 = vsub.f32 1.0, %v2291
    %v2293 = vmul.f32 %v2290, %v2292
    %v2294 = vadd.f32 %v2290, %v2293
    %vm2295 = vweird.f32 %v2288
    %vm2296 = vweird.f32 %v2290
    %vm2297 = vmor %vm2295, %vm2296
    %v2298 = vsel %vm2297, %v2290, %v2294
    %v2299 = vand.u32 2147483647, %v2288
    %vm2300 = vcmp.eq.f32.partialorder %v2299, 8.507059e+37
    %v2301 = vand.u32 %v2288, 2147483648
    %v2302 = vor.u32 1.1754944e-38, %v2301
    %v2303 = vsel %vm2300, %v2302, %v2298
    %v2304 = vmul.f32 1.0, %v2303
    %v2305 = vrcp.pop %v2289
    %v2306 = vmul.f32 %v2289, %v2305
    %v2307 = vsub.f32 1.0, %v2306
    %v2308 = vmul.f32 %v2305, %v2307
    %v2309 = vadd.f32 %v2305, %v2308
    %vm2310 = vweird.f32 %v2289
    %vm2311 = vweird.f32 %v2305
    %vm2312 = vmor %vm2310, %vm2311
    %v2313 = vsel %vm2312, %v2305, %v2309
    %v2314 = vand.u32 2147483647, %v2289
    %vm2315 = vcmp.eq.f32.partialorder %v2314, 8.507059e+37
    %v2316 = vand.u32 %v2289, 2147483648
    %v2317 = vor.u32 1.1754944e-38, %v2316
    %v2318 = vsel %vm2315, %v2317, %v2313
    %v2319 = vmul.f32 1.0, %v2318
    %v2320 = vadd.f32 %v2151, %v255
    %v2321 = vadd.f32 %v2271, %v256
    %v2322 = vmul.f32 %v2304, %v2321
    %v2323 = vadd.f32 %v2320, %v2322
    %v2324 = vtanh.pop %v2323
    %v2325 = vsub.f32 %v2040, %v2324
    %v2326 = vmul.f32 %v2319, %v2325
    %v2327 = vadd.f32 %v2324, %v2326
    %2328 = vst [vmem:[#allocation1] ss:$2 sm:$0xff] %v251
    %v2329 = vld.sshfl [vmem:[#allocation1] sm:$0xff pattern:$0x75316420]
    %v2330 = vld.sshfl [vmem:[#allocation1 + $0x8] sm:$0xff pattern:$0x75316420]
    %v2333 = vadd.f32 %v2171, %v2329
    %v2334 = vadd.f32 %v2191, %v2330
    %v2335 = vxor.u32 %v2333, 2147483648
    %v2336 = vxor.u32 %v2334, 2147483648
    %v2337 = vmul.f32 %v2335, 1.442695
    %v2338 = vpow.pop %v2337
    %v2339 = vmul.f32 %v2336, 1.442695
    %v2340 = vpow.pop %v2339
    %v2341 = vadd.f32 %v2338, 1.0
    %v2342 = vadd.f32 %v2340, 1.0
    %v2343 = vrcp.pop %v2341
    %v2344 = vmul.f32 %v2341, %v2343
    %v2345 = vsub.f32 1.0, %v2344
    %v2346 = vmul.f32 %v2343, %v2345
    %v2347 = vadd.f32 %v2343, %v2346
    %vm2348 = vweird.f32 %v2341
    %vm2349 = vweird.f32 %v2343
    %vm2350 = vmor %vm2348, %vm2349
    %v2351 = vsel %vm2350, %v2343, %v2347
    %v2352 = vand.u32 2147483647, %v2341
    %vm2353 = vcmp.eq.f32.partialorder %v2352, 8.507059e+37
    %v2354 = vand.u32 %v2341, 2147483648
    %v2355 = vor.u32 1.1754944e-38, %v2354
    %v2356 = vsel %vm2353, %v2355, %v2351
    %v2357 = vmul.f32 1.0, %v2356
    %v2358 = vrcp.pop %v2342
    %v2359 = vmul.f32 %v2342, %v2358
    %v2360 = vsub.f32 1.0, %v2359
    %v2361 = vmul.f32 %v2358, %v2360
    %v2362 = vadd.f32 %v2358, %v2361
    %vm2363 = vweird.f32 %v2342
    %vm2364 = vweird.f32 %v2358
    %vm2365 = vmor %vm2363, %vm2364
    %v2366 = vsel %vm2365, %v2358, %v2362
    %v2367 = vand.u32 2147483647, %v2342
    %vm2368 = vcmp.eq.f32.partialorder %v2367, 8.507059e+37
    %v2369 = vand.u32 %v2342, 2147483648
    %v2370 = vor.u32 1.1754944e-38, %v2369
    %v2371 = vsel %vm2368, %v2370, %v2366
    %v2372 = vmul.f32 1.0, %v2371
    %v2373 = vadd.f32 %v2211, %v253
    %v2374 = vmul.f32 %v2357, %v2373
    %v2375 = vadd.f32 %v252, %v2374
    %v2376 = vtanh.pop %v2375
    %v2377 = vsub.f32 %v2092, %v2376
    %v2378 = vmul.f32 %v2372, %v2377
    %v2379 = vadd.f32 %v2376, %v2378
    %2380 = vmatpush.msra.mxu0 %v197
    %2381 = vmatpush.msra.mxu0 %v191
    %2382 = vmatpush.msra.mxu0 %v185
    %2383 = vmatpush.msra.mxu0 %v179
    %2384 = vmatpush.msra.mxu0 %v173
    %2385 = vmatpush.msra.mxu0 %v167
    %2386 = vmatpush.msra.mxu0 %v161
    %2387 = vmatpush.msra.mxu0 %v155
    %2388 = vmatpush.msra.mxu0 %v149
    %2389 = vmatpush.msra.mxu0 %v143
    %2390 = vmatpush.msra.mxu0 %v137
    %2391 = vmatpush.msra.mxu0 %v131
    %2392 = vmatpush.msra.mxu0 %v125
    %2393 = vmatpush.msra.mxu0 %v119
    %2394 = vmatpush.msra.mxu0 %v113
    %2395 = vmatpush.msra.mxu0 %v107
    %2396 = vmatmul.f32.gmra.mxu0 %v2379
    %v2397 = vpop.f32.mrf.mxu0
    %v2398 = vadd.f32 0.0, %v2397
    %2399 = vdwg.mxu0
    %2400 = vmatpush.msra.mxu0 %v198
    %2401 = vmatpush.msra.mxu0 %v192
    %2402 = vmatpush.msra.mxu0 %v186
    %2403 = vmatpush.msra.mxu0 %v180
    %2404 = vmatpush.msra.mxu0 %v174
    %2405 = vmatpush.msra.mxu0 %v168
    %2406 = vmatpush.msra.mxu0 %v162
    %2407 = vmatpush.msra.mxu0 %v156
    %2408 = vmatpush.msra.mxu0 %v150
    %2409 = vmatpush.msra.mxu0 %v144
    %2410 = vmatpush.msra.mxu0 %v138
    %2411 = vmatpush.msra.mxu0 %v132
    %2412 = vmatpush.msra.mxu0 %v126
    %2413 = vmatpush.msra.mxu0 %v120
    %2414 = vmatpush.msra.mxu0 %v114
    %2415 = vmatpush.msra.mxu0 %v108
    %2416 = vmatmul.f32.gmra.mxu0 %v2379
    %v2417 = vpop.f32.mrf.mxu0
    %v2418 = vadd.f32 0.0, %v2417
    %2419 = vdwg.mxu0
    %2420 = vmatpush.msra.mxu0 %v199
    %2421 = vmatpush.msra.mxu0 %v193
    %2422 = vmatpush.msra.mxu0 %v187
    %2423 = vmatpush.msra.mxu0 %v181
    %2424 = vmatpush.msra.mxu0 %v175
    %2425 = vmatpush.msra.mxu0 %v169
    %2426 = vmatpush.msra.mxu0 %v163
    %2427 = vmatpush.msra.mxu0 %v157
    %2428 = vmatpush.msra.mxu0 %v151
    %2429 = vmatpush.msra.mxu0 %v145
    %2430 = vmatpush.msra.mxu0 %v139
    %2431 = vmatpush.msra.mxu0 %v133
    %2432 = vmatpush.msra.mxu0 %v127
    %2433 = vmatpush.msra.mxu0 %v121
    %2434 = vmatpush.msra.mxu0 %v115
    %2435 = vmatpush.msra.mxu0 %v109
    %2436 = vmatmul.f32.gmra.mxu0 %v2379
    %v2437 = vpop.f32.mrf.mxu0
    %v2438 = vadd.f32 0.0, %v2437
    %2439 = vdwg.mxu0
    %2440 = vmatpush.msra.mxu0 %v248
    %2441 = vmatpush.msra.mxu0 %v245
    %2442 = vmatpush.msra.mxu0 %v242
    %2443 = vmatpush.msra.mxu0 %v239
    %2444 = vmatpush.msra.mxu0 %v236
    %2445 = vmatpush.msra.mxu0 %v233
    %2446 = vmatpush.msra.mxu0 %v230
    %2447 = vmatpush.msra.mxu0 %v227
    %2448 = vmatpush.msra.mxu0 %v224
    %2449 = vmatpush.msra.mxu0 %v221
    %2450 = vmatpush.msra.mxu0 %v218
    %2451 = vmatpush.msra.mxu0 %v215
    %2452 = vmatpush.msra.mxu0 %v212
    %2453 = vmatpush.msra.mxu0 %v209
    %2454 = vmatpush.msra.mxu0 %v206
    %2455 = vmatpush.msra.mxu0 %v203
    %2456 = vmatmul.f32.gmra.mxu0 %v2327
    %v2457 = vpop.f32.mrf.mxu0
    %v2458 = vadd.f32 0.0, %v2457
    %2459 = vdwg.mxu0
    %2460 = vmatpush.msra.mxu0 %v249
    %2461 = vmatpush.msra.mxu0 %v246
    %2462 = vmatpush.msra.mxu0 %v243
    %2463 = vmatpush.msra.mxu0 %v240
    %2464 = vmatpush.msra.mxu0 %v237
    %2465 = vmatpush.msra.mxu0 %v234
    %2466 = vmatpush.msra.mxu0 %v231
    %2467 = vmatpush.msra.mxu0 %v228
    %2468 = vmatpush.msra.mxu0 %v225
    %2469 = vmatpush.msra.mxu0 %v222
    %2470 = vmatpush.msra.mxu0 %v219
    %2471 = vmatpush.msra.mxu0 %v216
    %2472 = vmatpush.msra.mxu0 %v213
    %2473 = vmatpush.msra.mxu0 %v210
    %2474 = vmatpush.msra.mxu0 %v207
    %2475 = vmatpush.msra.mxu0 %v204
    %2476 = vmatmul.f32.gmra.mxu0 %v2327
    %v2477 = vpop.f32.mrf.mxu0
    %v2478 = vadd.f32 0.0, %v2477
    %2479 = vdwg.mxu0
    %2480 = vmatpush.msra.mxu0 %v250
    %2481 = vmatpush.msra.mxu0 %v247
    %2482 = vmatpush.msra.mxu0 %v244
    %2483 = vmatpush.msra.mxu0 %v241
    %2484 = vmatpush.msra.mxu0 %v238
    %2485 = vmatpush.msra.mxu0 %v235
    %2486 = vmatpush.msra.mxu0 %v232
    %2487 = vmatpush.msra.mxu0 %v229
    %2488 = vmatpush.msra.mxu0 %v226
    %2489 = vmatpush.msra.mxu0 %v223
    %2490 = vmatpush.msra.mxu0 %v220
    %2491 = vmatpush.msra.mxu0 %v217
    %2492 = vmatpush.msra.mxu0 %v214
    %2493 = vmatpush.msra.mxu0 %v211
    %2494 = vmatpush.msra.mxu0 %v208
    %2495 = vmatpush.msra.mxu0 %v205
    %2496 = vmatmul.f32.gmra.mxu0 %v2327
    %v2497 = vpop.f32.mrf.mxu0
    %v2498 = vadd.f32 0.0, %v2497
    %2499 = vdwg.mxu0
    %v2500 = vadd.f32 %v2398, %v2458
    %v2501 = vadd.f32 %v2418, %v2478
    %2502 = vst [vmem:[#allocation1] ss:$2 sm:$0xff] %v254
    %v2503 = vld.sshfl [vmem:[#allocation1] sm:$0xff pattern:$0x75316420]
    %v2504 = vld.sshfl [vmem:[#allocation1 + $0x8] sm:$0xff pattern:$0x75316420]
    %v2507 = vadd.f32 %v2500, %v2503
    %v2508 = vadd.f32 %v2501, %v2504
    %v2509 = vxor.u32 %v2507, 2147483648
    %v2510 = vxor.u32 %v2508, 2147483648
    %v2511 = vmul.f32 %v2509, 1.442695
    %v2512 = vpow.pop %v2511
    %v2513 = vmul.f32 %v2510, 1.442695
    %v2514 = vpow.pop %v2513
    %v2515 = vadd.f32 %v2512, 1.0
    %v2516 = vadd.f32 %v2514, 1.0
    %v2517 = vrcp.pop %v2515
    %v2518 = vmul.f32 %v2515, %v2517
    %v2519 = vsub.f32 1.0, %v2518
    %v2520 = vmul.f32 %v2517, %v2519
    %v2521 = vadd.f32 %v2517, %v2520
    %vm2522 = vweird.f32 %v2515
    %vm2523 = vweird.f32 %v2517
    %vm2524 = vmor %vm2522, %vm2523
    %v2525 = vsel %vm2524, %v2517, %v2521
    %v2526 = vand.u32 2147483647, %v2515
    %vm2527 = vcmp.eq.f32.partialorder %v2526, 8.507059e+37
    %v2528 = vand.u32 %v2515, 2147483648
    %v2529 = vor.u32 1.1754944e-38, %v2528
    %v2530 = vsel %vm2527, %v2529, %v2525
    %v2531 = vmul.f32 1.0, %v2530
    %v2532 = vrcp.pop %v2516
    %v2533 = vmul.f32 %v2516, %v2532
    %v2534 = vsub.f32 1.0, %v2533
    %v2535 = vmul.f32 %v2532, %v2534
    %v2536 = vadd.f32 %v2532, %v2535
    %vm2537 = vweird.f32 %v2516
    %vm2538 = vweird.f32 %v2532
    %vm2539 = vmor %vm2537, %vm2538
    %v2540 = vsel %vm2539, %v2532, %v2536
    %v2541 = vand.u32 2147483647, %v2516
    %vm2542 = vcmp.eq.f32.partialorder %v2541, 8.507059e+37
    %v2543 = vand.u32 %v2516, 2147483648
    %v2544 = vor.u32 1.1754944e-38, %v2543
    %v2545 = vsel %vm2542, %v2544, %v2540
    %v2546 = vmul.f32 1.0, %v2545
    %v2547 = vadd.f32 %v2438, %v255
    %v2548 = vadd.f32 %v2498, %v256
    %v2549 = vmul.f32 %v2531, %v2548
    %v2550 = vadd.f32 %v2547, %v2549
    %v2551 = vtanh.pop %v2550
    %v2552 = vsub.f32 %v2327, %v2551
    %v2553 = vmul.f32 %v2546, %v2552
    %v2554 = vadd.f32 %v2551, %v2553
    %v2555 = vld [vmem:[%s11] sm:$0xff]
    %v2556 = vld [vmem:[%s11 + $0x8] sm:$0xff]
    %v2557 = vld [vmem:[%s11 + $0x10] sm:$0xff]
    %v2558 = vld [vmem:[%s11 + $0x18] sm:$0xff]
    %v2559 = vld [vmem:[%s11 + $0x20] sm:$0xff]
    %v2560 = vld [vmem:[%s11 + $0x28] sm:$0xff]
    %v2561 = vld [vmem:[%s11 + $0x30] sm:$0xff]
    %v2562 = vld [vmem:[%s11 + $0x38] sm:$0xff]
    %v2563 = vld [vmem:[%s11 + $0x40] sm:$0xff]
    %v2564 = vld [vmem:[%s11 + $0x48] sm:$0xff]
    %v2565 = vld [vmem:[%s11 + $0x50] sm:$0xff]
    %v2566 = vld [vmem:[%s11 + $0x58] sm:$0xff]
    %v2567 = vld [vmem:[%s11 + $0x60] sm:$0xff]
    %v2568 = vld [vmem:[%s11 + $0x68] sm:$0xff]
    %v2569 = vld [vmem:[%s11 + $0x70] sm:$0xff]
    %v2570 = vld [vmem:[%s11 + $0x78] sm:$0xff]
    %v2571 = vld [vmem:[%s12] sm:$0x1]
    %v2573 = vperm.slane %v2571, 0
    %2575 = vmatpush.msra.mxu0 %v2570
    %2576 = vmatpush.msra.mxu0 %v2569
    %2577 = vmatpush.msra.mxu0 %v2568
    %2578 = vmatpush.msra.mxu0 %v2567
    %2579 = vmatpush.msra.mxu0 %v2566
    %2580 = vmatpush.msra.mxu0 %v2565
    %2581 = vmatpush.msra.mxu0 %v2564
    %2582 = vmatpush.msra.mxu0 %v2563
    %2583 = vmatpush.msra.mxu0 %v2562
    %2584 = vmatpush.msra.mxu0 %v2561
    %2585 = vmatpush.msra.mxu0 %v2560
    %2586 = vmatpush.msra.mxu0 %v2559
    %2587 = vmatpush.msra.mxu0 %v2558
    %2588 = vmatpush.msra.mxu0 %v2557
    %2589 = vmatpush.msra.mxu0 %v2556
    %2590 = vmatpush.msra.mxu0 %v2555
    %2591 = vmatmul.f32.gmra.mxu0 %v2554
    %v2592 = vpop.f32.mrf.mxu0
    %v2593 = vadd.f32 %v2573, %v2592
    %2594 = vdwg.mxu0
    %vm2595 = vcmask 125952
    %2596 = vst.msk [vmem:[#allocation7] sm:$0xf] %vm2595, %v2593
    // Predicated region
    $region62: #{tpu_custom_call.1} parent=1 // pred_check
      _
    $region63: #{tpu_custom_call.1} parent=1 // pred_check_branch
      %2598 = sbr.rel (0) target = $region65
    $region64: #{tpu_custom_call.1} parent=1 // pred_region
      %2600 = vsyncadd [#allocation4], 0
      %s2602 = sshll.u32 [#allocation7], 4
      %s2603 = int_to_ptr.vmem [resolvable:$true] %s2602
      %s2604 = sshll.u32 %s13, 4
      %s2605 = int_to_ptr.hbm [resolvable:$true] %s2604
      %2607 = dma.vmem_to_hbm [thread:$0]  %s2603, 64, %s2605, [#allocation4]
    $region65: #{tpu_custom_call.1} parent=1 // pred_fallthru
      _
    // Predicated region
    $region66: #{tpu_custom_call.1} parent=1 // pred_check
      _
    $region67: #{tpu_custom_call.1} parent=1 // pred_check_branch
      %2609 = sbr.rel (0) target = $region69
    $region68: #{tpu_custom_call.1} parent=1 // pred_region
      %2611 = dma.done [#allocation4], 64
    $region69: #{tpu_custom_call.1} parent=1 // pred_fallthru
      _
    %2612 = vsyncpa [#allocation3], 1
    %2613 = vsyncpa [#allocation6], 1
    %2614 = vsyncpa [#allocation4], 1

</llo_original>
